<compile_context>
chip_gen: v7x
topology: tpu7x:2x2x1
jax: 0.10.0
libtpu: 0.0.40
codegen_flags: <defaults>
</compile_context>

<pallas_src>
import jax
import jax.numpy as jnp
from jax import lax
from jax.experimental import pallas as pl
from jax.experimental.pallas import tpu as pltpu

_EPS = 0.1 ** 16
_VMEM_LIMIT = 32 * 1024 * 1024


def _pick_tb(batch):
    """Images per conv grid step: even (so TB*64 is a multiple of 128 lanes),
    capped at 8, preferring >= 2 grid steps (v7x has 2 TensorCores)."""
    for tb in (8, 6, 4, 2):
        if batch >= 2 * tb:
            return tb
    return 2


def _tap_slab(src, shift_row, shift_col):
    """Spatially shifted view of a phase slab.

    `src` is (C, L) with lane index  m*64 + u*8 + v  (image, 8x8 local grid).
    Returns src shifted so lane (m, u, v) reads (m, u-shift_row, v-shift_col),
    with zeros where the read falls off the 8x8 grid (the stride-2 halo).
    Implemented as a static lane shift + iota mask (no halo'd scratch, no
    per-step zeroing).
    """
    shift = 8 * shift_row + shift_col
    if shift == 0:
        return src
    c, l = src.shape
    shifted = jnp.concatenate(
        [jnp.zeros((c, shift), src.dtype), src[:, :l - shift]], axis=-1)
    lane = lax.broadcasted_iota(jnp.int32, (c, l), 1)
    bad = None
    if shift_row:
        bad = (lane & 63) < 8                      # u == 0 rows
    if shift_col:
        cbad = (lane & 7) == 0                     # v == 0 cols
        bad = cbad if bad is None else (bad | cbad)
    return jnp.where(bad, 0.0, shifted)


# ------------------- kernel 1: fused conv1+conv2+conv3 (batch-blocked) -------------------

def _conv_stack_kernel(p1_ref, w1_ref, b1_ref, w2_ref, b2_ref, w3_ref, b3_ref,
                       out_ref, y1_s):
    f32 = jnp.float32

    # ---- conv1: one (8,9)@(9,L) matmul per mod-4 spatial phase (16 total).
    # Phase p = ry*4+rx holds conv1-output pixels (Y, X) with Y%4==ry, X%4==rx
    # at local 8x8 coords -- exactly the space-to-depth layout conv2 consumes.
    w1 = w1_ref[...]                                   # (8, 9)
    b1 = b1_ref[...]                                   # (8, 1)
    for p in range(16):
        y = jnp.dot(w1, p1_ref[p], preferred_element_type=f32)      # (8, L)
        y1_s[p] = jnp.maximum(y + b1, 0.0)

    # ---- conv2: 4 output-parity groups; 9 taps folded into one K=72 matmul each.
    w2 = w2_ref[...]                                   # (16, 72)
    b2 = b2_ref[...]                                   # (16, 1)
    y2 = []
    for py in range(2):
        for px in range(2):
            slabs = []
            for a in (-1, 0, 1):
                d = 2 * py + a
                ry, sr = (3, 1) if d < 0 else (d, 0)
                for b in (-1, 0, 1):
                    e = 2 * px + b
                    rx, sc = (3, 1) if e < 0 else (e, 0)
                    slabs.append(_tap_slab(y1_s[ry * 4 + rx], sr, sc))
            patches = jnp.concatenate(slabs, axis=0)                 # (72, L)
            acc = jnp.dot(w2, patches, preferred_element_type=f32)   # (16, L)
            y2.append(jnp.maximum(acc + b2, 0.0))

    # ---- conv3: 9 taps folded into one K=144 matmul.
    slabs = []
    for a in (-1, 0, 1):
        pa, sr = (1, 1) if a < 0 else (a, 0)
        for b in (-1, 0, 1):
            pb, sc = (1, 1) if b < 0 else (b, 0)
            slabs.append(_tap_slab(y2[pa * 2 + pb], sr, sc))
    patches = jnp.concatenate(slabs, axis=0)                         # (144, L)
    acc = jnp.dot(w3_ref[...], patches, preferred_element_type=f32)  # (32, L)
    out_ref[...] = jnp.maximum(acc + b3_ref[...], 0.0).astype(out_ref.dtype)


def _conv_stack(p1, params, tb):
    ncols = p1.shape[2]                 # Bc * 64
    lanes = tb * 64                     # multiple of 128
    return pl.pallas_call(
        _conv_stack_kernel,
        out_shape=jax.ShapeDtypeStruct((32, ncols), jnp.bfloat16),
        grid=(ncols // lanes,),
        in_specs=[
            pl.BlockSpec((16, 9, lanes), lambda g: (0, 0, g)),
            pl.BlockSpec((8, 9), lambda g: (0, 0)),
            pl.BlockSpec((8, 1), lambda g: (0, 0)),
            pl.BlockSpec((16, 72), lambda g: (0, 0)),
            pl.BlockSpec((16, 1), lambda g: (0, 0)),
            pl.BlockSpec((32, 144), lambda g: (0, 0)),
            pl.BlockSpec((32, 1), lambda g: (0, 0)),
        ],
        out_specs=pl.BlockSpec((32, lanes), lambda g: (0, g)),
        scratch_shapes=[pltpu.VMEM((16, 8, lanes), jnp.float32)],
        compiler_params=pltpu.CompilerParams(
            dimension_semantics=("parallel",),
            vmem_limit_bytes=_VMEM_LIMIT),
    )(p1, params["w1m"], params["b1"], params["w2m"], params["b2"],
      params["w3m"], params["b3"])


# ------------------- kernel 2: fused fc1+relu+fc2+softmax -------------------

def _fc_head_kernel(x_ref, wf1_ref, bf1_ref, wf2_ref, bf2_ref, o_ref):
    h = jnp.dot(x_ref[...], wf1_ref[...], preferred_element_type=jnp.float32)
    h = jnp.maximum(h + bf1_ref[...], 0.0)                            # (bm, 128)
    logits = jnp.dot(h, wf2_ref[...],
                     preferred_element_type=jnp.float32) + bf2_ref[...]
    m = jnp.max(logits, axis=-1, keepdims=True)
    e = jnp.exp(logits - m)
    s = jnp.sum(e, axis=-1, keepdims=True)
    o_ref[...] = (e * pl.reciprocal(s, approx=True) + _EPS).astype(o_ref.dtype)


def _fc_head(feats, params):
    Bc, F = feats.shape
    K = params["wf2"].shape[1]
    bm = min(128, ((Bc + 15) // 16) * 16)      # big batch tile (feedback item 7)
    Bp = ((Bc + bm - 1) // bm) * bm
    if Bp != Bc:
        feats = jnp.pad(feats, ((0, Bp - Bc), (0, 0)))
    out = pl.pallas_call(
        _fc_head_kernel,
        out_shape=jax.ShapeDtypeStruct((Bp, K), jnp.float32),
        grid=(Bp // bm,),
        in_specs=[
            pl.BlockSpec((bm, F), lambda i: (i, 0)),
            pl.BlockSpec((F, 128), lambda i: (0, 0)),
            pl.BlockSpec((1, 128), lambda i: (0, 0)),
            pl.BlockSpec((128, K), lambda i: (0, 0)),
            pl.BlockSpec((1, K), lambda i: (0, 0)),
        ],
        out_specs=pl.BlockSpec((bm, K), lambda i: (i, 0)),
        compiler_params=pltpu.CompilerParams(
            dimension_semantics=("parallel",),
            vmem_limit_bytes=_VMEM_LIMIT),
    )(feats, params["wf1"], params["bf1"], params["wf2"], params["bf2"])
    return out[:Bc]


# ----------------------------- wrapper / glue -----------------------------

def _prep_patches(obs):
    """(Bc,1,64,64) -> (16, 9, Bc*64) conv1 im2col patches, lane-dense layout.

    p1[ry*4+rx, kh*3+kw, m*64 + a*8 + b] = padded_input[m, 8a+2ry+kh, 8b+2rx+kw]
    i.e. the conv1 patch for output pixel (Y, X) = (4a+ry, 4b+rx) of image m.
    The >=128 dim (batch x 8x8 local grid) is last, so the kernel's input block
    has no lane padding; the mod-4 phase dim is leading so conv2's space-to-
    depth slicing is free.
    """
    B = obs.shape[0]
    xp = jnp.pad(obs[:, 0], ((0, 0), (1, 1), (1, 1)))            # (B, 66, 66)
    taps = [xp[:, kh:kh + 64:2, kw:kw + 64:2]
            for kh in range(3) for kw in range(3)]               # 9 x (B,32,32)
    t = jnp.stack(taps, axis=0)                                  # (9, B, Y, X)
    t = t.reshape(9, B, 8, 4, 8, 4)                              # (tap, m, a, ry, b, rx)
    t = t.transpose(3, 5, 0, 1, 2, 4)                            # (ry, rx, tap, m, a, b)
    return t.reshape(16, 9, B * 64)


def conv_abstraction_forward(params, obs):
    """obs: (B, 1, 64, 64) float32 -> (B, num_abstract_states)."""
    B = obs.shape[0]
    tb = _pick_tb(B)
    Bc = ((B + tb - 1) // tb) * tb
    if Bc != B:
        obs = jnp.pad(obs, ((0, Bc - B), (0, 0), (0, 0), (0, 0)))
    p1 = _prep_patches(obs)                          # (16, 9, Bc*64) f32
    y3 = _conv_stack(p1, params, tb)                 # (32, Bc*64)  bf16, lane-dense
    # Tiny XLA transpose to per-image rows in PyTorch NCHW-flatten order.
    feats = y3.reshape(32, Bc, 64).transpose(1, 0, 2).reshape(Bc, 2048)
    out = _fc_head(feats, params)                    # (Bc, K)
    return out[:B]


# ----------------------------- parameters -----------------------------

def init_raw_params(key, num_abstract_states):
    """Parameters in the PyTorch module's native layouts."""
    ks = jax.random.split(key, 10)
    s = 0.05
    return {
        "conv1_w": s * jax.random.normal(ks[0], (8, 1, 3, 3), jnp.float32),
        "conv1_b": s * jax.random.normal(ks[1], (8,), jnp.float32),
        "conv2_w": s * jax.random.normal(ks[2], (16, 8, 3, 3), jnp.float32),
        "conv2_b": s * jax.random.normal(ks[3], (16,), jnp.float32),
        "conv3_w": s * jax.random.normal(ks[4], (32, 16, 3, 3), jnp.float32),
        "conv3_b": s * jax.random.normal(ks[5], (32,), jnp.float32),
        "fc1_w": s * jax.random.normal(ks[6], (128, 2048), jnp.float32),
        "fc1_b": s * jax.random.normal(ks[7], (128,), jnp.float32),
        "fc2_w": s * jax.random.normal(ks[8], (num_abstract_states, 128), jnp.float32),
        "fc2_b": s * jax.random.normal(ks[9], (num_abstract_states,), jnp.float32),
    }


def prepare_params(raw):
    """Hoist all weight-layout work out of the forward pass (done once)."""
    k = raw["fc2_w"].shape[0]
    return {
        # conv1: (8,1,3,3) -> (8, 9), column = kh*3+kw.
        "w1m": raw["conv1_w"].reshape(8, 9),
        "b1": raw["conv1_b"].reshape(8, 1),
        # conv2/conv3: taps folded into the contraction dim, column = tap*Cin + cin.
        "w2m": jnp.transpose(raw["conv2_w"], (0, 2, 3, 1)).reshape(16, 72),
        "b2": raw["conv2_b"].reshape(16, 1),
        "w3m": jnp.transpose(raw["conv3_w"], (0, 2, 3, 1)).reshape(32, 144),
        "b3": raw["conv3_b"].reshape(32, 1),
        # fc1 consumes the PyTorch NCHW-flatten order directly (no row permute).
        "wf1": raw["fc1_w"].T.astype(jnp.bfloat16),              # (2048, 128)
        "bf1": raw["fc1_b"].reshape(1, 128),
        "wf2": raw["fc2_w"].T,                                   # (128, K)
        "bf2": raw["fc2_b"].reshape(1, k),
    }


def reference_forward(raw, obs):
    """Pure-XLA f32 reference of the PyTorch module, for validation."""
    def conv(x, w, b):
        y = jax.lax.conv_general_dilated(
            x, w, window_strides=(2, 2), padding=((1, 1), (1, 1)),
            dimension_numbers=("NCHW", "OIHW", "NCHW"))
        return jax.nn.relu(y + b[None, :, None, None])
    x = conv(obs, raw["conv1_w"], raw["conv1_b"])
    x = conv(x, raw["conv2_w"], raw["conv2_b"])
    x = conv(x, raw["conv3_w"], raw["conv3_b"])
    x = x.reshape(x.shape[0], -1)                                # torch NCHW flatten
    x = jax.nn.relu(x @ raw["fc1_w"].T + raw["fc1_b"])
    logits = x @ raw["fc2_w"].T + raw["fc2_b"]
    return jax.nn.softmax(logits, axis=-1) + _EPS


if __name__ == "__main__":
    num_abstract_states = 6
    key = jax.random.PRNGKey(0)
    k_param, k_obs = jax.random.split(key)

    raw = init_raw_params(k_param, num_abstract_states)
    params = prepare_params(raw)                  # layout work hoisted out of forward
    # Input must be 64x64 so three stride-2 convs give 8x8 (32*8*8 = 2048).
    B = 8
    obs = jax.random.uniform(k_obs, (B, 1, 64, 64), jnp.float32)

    fwd = jax.jit(conv_abstraction_forward)
    out = jax.block_until_ready(fwd(params, obs))

    assert out.shape == (B, num_abstract_states)
    assert bool(jnp.all(jnp.isfinite(out)))
    assert bool(jnp.all(out > 0.0))
    # Softmax rows sum to ~1 (approx-reciprocal introduces <~1e-3 deviation).
    assert bool(jnp.all(jnp.abs(jnp.sum(out, axis=-1) - 1.0) < 1e-2))

    # Cross-check against the pure-XLA f32 reference (bf16 fc1/feats + approx
    # reciprocal keep probability error well below this tolerance).
    ref = jax.block_until_ready(jax.jit(reference_forward)(raw, obs))
    assert bool(jnp.max(jnp.abs(out - ref)) < 2e-2)

    print("KERNEL_OK")
</pallas_src>

<mosaic_0001>
module attributes {stable_mosaic.version = 11 : i64} {
  func.func @_conv_stack_kernel(%arg0: i32, %arg1: memref<16x9x256xf32, #tpu.memory_space<vmem>>, %arg2: memref<8x9xf32, #tpu.memory_space<vmem>>, %arg3: memref<8x1xf32, #tpu.memory_space<vmem>>, %arg4: memref<16x72xf32, #tpu.memory_space<vmem>>, %arg5: memref<16x1xf32, #tpu.memory_space<vmem>>, %arg6: memref<32x144xf32, #tpu.memory_space<vmem>>, %arg7: memref<32x1xf32, #tpu.memory_space<vmem>>, %arg8: memref<32x256xbf16, #tpu.memory_space<vmem>>, %arg9: memref<16x8x256xf32, #tpu.memory_space<vmem>>) attributes {dimension_semantics = [#tpu.dimension_semantics<parallel>], iteration_bounds = array<i64: 2>, scalar_prefetch = 0 : i64, scratch_operands = 1 : i64, tpu.core_type = #tpu.core_type<tc>, window_params = [{transform_indices = @transform_0, window_bounds = array<i64: 16, 9, 256>}, {pipeline_mode = #tpu.pipeline_mode<synchronous>, transform_indices = @transform_1, window_bounds = array<i64: 8, 9>}, {pipeline_mode = #tpu.pipeline_mode<synchronous>, transform_indices = @transform_2, window_bounds = array<i64: 8, 1>}, {pipeline_mode = #tpu.pipeline_mode<synchronous>, transform_indices = @transform_3, window_bounds = array<i64: 16, 72>}, {pipeline_mode = #tpu.pipeline_mode<synchronous>, transform_indices = @transform_4, window_bounds = array<i64: 16, 1>}, {pipeline_mode = #tpu.pipeline_mode<synchronous>, transform_indices = @transform_5, window_bounds = array<i64: 32, 144>}, {pipeline_mode = #tpu.pipeline_mode<synchronous>, transform_indices = @transform_6, window_bounds = array<i64: 32, 1>}, {transform_indices = @transform_7, window_bounds = array<i64: 32, 256>}]} {
    %c0 = arith.constant 0 : index
    %c0_0 = arith.constant 0 : index
    %0 = vector.load %arg2[%c0, %c0_0] : memref<8x9xf32, #tpu.memory_space<vmem>>, vector<8x9xf32>
    %c0_1 = arith.constant 0 : index
    %c0_2 = arith.constant 0 : index
    %1 = vector.load %arg3[%c0_1, %c0_2] : memref<8x1xf32, #tpu.memory_space<vmem>>, vector<8x1xf32>
    %c0_3 = arith.constant 0 : index
    %c0_4 = arith.constant 0 : index
    %c0_5 = arith.constant 0 : index
    %2 = vector.load %arg1[%c0_3, %c0_4, %c0_5] : memref<16x9x256xf32, #tpu.memory_space<vmem>>, vector<1x9x256xf32>
    %3 = vector.shape_cast %2 : vector<1x9x256xf32> to vector<9x256xf32>
    %cst = arith.constant dense<0.000000e+00> : vector<8x256xf32>
    %4 = tpu.matmul %0, %3, %cst {dimension_numbers = #tpu.dot_dimension_numbers<[1], [0], [0], [1], [0, 0, 1, 1], [], []>} : vector<8x9xf32>, vector<9x256xf32>, vector<8x256xf32> -> vector<8x256xf32>
    %5 = vector.broadcast %1 : vector<8x1xf32> to vector<8x256xf32>
    %6 = arith.addf %4, %5 : vector<8x256xf32>
    %cst_6 = arith.constant 0.000000e+00 : f32
    %7 = vector.broadcast %cst_6 : f32 to vector<8x256xf32>
    %8 = arith.maximumf %6, %7 : vector<8x256xf32>
    %c0_7 = arith.constant 0 : index
    %c0_8 = arith.constant 0 : index
    %c0_9 = arith.constant 0 : index
    %9 = vector.load %arg9[%c0_7, %c0_8, %c0_9] : memref<16x8x256xf32, #tpu.memory_space<vmem>>, vector<1x8x256xf32>
    %10 = vector.shape_cast %9 : vector<1x8x256xf32> to vector<8x256xf32>
    %11 = vector.shape_cast %8 : vector<8x256xf32> to vector<1x8x256xf32>
    tpu.vector_store %arg9[%c0_7, %c0_8, %c0_9], %11 {strides = array<i32>} : memref<16x8x256xf32, #tpu.memory_space<vmem>>, vector<1x8x256xf32>,
    %c1 = arith.constant 1 : index
    %c0_10 = arith.constant 0 : index
    %c0_11 = arith.constant 0 : index
    %12 = vector.load %arg1[%c1, %c0_10, %c0_11] : memref<16x9x256xf32, #tpu.memory_space<vmem>>, vector<1x9x256xf32>
    %13 = vector.shape_cast %12 : vector<1x9x256xf32> to vector<9x256xf32>
    %cst_12 = arith.constant dense<0.000000e+00> : vector<8x256xf32>
    %14 = tpu.matmul %0, %13, %cst_12 {dimension_numbers = #tpu.dot_dimension_numbers<[1], [0], [0], [1], [0, 0, 1, 1], [], []>} : vector<8x9xf32>, vector<9x256xf32>, vector<8x256xf32> -> vector<8x256xf32>
    %15 = vector.broadcast %1 : vector<8x1xf32> to vector<8x256xf32>
    %16 = arith.addf %14, %15 : vector<8x256xf32>
    %cst_13 = arith.constant 0.000000e+00 : f32
    %17 = vector.broadcast %cst_13 : f32 to vector<8x256xf32>
    %18 = arith.maximumf %16, %17 : vector<8x256xf32>
    %c1_14 = arith.constant 1 : index
    %c0_15 = arith.constant 0 : index
    %c0_16 = arith.constant 0 : index
    %19 = vector.load %arg9[%c1_14, %c0_15, %c0_16] : memref<16x8x256xf32, #tpu.memory_space<vmem>>, vector<1x8x256xf32>
    %20 = vector.shape_cast %19 : vector<1x8x256xf32> to vector<8x256xf32>
    %21 = vector.shape_cast %18 : vector<8x256xf32> to vector<1x8x256xf32>
    tpu.vector_store %arg9[%c1_14, %c0_15, %c0_16], %21 {strides = array<i32>} : memref<16x8x256xf32, #tpu.memory_space<vmem>>, vector<1x8x256xf32>,
    %c2 = arith.constant 2 : index
    %c0_17 = arith.constant 0 : index
    %c0_18 = arith.constant 0 : index
    %22 = vector.load %arg1[%c2, %c0_17, %c0_18] : memref<16x9x256xf32, #tpu.memory_space<vmem>>, vector<1x9x256xf32>
    %23 = vector.shape_cast %22 : vector<1x9x256xf32> to vector<9x256xf32>
    %cst_19 = arith.constant dense<0.000000e+00> : vector<8x256xf32>
    %24 = tpu.matmul %0, %23, %cst_19 {dimension_numbers = #tpu.dot_dimension_numbers<[1], [0], [0], [1], [0, 0, 1, 1], [], []>} : vector<8x9xf32>, vector<9x256xf32>, vector<8x256xf32> -> vector<8x256xf32>
    %25 = vector.broadcast %1 : vector<8x1xf32> to vector<8x256xf32>
    %26 = arith.addf %24, %25 : vector<8x256xf32>
    %cst_20 = arith.constant 0.000000e+00 : f32
    %27 = vector.broadcast %cst_20 : f32 to vector<8x256xf32>
    %28 = arith.maximumf %26, %27 : vector<8x256xf32>
    %c2_21 = arith.constant 2 : index
    %c0_22 = arith.constant 0 : index
    %c0_23 = arith.constant 0 : index
    %29 = vector.load %arg9[%c2_21, %c0_22, %c0_23] : memref<16x8x256xf32, #tpu.memory_space<vmem>>, vector<1x8x256xf32>
    %30 = vector.shape_cast %29 : vector<1x8x256xf32> to vector<8x256xf32>
    %31 = vector.shape_cast %28 : vector<8x256xf32> to vector<1x8x256xf32>
    tpu.vector_store %arg9[%c2_21, %c0_22, %c0_23], %31 {strides = array<i32>} : memref<16x8x256xf32, #tpu.memory_space<vmem>>, vector<1x8x256xf32>,
    %c3 = arith.constant 3 : index
    %c0_24 = arith.constant 0 : index
    %c0_25 = arith.constant 0 : index
    %32 = vector.load %arg1[%c3, %c0_24, %c0_25] : memref<16x9x256xf32, #tpu.memory_space<vmem>>, vector<1x9x256xf32>
    %33 = vector.shape_cast %32 : vector<1x9x256xf32> to vector<9x256xf32>
    %cst_26 = arith.constant dense<0.000000e+00> : vector<8x256xf32>
    %34 = tpu.matmul %0, %33, %cst_26 {dimension_numbers = #tpu.dot_dimension_numbers<[1], [0], [0], [1], [0, 0, 1, 1], [], []>} : vector<8x9xf32>, vector<9x256xf32>, vector<8x256xf32> -> vector<8x256xf32>
    %35 = vector.broadcast %1 : vector<8x1xf32> to vector<8x256xf32>
    %36 = arith.addf %34, %35 : vector<8x256xf32>
    %cst_27 = arith.constant 0.000000e+00 : f32
    %37 = vector.broadcast %cst_27 : f32 to vector<8x256xf32>
    %38 = arith.maximumf %36, %37 : vector<8x256xf32>
    %c3_28 = arith.constant 3 : index
    %c0_29 = arith.constant 0 : index
    %c0_30 = arith.constant 0 : index
    %39 = vector.load %arg9[%c3_28, %c0_29, %c0_30] : memref<16x8x256xf32, #tpu.memory_space<vmem>>, vector<1x8x256xf32>
    %40 = vector.shape_cast %39 : vector<1x8x256xf32> to vector<8x256xf32>
    %41 = vector.shape_cast %38 : vector<8x256xf32> to vector<1x8x256xf32>
    tpu.vector_store %arg9[%c3_28, %c0_29, %c0_30], %41 {strides = array<i32>} : memref<16x8x256xf32, #tpu.memory_space<vmem>>, vector<1x8x256xf32>,
    %c4 = arith.constant 4 : index
    %c0_31 = arith.constant 0 : index
    %c0_32 = arith.constant 0 : index
    %42 = vector.load %arg1[%c4, %c0_31, %c0_32] : memref<16x9x256xf32, #tpu.memory_space<vmem>>, vector<1x9x256xf32>
    %43 = vector.shape_cast %42 : vector<1x9x256xf32> to vector<9x256xf32>
    %cst_33 = arith.constant dense<0.000000e+00> : vector<8x256xf32>
    %44 = tpu.matmul %0, %43, %cst_33 {dimension_numbers = #tpu.dot_dimension_numbers<[1], [0], [0], [1], [0, 0, 1, 1], [], []>} : vector<8x9xf32>, vector<9x256xf32>, vector<8x256xf32> -> vector<8x256xf32>
    %45 = vector.broadcast %1 : vector<8x1xf32> to vector<8x256xf32>
    %46 = arith.addf %44, %45 : vector<8x256xf32>
    %cst_34 = arith.constant 0.000000e+00 : f32
    %47 = vector.broadcast %cst_34 : f32 to vector<8x256xf32>
    %48 = arith.maximumf %46, %47 : vector<8x256xf32>
    %c4_35 = arith.constant 4 : index
    %c0_36 = arith.constant 0 : index
    %c0_37 = arith.constant 0 : index
    %49 = vector.load %arg9[%c4_35, %c0_36, %c0_37] : memref<16x8x256xf32, #tpu.memory_space<vmem>>, vector<1x8x256xf32>
    %50 = vector.shape_cast %49 : vector<1x8x256xf32> to vector<8x256xf32>
    %51 = vector.shape_cast %48 : vector<8x256xf32> to vector<1x8x256xf32>
    tpu.vector_store %arg9[%c4_35, %c0_36, %c0_37], %51 {strides = array<i32>} : memref<16x8x256xf32, #tpu.memory_space<vmem>>, vector<1x8x256xf32>,
    %c5 = arith.constant 5 : index
    %c0_38 = arith.constant 0 : index
    %c0_39 = arith.constant 0 : index
    %52 = vector.load %arg1[%c5, %c0_38, %c0_39] : memref<16x9x256xf32, #tpu.memory_space<vmem>>, vector<1x9x256xf32>
    %53 = vector.shape_cast %52 : vector<1x9x256xf32> to vector<9x256xf32>
    %cst_40 = arith.constant dense<0.000000e+00> : vector<8x256xf32>
    %54 = tpu.matmul %0, %53, %cst_40 {dimension_numbers = #tpu.dot_dimension_numbers<[1], [0], [0], [1], [0, 0, 1, 1], [], []>} : vector<8x9xf32>, vector<9x256xf32>, vector<8x256xf32> -> vector<8x256xf32>
    %55 = vector.broadcast %1 : vector<8x1xf32> to vector<8x256xf32>
    %56 = arith.addf %54, %55 : vector<8x256xf32>
    %cst_41 = arith.constant 0.000000e+00 : f32
    %57 = vector.broadcast %cst_41 : f32 to vector<8x256xf32>
    %58 = arith.maximumf %56, %57 : vector<8x256xf32>
    %c5_42 = arith.constant 5 : index
    %c0_43 = arith.constant 0 : index
    %c0_44 = arith.constant 0 : index
    %59 = vector.load %arg9[%c5_42, %c0_43, %c0_44] : memref<16x8x256xf32, #tpu.memory_space<vmem>>, vector<1x8x256xf32>
    %60 = vector.shape_cast %59 : vector<1x8x256xf32> to vector<8x256xf32>
    %61 = vector.shape_cast %58 : vector<8x256xf32> to vector<1x8x256xf32>
    tpu.vector_store %arg9[%c5_42, %c0_43, %c0_44], %61 {strides = array<i32>} : memref<16x8x256xf32, #tpu.memory_space<vmem>>, vector<1x8x256xf32>,
    %c6 = arith.constant 6 : index
    %c0_45 = arith.constant 0 : index
    %c0_46 = arith.constant 0 : index
    %62 = vector.load %arg1[%c6, %c0_45, %c0_46] : memref<16x9x256xf32, #tpu.memory_space<vmem>>, vector<1x9x256xf32>
    %63 = vector.shape_cast %62 : vector<1x9x256xf32> to vector<9x256xf32>
    %cst_47 = arith.constant dense<0.000000e+00> : vector<8x256xf32>
    %64 = tpu.matmul %0, %63, %cst_47 {dimension_numbers = #tpu.dot_dimension_numbers<[1], [0], [0], [1], [0, 0, 1, 1], [], []>} : vector<8x9xf32>, vector<9x256xf32>, vector<8x256xf32> -> vector<8x256xf32>
    %65 = vector.broadcast %1 : vector<8x1xf32> to vector<8x256xf32>
    %66 = arith.addf %64, %65 : vector<8x256xf32>
    %cst_48 = arith.constant 0.000000e+00 : f32
    %67 = vector.broadcast %cst_48 : f32 to vector<8x256xf32>
    %68 = arith.maximumf %66, %67 : vector<8x256xf32>
    %c6_49 = arith.constant 6 : index
    %c0_50 = arith.constant 0 : index
    %c0_51 = arith.constant 0 : index
    %69 = vector.load %arg9[%c6_49, %c0_50, %c0_51] : memref<16x8x256xf32, #tpu.memory_space<vmem>>, vector<1x8x256xf32>
    %70 = vector.shape_cast %69 : vector<1x8x256xf32> to vector<8x256xf32>
    %71 = vector.shape_cast %68 : vector<8x256xf32> to vector<1x8x256xf32>
    tpu.vector_store %arg9[%c6_49, %c0_50, %c0_51], %71 {strides = array<i32>} : memref<16x8x256xf32, #tpu.memory_space<vmem>>, vector<1x8x256xf32>,
    %c7 = arith.constant 7 : index
    %c0_52 = arith.constant 0 : index
    %c0_53 = arith.constant 0 : index
    %72 = vector.load %arg1[%c7, %c0_52, %c0_53] : memref<16x9x256xf32, #tpu.memory_space<vmem>>, vector<1x9x256xf32>
    %73 = vector.shape_cast %72 : vector<1x9x256xf32> to vector<9x256xf32>
    %cst_54 = arith.constant dense<0.000000e+00> : vector<8x256xf32>
    %74 = tpu.matmul %0, %73, %cst_54 {dimension_numbers = #tpu.dot_dimension_numbers<[1], [0], [0], [1], [0, 0, 1, 1], [], []>} : vector<8x9xf32>, vector<9x256xf32>, vector<8x256xf32> -> vector<8x256xf32>
    %75 = vector.broadcast %1 : vector<8x1xf32> to vector<8x256xf32>
    %76 = arith.addf %74, %75 : vector<8x256xf32>
    %cst_55 = arith.constant 0.000000e+00 : f32
    %77 = vector.broadcast %cst_55 : f32 to vector<8x256xf32>
    %78 = arith.maximumf %76, %77 : vector<8x256xf32>
    %c7_56 = arith.constant 7 : index
    %c0_57 = arith.constant 0 : index
    %c0_58 = arith.constant 0 : index
    %79 = vector.load %arg9[%c7_56, %c0_57, %c0_58] : memref<16x8x256xf32, #tpu.memory_space<vmem>>, vector<1x8x256xf32>
    %80 = vector.shape_cast %79 : vector<1x8x256xf32> to vector<8x256xf32>
    %81 = vector.shape_cast %78 : vector<8x256xf32> to vector<1x8x256xf32>
    tpu.vector_store %arg9[%c7_56, %c0_57, %c0_58], %81 {strides = array<i32>} : memref<16x8x256xf32, #tpu.memory_space<vmem>>, vector<1x8x256xf32>,
    %c8 = arith.constant 8 : index
    %c0_59 = arith.constant 0 : index
    %c0_60 = arith.constant 0 : index
    %82 = vector.load %arg1[%c8, %c0_59, %c0_60] : memref<16x9x256xf32, #tpu.memory_space<vmem>>, vector<1x9x256xf32>
    %83 = vector.shape_cast %82 : vector<1x9x256xf32> to vector<9x256xf32>
    %cst_61 = arith.constant dense<0.000000e+00> : vector<8x256xf32>
    %84 = tpu.matmul %0, %83, %cst_61 {dimension_numbers = #tpu.dot_dimension_numbers<[1], [0], [0], [1], [0, 0, 1, 1], [], []>} : vector<8x9xf32>, vector<9x256xf32>, vector<8x256xf32> -> vector<8x256xf32>
    %85 = vector.broadcast %1 : vector<8x1xf32> to vector<8x256xf32>
    %86 = arith.addf %84, %85 : vector<8x256xf32>
    %cst_62 = arith.constant 0.000000e+00 : f32
    %87 = vector.broadcast %cst_62 : f32 to vector<8x256xf32>
    %88 = arith.maximumf %86, %87 : vector<8x256xf32>
    %c8_63 = arith.constant 8 : index
    %c0_64 = arith.constant 0 : index
    %c0_65 = arith.constant 0 : index
    %89 = vector.load %arg9[%c8_63, %c0_64, %c0_65] : memref<16x8x256xf32, #tpu.memory_space<vmem>>, vector<1x8x256xf32>
    %90 = vector.shape_cast %89 : vector<1x8x256xf32> to vector<8x256xf32>
    %91 = vector.shape_cast %88 : vector<8x256xf32> to vector<1x8x256xf32>
    tpu.vector_store %arg9[%c8_63, %c0_64, %c0_65], %91 {strides = array<i32>} : memref<16x8x256xf32, #tpu.memory_space<vmem>>, vector<1x8x256xf32>,
    %c9 = arith.constant 9 : index
    %c0_66 = arith.constant 0 : index
    %c0_67 = arith.constant 0 : index
    %92 = vector.load %arg1[%c9, %c0_66, %c0_67] : memref<16x9x256xf32, #tpu.memory_space<vmem>>, vector<1x9x256xf32>
    %93 = vector.shape_cast %92 : vector<1x9x256xf32> to vector<9x256xf32>
    %cst_68 = arith.constant dense<0.000000e+00> : vector<8x256xf32>
    %94 = tpu.matmul %0, %93, %cst_68 {dimension_numbers = #tpu.dot_dimension_numbers<[1], [0], [0], [1], [0, 0, 1, 1], [], []>} : vector<8x9xf32>, vector<9x256xf32>, vector<8x256xf32> -> vector<8x256xf32>
    %95 = vector.broadcast %1 : vector<8x1xf32> to vector<8x256xf32>
    %96 = arith.addf %94, %95 : vector<8x256xf32>
    %cst_69 = arith.constant 0.000000e+00 : f32
    %97 = vector.broadcast %cst_69 : f32 to vector<8x256xf32>
    %98 = arith.maximumf %96, %97 : vector<8x256xf32>
    %c9_70 = arith.constant 9 : index
    %c0_71 = arith.constant 0 : index
    %c0_72 = arith.constant 0 : index
    %99 = vector.load %arg9[%c9_70, %c0_71, %c0_72] : memref<16x8x256xf32, #tpu.memory_space<vmem>>, vector<1x8x256xf32>
    %100 = vector.shape_cast %99 : vector<1x8x256xf32> to vector<8x256xf32>
    %101 = vector.shape_cast %98 : vector<8x256xf32> to vector<1x8x256xf32>
    tpu.vector_store %arg9[%c9_70, %c0_71, %c0_72], %101 {strides = array<i32>} : memref<16x8x256xf32, #tpu.memory_space<vmem>>, vector<1x8x256xf32>,
    %c10 = arith.constant 10 : index
    %c0_73 = arith.constant 0 : index
    %c0_74 = arith.constant 0 : index
    %102 = vector.load %arg1[%c10, %c0_73, %c0_74] : memref<16x9x256xf32, #tpu.memory_space<vmem>>, vector<1x9x256xf32>
    %103 = vector.shape_cast %102 : vector<1x9x256xf32> to vector<9x256xf32>
    %cst_75 = arith.constant dense<0.000000e+00> : vector<8x256xf32>
    %104 = tpu.matmul %0, %103, %cst_75 {dimension_numbers = #tpu.dot_dimension_numbers<[1], [0], [0], [1], [0, 0, 1, 1], [], []>} : vector<8x9xf32>, vector<9x256xf32>, vector<8x256xf32> -> vector<8x256xf32>
    %105 = vector.broadcast %1 : vector<8x1xf32> to vector<8x256xf32>
    %106 = arith.addf %104, %105 : vector<8x256xf32>
    %cst_76 = arith.constant 0.000000e+00 : f32
    %107 = vector.broadcast %cst_76 : f32 to vector<8x256xf32>
    %108 = arith.maximumf %106, %107 : vector<8x256xf32>
    %c10_77 = arith.constant 10 : index
    %c0_78 = arith.constant 0 : index
    %c0_79 = arith.constant 0 : index
    %109 = vector.load %arg9[%c10_77, %c0_78, %c0_79] : memref<16x8x256xf32, #tpu.memory_space<vmem>>, vector<1x8x256xf32>
    %110 = vector.shape_cast %109 : vector<1x8x256xf32> to vector<8x256xf32>
    %111 = vector.shape_cast %108 : vector<8x256xf32> to vector<1x8x256xf32>
    tpu.vector_store %arg9[%c10_77, %c0_78, %c0_79], %111 {strides = array<i32>} : memref<16x8x256xf32, #tpu.memory_space<vmem>>, vector<1x8x256xf32>,
    %c11 = arith.constant 11 : index
    %c0_80 = arith.constant 0 : index
    %c0_81 = arith.constant 0 : index
    %112 = vector.load %arg1[%c11, %c0_80, %c0_81] : memref<16x9x256xf32, #tpu.memory_space<vmem>>, vector<1x9x256xf32>
    %113 = vector.shape_cast %112 : vector<1x9x256xf32> to vector<9x256xf32>
    %cst_82 = arith.constant dense<0.000000e+00> : vector<8x256xf32>
    %114 = tpu.matmul %0, %113, %cst_82 {dimension_numbers = #tpu.dot_dimension_numbers<[1], [0], [0], [1], [0, 0, 1, 1], [], []>} : vector<8x9xf32>, vector<9x256xf32>, vector<8x256xf32> -> vector<8x256xf32>
    %115 = vector.broadcast %1 : vector<8x1xf32> to vector<8x256xf32>
    %116 = arith.addf %114, %115 : vector<8x256xf32>
    %cst_83 = arith.constant 0.000000e+00 : f32
    %117 = vector.broadcast %cst_83 : f32 to vector<8x256xf32>
    %118 = arith.maximumf %116, %117 : vector<8x256xf32>
    %c11_84 = arith.constant 11 : index
    %c0_85 = arith.constant 0 : index
    %c0_86 = arith.constant 0 : index
    %119 = vector.load %arg9[%c11_84, %c0_85, %c0_86] : memref<16x8x256xf32, #tpu.memory_space<vmem>>, vector<1x8x256xf32>
    %120 = vector.shape_cast %119 : vector<1x8x256xf32> to vector<8x256xf32>
    %121 = vector.shape_cast %118 : vector<8x256xf32> to vector<1x8x256xf32>
    tpu.vector_store %arg9[%c11_84, %c0_85, %c0_86], %121 {strides = array<i32>} : memref<16x8x256xf32, #tpu.memory_space<vmem>>, vector<1x8x256xf32>,
    %c12 = arith.constant 12 : index
    %c0_87 = arith.constant 0 : index
    %c0_88 = arith.constant 0 : index
    %122 = vector.load %arg1[%c12, %c0_87, %c0_88] : memref<16x9x256xf32, #tpu.memory_space<vmem>>, vector<1x9x256xf32>
    %123 = vector.shape_cast %122 : vector<1x9x256xf32> to vector<9x256xf32>
    %cst_89 = arith.constant dense<0.000000e+00> : vector<8x256xf32>
    %124 = tpu.matmul %0, %123, %cst_89 {dimension_numbers = #tpu.dot_dimension_numbers<[1], [0], [0], [1], [0, 0, 1, 1], [], []>} : vector<8x9xf32>, vector<9x256xf32>, vector<8x256xf32> -> vector<8x256xf32>
    %125 = vector.broadcast %1 : vector<8x1xf32> to vector<8x256xf32>
    %126 = arith.addf %124, %125 : vector<8x256xf32>
    %cst_90 = arith.constant 0.000000e+00 : f32
    %127 = vector.broadcast %cst_90 : f32 to vector<8x256xf32>
    %128 = arith.maximumf %126, %127 : vector<8x256xf32>
    %c12_91 = arith.constant 12 : index
    %c0_92 = arith.constant 0 : index
    %c0_93 = arith.constant 0 : index
    %129 = vector.load %arg9[%c12_91, %c0_92, %c0_93] : memref<16x8x256xf32, #tpu.memory_space<vmem>>, vector<1x8x256xf32>
    %130 = vector.shape_cast %129 : vector<1x8x256xf32> to vector<8x256xf32>
    %131 = vector.shape_cast %128 : vector<8x256xf32> to vector<1x8x256xf32>
    tpu.vector_store %arg9[%c12_91, %c0_92, %c0_93], %131 {strides = array<i32>} : memref<16x8x256xf32, #tpu.memory_space<vmem>>, vector<1x8x256xf32>,
    %c13 = arith.constant 13 : index
    %c0_94 = arith.constant 0 : index
    %c0_95 = arith.constant 0 : index
    %132 = vector.load %arg1[%c13, %c0_94, %c0_95] : memref<16x9x256xf32, #tpu.memory_space<vmem>>, vector<1x9x256xf32>
    %133 = vector.shape_cast %132 : vector<1x9x256xf32> to vector<9x256xf32>
    %cst_96 = arith.constant dense<0.000000e+00> : vector<8x256xf32>
    %134 = tpu.matmul %0, %133, %cst_96 {dimension_numbers = #tpu.dot_dimension_numbers<[1], [0], [0], [1], [0, 0, 1, 1], [], []>} : vector<8x9xf32>, vector<9x256xf32>, vector<8x256xf32> -> vector<8x256xf32>
    %135 = vector.broadcast %1 : vector<8x1xf32> to vector<8x256xf32>
    %136 = arith.addf %134, %135 : vector<8x256xf32>
    %cst_97 = arith.constant 0.000000e+00 : f32
    %137 = vector.broadcast %cst_97 : f32 to vector<8x256xf32>
    %138 = arith.maximumf %136, %137 : vector<8x256xf32>
    %c13_98 = arith.constant 13 : index
    %c0_99 = arith.constant 0 : index
    %c0_100 = arith.constant 0 : index
    %139 = vector.load %arg9[%c13_98, %c0_99, %c0_100] : memref<16x8x256xf32, #tpu.memory_space<vmem>>, vector<1x8x256xf32>
    %140 = vector.shape_cast %139 : vector<1x8x256xf32> to vector<8x256xf32>
    %141 = vector.shape_cast %138 : vector<8x256xf32> to vector<1x8x256xf32>
    tpu.vector_store %arg9[%c13_98, %c0_99, %c0_100], %141 {strides = array<i32>} : memref<16x8x256xf32, #tpu.memory_space<vmem>>, vector<1x8x256xf32>,
    %c14 = arith.constant 14 : index
    %c0_101 = arith.constant 0 : index
    %c0_102 = arith.constant 0 : index
    %142 = vector.load %arg1[%c14, %c0_101, %c0_102] : memref<16x9x256xf32, #tpu.memory_space<vmem>>, vector<1x9x256xf32>
    %143 = vector.shape_cast %142 : vector<1x9x256xf32> to vector<9x256xf32>
    %cst_103 = arith.constant dense<0.000000e+00> : vector<8x256xf32>
    %144 = tpu.matmul %0, %143, %cst_103 {dimension_numbers = #tpu.dot_dimension_numbers<[1], [0], [0], [1], [0, 0, 1, 1], [], []>} : vector<8x9xf32>, vector<9x256xf32>, vector<8x256xf32> -> vector<8x256xf32>
    %145 = vector.broadcast %1 : vector<8x1xf32> to vector<8x256xf32>
    %146 = arith.addf %144, %145 : vector<8x256xf32>
    %cst_104 = arith.constant 0.000000e+00 : f32
    %147 = vector.broadcast %cst_104 : f32 to vector<8x256xf32>
    %148 = arith.maximumf %146, %147 : vector<8x256xf32>
    %c14_105 = arith.constant 14 : index
    %c0_106 = arith.constant 0 : index
    %c0_107 = arith.constant 0 : index
    %149 = vector.load %arg9[%c14_105, %c0_106, %c0_107] : memref<16x8x256xf32, #tpu.memory_space<vmem>>, vector<1x8x256xf32>
    %150 = vector.shape_cast %149 : vector<1x8x256xf32> to vector<8x256xf32>
    %151 = vector.shape_cast %148 : vector<8x256xf32> to vector<1x8x256xf32>
    tpu.vector_store %arg9[%c14_105, %c0_106, %c0_107], %151 {strides = array<i32>} : memref<16x8x256xf32, #tpu.memory_space<vmem>>, vector<1x8x256xf32>,
    %c15 = arith.constant 15 : index
    %c0_108 = arith.constant 0 : index
    %c0_109 = arith.constant 0 : index
    %152 = vector.load %arg1[%c15, %c0_108, %c0_109] : memref<16x9x256xf32, #tpu.memory_space<vmem>>, vector<1x9x256xf32>
    %153 = vector.shape_cast %152 : vector<1x9x256xf32> to vector<9x256xf32>
    %cst_110 = arith.constant dense<0.000000e+00> : vector<8x256xf32>
    %154 = tpu.matmul %0, %153, %cst_110 {dimension_numbers = #tpu.dot_dimension_numbers<[1], [0], [0], [1], [0, 0, 1, 1], [], []>} : vector<8x9xf32>, vector<9x256xf32>, vector<8x256xf32> -> vector<8x256xf32>
    %155 = vector.broadcast %1 : vector<8x1xf32> to vector<8x256xf32>
    %156 = arith.addf %154, %155 : vector<8x256xf32>
    %cst_111 = arith.constant 0.000000e+00 : f32
    %157 = vector.broadcast %cst_111 : f32 to vector<8x256xf32>
    %158 = arith.maximumf %156, %157 : vector<8x256xf32>
    %c15_112 = arith.constant 15 : index
    %c0_113 = arith.constant 0 : index
    %c0_114 = arith.constant 0 : index
    %159 = vector.load %arg9[%c15_112, %c0_113, %c0_114] : memref<16x8x256xf32, #tpu.memory_space<vmem>>, vector<1x8x256xf32>
    %160 = vector.shape_cast %159 : vector<1x8x256xf32> to vector<8x256xf32>
    %161 = vector.shape_cast %158 : vector<8x256xf32> to vector<1x8x256xf32>
    tpu.vector_store %arg9[%c15_112, %c0_113, %c0_114], %161 {strides = array<i32>} : memref<16x8x256xf32, #tpu.memory_space<vmem>>, vector<1x8x256xf32>,
    %c0_115 = arith.constant 0 : index
    %c0_116 = arith.constant 0 : index
    %162 = vector.load %arg4[%c0_115, %c0_116] : memref<16x72xf32, #tpu.memory_space<vmem>>, vector<16x72xf32>
    %c0_117 = arith.constant 0 : index
    %c0_118 = arith.constant 0 : index
    %163 = vector.load %arg5[%c0_117, %c0_118] : memref<16x1xf32, #tpu.memory_space<vmem>>, vector<16x1xf32>
    %c15_119 = arith.constant 15 : index
    %c0_120 = arith.constant 0 : index
    %c0_121 = arith.constant 0 : index
    %164 = vector.load %arg9[%c15_119, %c0_120, %c0_121] : memref<16x8x256xf32, #tpu.memory_space<vmem>>, vector<1x8x256xf32>
    %165 = vector.shape_cast %164 : vector<1x8x256xf32> to vector<8x256xf32>
    %cst_122 = arith.constant 0.000000e+00 : f32
    %166 = vector.broadcast %cst_122 : f32 to vector<8x9xf32>
    %167 = vector.extract_strided_slice %165 {offsets = [0, 0], sizes = [8, 247], strides = [1, 1]} : vector<8x256xf32> to vector<8x247xf32>
    %168 = tpu.concatenate %166, %167 in 1 : vector<8x9xf32>, vector<8x247xf32> -> vector<8x256xf32>
    %169 = tpu.iota {dimensions = array<i32: 1>} : vector<8x256xi32>
    %c63_i32 = arith.constant 63 : i32
    %170 = vector.broadcast %c63_i32 : i32 to vector<8x256xi32>
    %171 = arith.andi %169, %170 : vector<8x256xi32>
    %c8_i32 = arith.constant 8 : i32
    %172 = vector.broadcast %c8_i32 : i32 to vector<8x256xi32>
    %173 = arith.cmpi slt, %171, %172 : vector<8x256xi32>
    %c7_i32 = arith.constant 7 : i32
    %174 = vector.broadcast %c7_i32 : i32 to vector<8x256xi32>
    %175 = arith.andi %169, %174 : vector<8x256xi32>
    %c0_i32 = arith.constant 0 : i32
    %176 = vector.broadcast %c0_i32 : i32 to vector<8x256xi32>
    %177 = arith.cmpi eq, %175, %176 : vector<8x256xi32>
    %178 = arith.ori %173, %177 : vector<8x256xi1>
    %cst_123 = arith.constant 0.000000e+00 : f32
    %179 = vector.broadcast %cst_123 : f32 to vector<8x256xf32>
    %180 = arith.select %178, %179, %168 : vector<8x256xi1>, vector<8x256xf32>
    %c12_124 = arith.constant 12 : index
    %c0_125 = arith.constant 0 : index
    %c0_126 = arith.constant 0 : index
    %181 = vector.load %arg9[%c12_124, %c0_125, %c0_126] : memref<16x8x256xf32, #tpu.memory_space<vmem>>, vector<1x8x256xf32>
    %182 = vector.shape_cast %181 : vector<1x8x256xf32> to vector<8x256xf32>
    %cst_127 = arith.constant 0.000000e+00 : f32
    %183 = vector.broadcast %cst_127 : f32 to vector<8x8xf32>
    %184 = vector.extract_strided_slice %182 {offsets = [0, 0], sizes = [8, 248], strides = [1, 1]} : vector<8x256xf32> to vector<8x248xf32>
    %185 = tpu.concatenate %183, %184 in 1 : vector<8x8xf32>, vector<8x248xf32> -> vector<8x256xf32>
    %186 = tpu.iota {dimensions = array<i32: 1>} : vector<8x256xi32>
    %c63_i32_128 = arith.constant 63 : i32
    %187 = vector.broadcast %c63_i32_128 : i32 to vector<8x256xi32>
    %188 = arith.andi %186, %187 : vector<8x256xi32>
    %c8_i32_129 = arith.constant 8 : i32
    %189 = vector.broadcast %c8_i32_129 : i32 to vector<8x256xi32>
    %190 = arith.cmpi slt, %188, %189 : vector<8x256xi32>
    %cst_130 = arith.constant 0.000000e+00 : f32
    %191 = vector.broadcast %cst_130 : f32 to vector<8x256xf32>
    %192 = arith.select %190, %191, %185 : vector<8x256xi1>, vector<8x256xf32>
    %c13_131 = arith.constant 13 : index
    %c0_132 = arith.constant 0 : index
    %c0_133 = arith.constant 0 : index
    %193 = vector.load %arg9[%c13_131, %c0_132, %c0_133] : memref<16x8x256xf32, #tpu.memory_space<vmem>>, vector<1x8x256xf32>
    %194 = vector.shape_cast %193 : vector<1x8x256xf32> to vector<8x256xf32>
    %cst_134 = arith.constant 0.000000e+00 : f32
    %195 = vector.broadcast %cst_134 : f32 to vector<8x8xf32>
    %196 = vector.extract_strided_slice %194 {offsets = [0, 0], sizes = [8, 248], strides = [1, 1]} : vector<8x256xf32> to vector<8x248xf32>
    %197 = tpu.concatenate %195, %196 in 1 : vector<8x8xf32>, vector<8x248xf32> -> vector<8x256xf32>
    %198 = tpu.iota {dimensions = array<i32: 1>} : vector<8x256xi32>
    %c63_i32_135 = arith.constant 63 : i32
    %199 = vector.broadcast %c63_i32_135 : i32 to vector<8x256xi32>
    %200 = arith.andi %198, %199 : vector<8x256xi32>
    %c8_i32_136 = arith.constant 8 : i32
    %201 = vector.broadcast %c8_i32_136 : i32 to vector<8x256xi32>
    %202 = arith.cmpi slt, %200, %201 : vector<8x256xi32>
    %cst_137 = arith.constant 0.000000e+00 : f32
    %203 = vector.broadcast %cst_137 : f32 to vector<8x256xf32>
    %204 = arith.select %202, %203, %197 : vector<8x256xi1>, vector<8x256xf32>
    %c3_138 = arith.constant 3 : index
    %c0_139 = arith.constant 0 : index
    %c0_140 = arith.constant 0 : index
    %205 = vector.load %arg9[%c3_138, %c0_139, %c0_140] : memref<16x8x256xf32, #tpu.memory_space<vmem>>, vector<1x8x256xf32>
    %206 = vector.shape_cast %205 : vector<1x8x256xf32> to vector<8x256xf32>
    %cst_141 = arith.constant 0.000000e+00 : f32
    %207 = vector.broadcast %cst_141 : f32 to vector<8x1xf32>
    %208 = vector.extract_strided_slice %206 {offsets = [0, 0], sizes = [8, 255], strides = [1, 1]} : vector<8x256xf32> to vector<8x255xf32>
    %209 = tpu.concatenate %207, %208 in 1 : vector<8x1xf32>, vector<8x255xf32> -> vector<8x256xf32>
    %210 = tpu.iota {dimensions = array<i32: 1>} : vector<8x256xi32>
    %c7_i32_142 = arith.constant 7 : i32
    %211 = vector.broadcast %c7_i32_142 : i32 to vector<8x256xi32>
    %212 = arith.andi %210, %211 : vector<8x256xi32>
    %c0_i32_143 = arith.constant 0 : i32
    %213 = vector.broadcast %c0_i32_143 : i32 to vector<8x256xi32>
    %214 = arith.cmpi eq, %212, %213 : vector<8x256xi32>
    %cst_144 = arith.constant 0.000000e+00 : f32
    %215 = vector.broadcast %cst_144 : f32 to vector<8x256xf32>
    %216 = arith.select %214, %215, %209 : vector<8x256xi1>, vector<8x256xf32>
    %c0_145 = arith.constant 0 : index
    %c0_146 = arith.constant 0 : index
    %c0_147 = arith.constant 0 : index
    %217 = vector.load %arg9[%c0_145, %c0_146, %c0_147] : memref<16x8x256xf32, #tpu.memory_space<vmem>>, vector<1x8x256xf32>
    %218 = vector.shape_cast %217 : vector<1x8x256xf32> to vector<8x256xf32>
    %c1_148 = arith.constant 1 : index
    %c0_149 = arith.constant 0 : index
    %c0_150 = arith.constant 0 : index
    %219 = vector.load %arg9[%c1_148, %c0_149, %c0_150] : memref<16x8x256xf32, #tpu.memory_space<vmem>>, vector<1x8x256xf32>
    %220 = vector.shape_cast %219 : vector<1x8x256xf32> to vector<8x256xf32>
    %c7_151 = arith.constant 7 : index
    %c0_152 = arith.constant 0 : index
    %c0_153 = arith.constant 0 : index
    %221 = vector.load %arg9[%c7_151, %c0_152, %c0_153] : memref<16x8x256xf32, #tpu.memory_space<vmem>>, vector<1x8x256xf32>
    %222 = vector.shape_cast %221 : vector<1x8x256xf32> to vector<8x256xf32>
    %cst_154 = arith.constant 0.000000e+00 : f32
    %223 = vector.broadcast %cst_154 : f32 to vector<8x1xf32>
    %224 = vector.extract_strided_slice %222 {offsets = [0, 0], sizes = [8, 255], strides = [1, 1]} : vector<8x256xf32> to vector<8x255xf32>
    %225 = tpu.concatenate %223, %224 in 1 : vector<8x1xf32>, vector<8x255xf32> -> vector<8x256xf32>
    %226 = tpu.iota {dimensions = array<i32: 1>} : vector<8x256xi32>
    %c7_i32_155 = arith.constant 7 : i32
    %227 = vector.broadcast %c7_i32_155 : i32 to vector<8x256xi32>
    %228 = arith.andi %226, %227 : vector<8x256xi32>
    %c0_i32_156 = arith.constant 0 : i32
    %229 = vector.broadcast %c0_i32_156 : i32 to vector<8x256xi32>
    %230 = arith.cmpi eq, %228, %229 : vector<8x256xi32>
    %cst_157 = arith.constant 0.000000e+00 : f32
    %231 = vector.broadcast %cst_157 : f32 to vector<8x256xf32>
    %232 = arith.select %230, %231, %225 : vector<8x256xi1>, vector<8x256xf32>
    %c4_158 = arith.constant 4 : index
    %c0_159 = arith.constant 0 : index
    %c0_160 = arith.constant 0 : index
    %233 = vector.load %arg9[%c4_158, %c0_159, %c0_160] : memref<16x8x256xf32, #tpu.memory_space<vmem>>, vector<1x8x256xf32>
    %234 = vector.shape_cast %233 : vector<1x8x256xf32> to vector<8x256xf32>
    %c5_161 = arith.constant 5 : index
    %c0_162 = arith.constant 0 : index
    %c0_163 = arith.constant 0 : index
    %235 = vector.load %arg9[%c5_161, %c0_162, %c0_163] : memref<16x8x256xf32, #tpu.memory_space<vmem>>, vector<1x8x256xf32>
    %236 = vector.shape_cast %235 : vector<1x8x256xf32> to vector<8x256xf32>
    %237 = tpu.concatenate %180, %192, %204, %216, %218, %220, %232, %234, %236 in 0 : vector<8x256xf32>, vector<8x256xf32>, vector<8x256xf32>, vector<8x256xf32>, vector<8x256xf32>, vector<8x256xf32>, vector<8x256xf32>, vector<8x256xf32>, vector<8x256xf32> -> vector<72x256xf32>
    %cst_164 = arith.constant dense<0.000000e+00> : vector<16x256xf32>
    %238 = tpu.matmul %162, %237, %cst_164 {dimension_numbers = #tpu.dot_dimension_numbers<[1], [0], [0], [1], [0, 0, 1, 1], [], []>} : vector<16x72xf32>, vector<72x256xf32>, vector<16x256xf32> -> vector<16x256xf32>
    %239 = vector.broadcast %163 : vector<16x1xf32> to vector<16x256xf32>
    %240 = arith.addf %238, %239 : vector<16x256xf32>
    %cst_165 = arith.constant 0.000000e+00 : f32
    %241 = vector.broadcast %cst_165 : f32 to vector<16x256xf32>
    %242 = arith.maximumf %240, %241 : vector<16x256xf32>
    %c13_166 = arith.constant 13 : index
    %c0_167 = arith.constant 0 : index
    %c0_168 = arith.constant 0 : index
    %243 = vector.load %arg9[%c13_166, %c0_167, %c0_168] : memref<16x8x256xf32, #tpu.memory_space<vmem>>, vector<1x8x256xf32>
    %244 = vector.shape_cast %243 : vector<1x8x256xf32> to vector<8x256xf32>
    %cst_169 = arith.constant 0.000000e+00 : f32
    %245 = vector.broadcast %cst_169 : f32 to vector<8x8xf32>
    %246 = vector.extract_strided_slice %244 {offsets = [0, 0], sizes = [8, 248], strides = [1, 1]} : vector<8x256xf32> to vector<8x248xf32>
    %247 = tpu.concatenate %245, %246 in 1 : vector<8x8xf32>, vector<8x248xf32> -> vector<8x256xf32>
    %248 = tpu.iota {dimensions = array<i32: 1>} : vector<8x256xi32>
    %c63_i32_170 = arith.constant 63 : i32
    %249 = vector.broadcast %c63_i32_170 : i32 to vector<8x256xi32>
    %250 = arith.andi %248, %249 : vector<8x256xi32>
    %c8_i32_171 = arith.constant 8 : i32
    %251 = vector.broadcast %c8_i32_171 : i32 to vector<8x256xi32>
    %252 = arith.cmpi slt, %250, %251 : vector<8x256xi32>
    %cst_172 = arith.constant 0.000000e+00 : f32
    %253 = vector.broadcast %cst_172 : f32 to vector<8x256xf32>
    %254 = arith.select %252, %253, %247 : vector<8x256xi1>, vector<8x256xf32>
    %c14_173 = arith.constant 14 : index
    %c0_174 = arith.constant 0 : index
    %c0_175 = arith.constant 0 : index
    %255 = vector.load %arg9[%c14_173, %c0_174, %c0_175] : memref<16x8x256xf32, #tpu.memory_space<vmem>>, vector<1x8x256xf32>
    %256 = vector.shape_cast %255 : vector<1x8x256xf32> to vector<8x256xf32>
    %cst_176 = arith.constant 0.000000e+00 : f32
    %257 = vector.broadcast %cst_176 : f32 to vector<8x8xf32>
    %258 = vector.extract_strided_slice %256 {offsets = [0, 0], sizes = [8, 248], strides = [1, 1]} : vector<8x256xf32> to vector<8x248xf32>
    %259 = tpu.concatenate %257, %258 in 1 : vector<8x8xf32>, vector<8x248xf32> -> vector<8x256xf32>
    %260 = tpu.iota {dimensions = array<i32: 1>} : vector<8x256xi32>
    %c63_i32_177 = arith.constant 63 : i32
    %261 = vector.broadcast %c63_i32_177 : i32 to vector<8x256xi32>
    %262 = arith.andi %260, %261 : vector<8x256xi32>
    %c8_i32_178 = arith.constant 8 : i32
    %263 = vector.broadcast %c8_i32_178 : i32 to vector<8x256xi32>
    %264 = arith.cmpi slt, %262, %263 : vector<8x256xi32>
    %cst_179 = arith.constant 0.000000e+00 : f32
    %265 = vector.broadcast %cst_179 : f32 to vector<8x256xf32>
    %266 = arith.select %264, %265, %259 : vector<8x256xi1>, vector<8x256xf32>
    %c15_180 = arith.constant 15 : index
    %c0_181 = arith.constant 0 : index
    %c0_182 = arith.constant 0 : index
    %267 = vector.load %arg9[%c15_180, %c0_181, %c0_182] : memref<16x8x256xf32, #tpu.memory_space<vmem>>, vector<1x8x256xf32>
    %268 = vector.shape_cast %267 : vector<1x8x256xf32> to vector<8x256xf32>
    %cst_183 = arith.constant 0.000000e+00 : f32
    %269 = vector.broadcast %cst_183 : f32 to vector<8x8xf32>
    %270 = vector.extract_strided_slice %268 {offsets = [0, 0], sizes = [8, 248], strides = [1, 1]} : vector<8x256xf32> to vector<8x248xf32>
    %271 = tpu.concatenate %269, %270 in 1 : vector<8x8xf32>, vector<8x248xf32> -> vector<8x256xf32>
    %272 = tpu.iota {dimensions = array<i32: 1>} : vector<8x256xi32>
    %c63_i32_184 = arith.constant 63 : i32
    %273 = vector.broadcast %c63_i32_184 : i32 to vector<8x256xi32>
    %274 = arith.andi %272, %273 : vector<8x256xi32>
    %c8_i32_185 = arith.constant 8 : i32
    %275 = vector.broadcast %c8_i32_185 : i32 to vector<8x256xi32>
    %276 = arith.cmpi slt, %274, %275 : vector<8x256xi32>
    %cst_186 = arith.constant 0.000000e+00 : f32
    %277 = vector.broadcast %cst_186 : f32 to vector<8x256xf32>
    %278 = arith.select %276, %277, %271 : vector<8x256xi1>, vector<8x256xf32>
    %c1_187 = arith.constant 1 : index
    %c0_188 = arith.constant 0 : index
    %c0_189 = arith.constant 0 : index
    %279 = vector.load %arg9[%c1_187, %c0_188, %c0_189] : memref<16x8x256xf32, #tpu.memory_space<vmem>>, vector<1x8x256xf32>
    %280 = vector.shape_cast %279 : vector<1x8x256xf32> to vector<8x256xf32>
    %c2_190 = arith.constant 2 : index
    %c0_191 = arith.constant 0 : index
    %c0_192 = arith.constant 0 : index
    %281 = vector.load %arg9[%c2_190, %c0_191, %c0_192] : memref<16x8x256xf32, #tpu.memory_space<vmem>>, vector<1x8x256xf32>
    %282 = vector.shape_cast %281 : vector<1x8x256xf32> to vector<8x256xf32>
    %c3_193 = arith.constant 3 : index
    %c0_194 = arith.constant 0 : index
    %c0_195 = arith.constant 0 : index
    %283 = vector.load %arg9[%c3_193, %c0_194, %c0_195] : memref<16x8x256xf32, #tpu.memory_space<vmem>>, vector<1x8x256xf32>
    %284 = vector.shape_cast %283 : vector<1x8x256xf32> to vector<8x256xf32>
    %c5_196 = arith.constant 5 : index
    %c0_197 = arith.constant 0 : index
    %c0_198 = arith.constant 0 : index
    %285 = vector.load %arg9[%c5_196, %c0_197, %c0_198] : memref<16x8x256xf32, #tpu.memory_space<vmem>>, vector<1x8x256xf32>
    %286 = vector.shape_cast %285 : vector<1x8x256xf32> to vector<8x256xf32>
    %c6_199 = arith.constant 6 : index
    %c0_200 = arith.constant 0 : index
    %c0_201 = arith.constant 0 : index
    %287 = vector.load %arg9[%c6_199, %c0_200, %c0_201] : memref<16x8x256xf32, #tpu.memory_space<vmem>>, vector<1x8x256xf32>
    %288 = vector.shape_cast %287 : vector<1x8x256xf32> to vector<8x256xf32>
    %c7_202 = arith.constant 7 : index
    %c0_203 = arith.constant 0 : index
    %c0_204 = arith.constant 0 : index
    %289 = vector.load %arg9[%c7_202, %c0_203, %c0_204] : memref<16x8x256xf32, #tpu.memory_space<vmem>>, vector<1x8x256xf32>
    %290 = vector.shape_cast %289 : vector<1x8x256xf32> to vector<8x256xf32>
    %291 = tpu.concatenate %254, %266, %278, %280, %282, %284, %286, %288, %290 in 0 : vector<8x256xf32>, vector<8x256xf32>, vector<8x256xf32>, vector<8x256xf32>, vector<8x256xf32>, vector<8x256xf32>, vector<8x256xf32>, vector<8x256xf32>, vector<8x256xf32> -> vector<72x256xf32>
    %cst_205 = arith.constant dense<0.000000e+00> : vector<16x256xf32>
    %292 = tpu.matmul %162, %291, %cst_205 {dimension_numbers = #tpu.dot_dimension_numbers<[1], [0], [0], [1], [0, 0, 1, 1], [], []>} : vector<16x72xf32>, vector<72x256xf32>, vector<16x256xf32> -> vector<16x256xf32>
    %293 = vector.broadcast %163 : vector<16x1xf32> to vector<16x256xf32>
    %294 = arith.addf %292, %293 : vector<16x256xf32>
    %cst_206 = arith.constant 0.000000e+00 : f32
    %295 = vector.broadcast %cst_206 : f32 to vector<16x256xf32>
    %296 = arith.maximumf %294, %295 : vector<16x256xf32>
    %c7_207 = arith.constant 7 : index
    %c0_208 = arith.constant 0 : index
    %c0_209 = arith.constant 0 : index
    %297 = vector.load %arg9[%c7_207, %c0_208, %c0_209] : memref<16x8x256xf32, #tpu.memory_space<vmem>>, vector<1x8x256xf32>
    %298 = vector.shape_cast %297 : vector<1x8x256xf32> to vector<8x256xf32>
    %cst_210 = arith.constant 0.000000e+00 : f32
    %299 = vector.broadcast %cst_210 : f32 to vector<8x1xf32>
    %300 = vector.extract_strided_slice %298 {offsets = [0, 0], sizes = [8, 255], strides = [1, 1]} : vector<8x256xf32> to vector<8x255xf32>
    %301 = tpu.concatenate %299, %300 in 1 : vector<8x1xf32>, vector<8x255xf32> -> vector<8x256xf32>
    %302 = tpu.iota {dimensions = array<i32: 1>} : vector<8x256xi32>
    %c7_i32_211 = arith.constant 7 : i32
    %303 = vector.broadcast %c7_i32_211 : i32 to vector<8x256xi32>
    %304 = arith.andi %302, %303 : vector<8x256xi32>
    %c0_i32_212 = arith.constant 0 : i32
    %305 = vector.broadcast %c0_i32_212 : i32 to vector<8x256xi32>
    %306 = arith.cmpi eq, %304, %305 : vector<8x256xi32>
    %cst_213 = arith.constant 0.000000e+00 : f32
    %307 = vector.broadcast %cst_213 : f32 to vector<8x256xf32>
    %308 = arith.select %306, %307, %301 : vector<8x256xi1>, vector<8x256xf32>
    %c4_214 = arith.constant 4 : index
    %c0_215 = arith.constant 0 : index
    %c0_216 = arith.constant 0 : index
    %309 = vector.load %arg9[%c4_214, %c0_215, %c0_216] : memref<16x8x256xf32, #tpu.memory_space<vmem>>, vector<1x8x256xf32>
    %310 = vector.shape_cast %309 : vector<1x8x256xf32> to vector<8x256xf32>
    %c5_217 = arith.constant 5 : index
    %c0_218 = arith.constant 0 : index
    %c0_219 = arith.constant 0 : index
    %311 = vector.load %arg9[%c5_217, %c0_218, %c0_219] : memref<16x8x256xf32, #tpu.memory_space<vmem>>, vector<1x8x256xf32>
    %312 = vector.shape_cast %311 : vector<1x8x256xf32> to vector<8x256xf32>
    %c11_220 = arith.constant 11 : index
    %c0_221 = arith.constant 0 : index
    %c0_222 = arith.constant 0 : index
    %313 = vector.load %arg9[%c11_220, %c0_221, %c0_222] : memref<16x8x256xf32, #tpu.memory_space<vmem>>, vector<1x8x256xf32>
    %314 = vector.shape_cast %313 : vector<1x8x256xf32> to vector<8x256xf32>
    %cst_223 = arith.constant 0.000000e+00 : f32
    %315 = vector.broadcast %cst_223 : f32 to vector<8x1xf32>
    %316 = vector.extract_strided_slice %314 {offsets = [0, 0], sizes = [8, 255], strides = [1, 1]} : vector<8x256xf32> to vector<8x255xf32>
    %317 = tpu.concatenate %315, %316 in 1 : vector<8x1xf32>, vector<8x255xf32> -> vector<8x256xf32>
    %318 = tpu.iota {dimensions = array<i32: 1>} : vector<8x256xi32>
    %c7_i32_224 = arith.constant 7 : i32
    %319 = vector.broadcast %c7_i32_224 : i32 to vector<8x256xi32>
    %320 = arith.andi %318, %319 : vector<8x256xi32>
    %c0_i32_225 = arith.constant 0 : i32
    %321 = vector.broadcast %c0_i32_225 : i32 to vector<8x256xi32>
    %322 = arith.cmpi eq, %320, %321 : vector<8x256xi32>
    %cst_226 = arith.constant 0.000000e+00 : f32
    %323 = vector.broadcast %cst_226 : f32 to vector<8x256xf32>
    %324 = arith.select %322, %323, %317 : vector<8x256xi1>, vector<8x256xf32>
    %c8_227 = arith.constant 8 : index
    %c0_228 = arith.constant 0 : index
    %c0_229 = arith.constant 0 : index
    %325 = vector.load %arg9[%c8_227, %c0_228, %c0_229] : memref<16x8x256xf32, #tpu.memory_space<vmem>>, vector<1x8x256xf32>
    %326 = vector.shape_cast %325 : vector<1x8x256xf32> to vector<8x256xf32>
    %c9_230 = arith.constant 9 : index
    %c0_231 = arith.constant 0 : index
    %c0_232 = arith.constant 0 : index
    %327 = vector.load %arg9[%c9_230, %c0_231, %c0_232] : memref<16x8x256xf32, #tpu.memory_space<vmem>>, vector<1x8x256xf32>
    %328 = vector.shape_cast %327 : vector<1x8x256xf32> to vector<8x256xf32>
    %c15_233 = arith.constant 15 : index
    %c0_234 = arith.constant 0 : index
    %c0_235 = arith.constant 0 : index
    %329 = vector.load %arg9[%c15_233, %c0_234, %c0_235] : memref<16x8x256xf32, #tpu.memory_space<vmem>>, vector<1x8x256xf32>
    %330 = vector.shape_cast %329 : vector<1x8x256xf32> to vector<8x256xf32>
    %cst_236 = arith.constant 0.000000e+00 : f32
    %331 = vector.broadcast %cst_236 : f32 to vector<8x1xf32>
    %332 = vector.extract_strided_slice %330 {offsets = [0, 0], sizes = [8, 255], strides = [1, 1]} : vector<8x256xf32> to vector<8x255xf32>
    %333 = tpu.concatenate %331, %332 in 1 : vector<8x1xf32>, vector<8x255xf32> -> vector<8x256xf32>
    %334 = tpu.iota {dimensions = array<i32: 1>} : vector<8x256xi32>
    %c7_i32_237 = arith.constant 7 : i32
    %335 = vector.broadcast %c7_i32_237 : i32 to vector<8x256xi32>
    %336 = arith.andi %334, %335 : vector<8x256xi32>
    %c0_i32_238 = arith.constant 0 : i32
    %337 = vector.broadcast %c0_i32_238 : i32 to vector<8x256xi32>
    %338 = arith.cmpi eq, %336, %337 : vector<8x256xi32>
    %cst_239 = arith.constant 0.000000e+00 : f32
    %339 = vector.broadcast %cst_239 : f32 to vector<8x256xf32>
    %340 = arith.select %338, %339, %333 : vector<8x256xi1>, vector<8x256xf32>
    %c12_240 = arith.constant 12 : index
    %c0_241 = arith.constant 0 : index
    %c0_242 = arith.constant 0 : index
    %341 = vector.load %arg9[%c12_240, %c0_241, %c0_242] : memref<16x8x256xf32, #tpu.memory_space<vmem>>, vector<1x8x256xf32>
    %342 = vector.shape_cast %341 : vector<1x8x256xf32> to vector<8x256xf32>
    %c13_243 = arith.constant 13 : index
    %c0_244 = arith.constant 0 : index
    %c0_245 = arith.constant 0 : index
    %343 = vector.load %arg9[%c13_243, %c0_244, %c0_245] : memref<16x8x256xf32, #tpu.memory_space<vmem>>, vector<1x8x256xf32>
    %344 = vector.shape_cast %343 : vector<1x8x256xf32> to vector<8x256xf32>
    %345 = tpu.concatenate %308, %310, %312, %324, %326, %328, %340, %342, %344 in 0 : vector<8x256xf32>, vector<8x256xf32>, vector<8x256xf32>, vector<8x256xf32>, vector<8x256xf32>, vector<8x256xf32>, vector<8x256xf32>, vector<8x256xf32>, vector<8x256xf32> -> vector<72x256xf32>
    %cst_246 = arith.constant dense<0.000000e+00> : vector<16x256xf32>
    %346 = tpu.matmul %162, %345, %cst_246 {dimension_numbers = #tpu.dot_dimension_numbers<[1], [0], [0], [1], [0, 0, 1, 1], [], []>} : vector<16x72xf32>, vector<72x256xf32>, vector<16x256xf32> -> vector<16x256xf32>
    %347 = vector.broadcast %163 : vector<16x1xf32> to vector<16x256xf32>
    %348 = arith.addf %346, %347 : vector<16x256xf32>
    %cst_247 = arith.constant 0.000000e+00 : f32
    %349 = vector.broadcast %cst_247 : f32 to vector<16x256xf32>
    %350 = arith.maximumf %348, %349 : vector<16x256xf32>
    %c5_248 = arith.constant 5 : index
    %c0_249 = arith.constant 0 : index
    %c0_250 = arith.constant 0 : index
    %351 = vector.load %arg9[%c5_248, %c0_249, %c0_250] : memref<16x8x256xf32, #tpu.memory_space<vmem>>, vector<1x8x256xf32>
    %352 = vector.shape_cast %351 : vector<1x8x256xf32> to vector<8x256xf32>
    %c6_251 = arith.constant 6 : index
    %c0_252 = arith.constant 0 : index
    %c0_253 = arith.constant 0 : index
    %353 = vector.load %arg9[%c6_251, %c0_252, %c0_253] : memref<16x8x256xf32, #tpu.memory_space<vmem>>, vector<1x8x256xf32>
    %354 = vector.shape_cast %353 : vector<1x8x256xf32> to vector<8x256xf32>
    %c7_254 = arith.constant 7 : index
    %c0_255 = arith.constant 0 : index
    %c0_256 = arith.constant 0 : index
    %355 = vector.load %arg9[%c7_254, %c0_255, %c0_256] : memref<16x8x256xf32, #tpu.memory_space<vmem>>, vector<1x8x256xf32>
    %356 = vector.shape_cast %355 : vector<1x8x256xf32> to vector<8x256xf32>
    %c9_257 = arith.constant 9 : index
    %c0_258 = arith.constant 0 : index
    %c0_259 = arith.constant 0 : index
    %357 = vector.load %arg9[%c9_257, %c0_258, %c0_259] : memref<16x8x256xf32, #tpu.memory_space<vmem>>, vector<1x8x256xf32>
    %358 = vector.shape_cast %357 : vector<1x8x256xf32> to vector<8x256xf32>
    %c10_260 = arith.constant 10 : index
    %c0_261 = arith.constant 0 : index
    %c0_262 = arith.constant 0 : index
    %359 = vector.load %arg9[%c10_260, %c0_261, %c0_262] : memref<16x8x256xf32, #tpu.memory_space<vmem>>, vector<1x8x256xf32>
    %360 = vector.shape_cast %359 : vector<1x8x256xf32> to vector<8x256xf32>
    %c11_263 = arith.constant 11 : index
    %c0_264 = arith.constant 0 : index
    %c0_265 = arith.constant 0 : index
    %361 = vector.load %arg9[%c11_263, %c0_264, %c0_265] : memref<16x8x256xf32, #tpu.memory_space<vmem>>, vector<1x8x256xf32>
    %362 = vector.shape_cast %361 : vector<1x8x256xf32> to vector<8x256xf32>
    %c13_266 = arith.constant 13 : index
    %c0_267 = arith.constant 0 : index
    %c0_268 = arith.constant 0 : index
    %363 = vector.load %arg9[%c13_266, %c0_267, %c0_268] : memref<16x8x256xf32, #tpu.memory_space<vmem>>, vector<1x8x256xf32>
    %364 = vector.shape_cast %363 : vector<1x8x256xf32> to vector<8x256xf32>
    %c14_269 = arith.constant 14 : index
    %c0_270 = arith.constant 0 : index
    %c0_271 = arith.constant 0 : index
    %365 = vector.load %arg9[%c14_269, %c0_270, %c0_271] : memref<16x8x256xf32, #tpu.memory_space<vmem>>, vector<1x8x256xf32>
    %366 = vector.shape_cast %365 : vector<1x8x256xf32> to vector<8x256xf32>
    %c15_272 = arith.constant 15 : index
    %c0_273 = arith.constant 0 : index
    %c0_274 = arith.constant 0 : index
    %367 = vector.load %arg9[%c15_272, %c0_273, %c0_274] : memref<16x8x256xf32, #tpu.memory_space<vmem>>, vector<1x8x256xf32>
    %368 = vector.shape_cast %367 : vector<1x8x256xf32> to vector<8x256xf32>
    %369 = tpu.concatenate %352, %354, %356, %358, %360, %362, %364, %366, %368 in 0 : vector<8x256xf32>, vector<8x256xf32>, vector<8x256xf32>, vector<8x256xf32>, vector<8x256xf32>, vector<8x256xf32>, vector<8x256xf32>, vector<8x256xf32>, vector<8x256xf32> -> vector<72x256xf32>
    %cst_275 = arith.constant dense<0.000000e+00> : vector<16x256xf32>
    %370 = tpu.matmul %162, %369, %cst_275 {dimension_numbers = #tpu.dot_dimension_numbers<[1], [0], [0], [1], [0, 0, 1, 1], [], []>} : vector<16x72xf32>, vector<72x256xf32>, vector<16x256xf32> -> vector<16x256xf32>
    %371 = vector.broadcast %163 : vector<16x1xf32> to vector<16x256xf32>
    %372 = arith.addf %370, %371 : vector<16x256xf32>
    %cst_276 = arith.constant 0.000000e+00 : f32
    %373 = vector.broadcast %cst_276 : f32 to vector<16x256xf32>
    %374 = arith.maximumf %372, %373 : vector<16x256xf32>
    %cst_277 = arith.constant 0.000000e+00 : f32
    %375 = vector.broadcast %cst_277 : f32 to vector<16x9xf32>
    %376 = vector.extract_strided_slice %374 {offsets = [0, 0], sizes = [16, 247], strides = [1, 1]} : vector<16x256xf32> to vector<16x247xf32>
    %377 = tpu.concatenate %375, %376 in 1 : vector<16x9xf32>, vector<16x247xf32> -> vector<16x256xf32>
    %378 = tpu.iota {dimensions = array<i32: 1>} : vector<16x256xi32>
    %c63_i32_278 = arith.constant 63 : i32
    %379 = vector.broadcast %c63_i32_278 : i32 to vector<16x256xi32>
    %380 = arith.andi %378, %379 : vector<16x256xi32>
    %c8_i32_279 = arith.constant 8 : i32
    %381 = vector.broadcast %c8_i32_279 : i32 to vector<16x256xi32>
    %382 = arith.cmpi slt, %380, %381 : vector<16x256xi32>
    %c7_i32_280 = arith.constant 7 : i32
    %383 = vector.broadcast %c7_i32_280 : i32 to vector<16x256xi32>
    %384 = arith.andi %378, %383 : vector<16x256xi32>
    %c0_i32_281 = arith.constant 0 : i32
    %385 = vector.broadcast %c0_i32_281 : i32 to vector<16x256xi32>
    %386 = arith.cmpi eq, %384, %385 : vector<16x256xi32>
    %387 = arith.ori %382, %386 : vector<16x256xi1>
    %cst_282 = arith.constant 0.000000e+00 : f32
    %388 = vector.broadcast %cst_282 : f32 to vector<16x256xf32>
    %389 = arith.select %387, %388, %377 : vector<16x256xi1>, vector<16x256xf32>
    %cst_283 = arith.constant 0.000000e+00 : f32
    %390 = vector.broadcast %cst_283 : f32 to vector<16x8xf32>
    %391 = vector.extract_strided_slice %350 {offsets = [0, 0], sizes = [16, 248], strides = [1, 1]} : vector<16x256xf32> to vector<16x248xf32>
    %392 = tpu.concatenate %390, %391 in 1 : vector<16x8xf32>, vector<16x248xf32> -> vector<16x256xf32>
    %393 = tpu.iota {dimensions = array<i32: 1>} : vector<16x256xi32>
    %c63_i32_284 = arith.constant 63 : i32
    %394 = vector.broadcast %c63_i32_284 : i32 to vector<16x256xi32>
    %395 = arith.andi %393, %394 : vector<16x256xi32>
    %c8_i32_285 = arith.constant 8 : i32
    %396 = vector.broadcast %c8_i32_285 : i32 to vector<16x256xi32>
    %397 = arith.cmpi slt, %395, %396 : vector<16x256xi32>
    %cst_286 = arith.constant 0.000000e+00 : f32
    %398 = vector.broadcast %cst_286 : f32 to vector<16x256xf32>
    %399 = arith.select %397, %398, %392 : vector<16x256xi1>, vector<16x256xf32>
    %cst_287 = arith.constant 0.000000e+00 : f32
    %400 = vector.broadcast %cst_287 : f32 to vector<16x8xf32>
    %401 = vector.extract_strided_slice %374 {offsets = [0, 0], sizes = [16, 248], strides = [1, 1]} : vector<16x256xf32> to vector<16x248xf32>
    %402 = tpu.concatenate %400, %401 in 1 : vector<16x8xf32>, vector<16x248xf32> -> vector<16x256xf32>
    %403 = tpu.iota {dimensions = array<i32: 1>} : vector<16x256xi32>
    %c63_i32_288 = arith.constant 63 : i32
    %404 = vector.broadcast %c63_i32_288 : i32 to vector<16x256xi32>
    %405 = arith.andi %403, %404 : vector<16x256xi32>
    %c8_i32_289 = arith.constant 8 : i32
    %406 = vector.broadcast %c8_i32_289 : i32 to vector<16x256xi32>
    %407 = arith.cmpi slt, %405, %406 : vector<16x256xi32>
    %cst_290 = arith.constant 0.000000e+00 : f32
    %408 = vector.broadcast %cst_290 : f32 to vector<16x256xf32>
    %409 = arith.select %407, %408, %402 : vector<16x256xi1>, vector<16x256xf32>
    %cst_291 = arith.constant 0.000000e+00 : f32
    %410 = vector.broadcast %cst_291 : f32 to vector<16x1xf32>
    %411 = vector.extract_strided_slice %296 {offsets = [0, 0], sizes = [16, 255], strides = [1, 1]} : vector<16x256xf32> to vector<16x255xf32>
    %412 = tpu.concatenate %410, %411 in 1 : vector<16x1xf32>, vector<16x255xf32> -> vector<16x256xf32>
    %413 = tpu.iota {dimensions = array<i32: 1>} : vector<16x256xi32>
    %c7_i32_292 = arith.constant 7 : i32
    %414 = vector.broadcast %c7_i32_292 : i32 to vector<16x256xi32>
    %415 = arith.andi %413, %414 : vector<16x256xi32>
    %c0_i32_293 = arith.constant 0 : i32
    %416 = vector.broadcast %c0_i32_293 : i32 to vector<16x256xi32>
    %417 = arith.cmpi eq, %415, %416 : vector<16x256xi32>
    %cst_294 = arith.constant 0.000000e+00 : f32
    %418 = vector.broadcast %cst_294 : f32 to vector<16x256xf32>
    %419 = arith.select %417, %418, %412 : vector<16x256xi1>, vector<16x256xf32>
    %cst_295 = arith.constant 0.000000e+00 : f32
    %420 = vector.broadcast %cst_295 : f32 to vector<16x1xf32>
    %421 = vector.extract_strided_slice %374 {offsets = [0, 0], sizes = [16, 255], strides = [1, 1]} : vector<16x256xf32> to vector<16x255xf32>
    %422 = tpu.concatenate %420, %421 in 1 : vector<16x1xf32>, vector<16x255xf32> -> vector<16x256xf32>
    %423 = tpu.iota {dimensions = array<i32: 1>} : vector<16x256xi32>
    %c7_i32_296 = arith.constant 7 : i32
    %424 = vector.broadcast %c7_i32_296 : i32 to vector<16x256xi32>
    %425 = arith.andi %423, %424 : vector<16x256xi32>
    %c0_i32_297 = arith.constant 0 : i32
    %426 = vector.broadcast %c0_i32_297 : i32 to vector<16x256xi32>
    %427 = arith.cmpi eq, %425, %426 : vector<16x256xi32>
    %cst_298 = arith.constant 0.000000e+00 : f32
    %428 = vector.broadcast %cst_298 : f32 to vector<16x256xf32>
    %429 = arith.select %427, %428, %422 : vector<16x256xi1>, vector<16x256xf32>
    %430 = tpu.concatenate %389, %399, %409, %419, %242, %296, %429, %350, %374 in 0 : vector<16x256xf32>, vector<16x256xf32>, vector<16x256xf32>, vector<16x256xf32>, vector<16x256xf32>, vector<16x256xf32>, vector<16x256xf32>, vector<16x256xf32>, vector<16x256xf32> -> vector<144x256xf32>
    %c0_299 = arith.constant 0 : index
    %c0_300 = arith.constant 0 : index
    %431 = vector.load %arg6[%c0_299, %c0_300] : memref<32x144xf32, #tpu.memory_space<vmem>>, vector<32x144xf32>
    %cst_301 = arith.constant dense<0.000000e+00> : vector<32x256xf32>
    %432 = tpu.matmul %431, %430, %cst_301 {dimension_numbers = #tpu.dot_dimension_numbers<[1], [0], [0], [1], [0, 0, 1, 1], [], []>} : vector<32x144xf32>, vector<144x256xf32>, vector<32x256xf32> -> vector<32x256xf32>
    %c0_302 = arith.constant 0 : index
    %c0_303 = arith.constant 0 : index
    %433 = vector.load %arg7[%c0_302, %c0_303] : memref<32x1xf32, #tpu.memory_space<vmem>>, vector<32x1xf32>
    %434 = vector.broadcast %433 : vector<32x1xf32> to vector<32x256xf32>
    %435 = arith.addf %432, %434 : vector<32x256xf32>
    %cst_304 = arith.constant 0.000000e+00 : f32
    %436 = vector.broadcast %cst_304 : f32 to vector<32x256xf32>
    %437 = arith.maximumf %435, %436 : vector<32x256xf32>
    %438 = arith.truncf %437 : vector<32x256xf32> to vector<32x256xbf16>
    %c0_305 = arith.constant 0 : index
    %c0_306 = arith.constant 0 : index
    %439 = vector.load %arg8[%c0_305, %c0_306] : memref<32x256xbf16, #tpu.memory_space<vmem>>, vector<32x256xbf16>
    tpu.vector_store %arg8[%c0_305, %c0_306], %438 {strides = array<i32>} : memref<32x256xbf16, #tpu.memory_space<vmem>>, vector<32x256xbf16>,
    return
  }
  func.func @transform_0(%arg0: i32) -> (i32, i32, i32) {
    %c0_i32 = arith.constant 0 : i32
    %c0_i32_0 = arith.constant 0 : i32
    %c0_i32_1 = arith.constant 0 : i32
    return %c0_i32, %c0_i32_0, %arg0 : i32, i32, i32
  }
  func.func @transform_1(%arg0: i32) -> (i32, i32) {
    %c0_i32 = arith.constant 0 : i32
    %c0_i32_0 = arith.constant 0 : i32
    %c0_i32_1 = arith.constant 0 : i32
    return %c0_i32, %c0_i32_0 : i32, i32
  }
  func.func @transform_2(%arg0: i32) -> (i32, i32) {
    %c0_i32 = arith.constant 0 : i32
    %c0_i32_0 = arith.constant 0 : i32
    %c0_i32_1 = arith.constant 0 : i32
    return %c0_i32, %c0_i32_0 : i32, i32
  }
  func.func @transform_3(%arg0: i32) -> (i32, i32) {
    %c0_i32 = arith.constant 0 : i32
    %c0_i32_0 = arith.constant 0 : i32
    %c0_i32_1 = arith.constant 0 : i32
    return %c0_i32, %c0_i32_0 : i32, i32
  }
  func.func @transform_4(%arg0: i32) -> (i32, i32) {
    %c0_i32 = arith.constant 0 : i32
    %c0_i32_0 = arith.constant 0 : i32
    %c0_i32_1 = arith.constant 0 : i32
    return %c0_i32, %c0_i32_0 : i32, i32
  }
  func.func @transform_5(%arg0: i32) -> (i32, i32) {
    %c0_i32 = arith.constant 0 : i32
    %c0_i32_0 = arith.constant 0 : i32
    %c0_i32_1 = arith.constant 0 : i32
    return %c0_i32, %c0_i32_0 : i32, i32
  }
  func.func @transform_6(%arg0: i32) -> (i32, i32) {
    %c0_i32 = arith.constant 0 : i32
    %c0_i32_0 = arith.constant 0 : i32
    %c0_i32_1 = arith.constant 0 : i32
    return %c0_i32, %c0_i32_0 : i32, i32
  }
  func.func @transform_7(%arg0: i32) -> (i32, i32) {
    %c0_i32 = arith.constant 0 : i32
    %c0_i32_0 = arith.constant 0 : i32
    return %c0_i32, %arg0 : i32, i32
  }
}

module attributes {stable_mosaic.version = 11 : i64} {
  func.func @_fc_head_kernel(%arg0: i32, %arg1: memref<16x2048xbf16, #tpu.memory_space<vmem>>, %arg2: memref<2048x128xbf16, #tpu.memory_space<vmem>>, %arg3: memref<1x128xf32, #tpu.memory_space<vmem>>, %arg4: memref<128x6xf32, #tpu.memory_space<vmem>>, %arg5: memref<1x6xf32, #tpu.memory_space<vmem>>, %arg6: memref<16x6xf32, #tpu.memory_space<vmem>>) attributes {dimension_semantics = [#tpu.dimension_semantics<parallel>], iteration_bounds = array<i64: 1>, scalar_prefetch = 0 : i64, scratch_operands = 0 : i64, tpu.core_type = #tpu.core_type<tc>, window_params = [{transform_indices = @transform_0, window_bounds = array<i64: 16, 2048>}, {pipeline_mode = #tpu.pipeline_mode<synchronous>, transform_indices = @transform_1, window_bounds = array<i64: 2048, 128>}, {pipeline_mode = #tpu.pipeline_mode<synchronous>, transform_indices = @transform_2, window_bounds = array<i64: 1, 128>}, {pipeline_mode = #tpu.pipeline_mode<synchronous>, transform_indices = @transform_3, window_bounds = array<i64: 128, 6>}, {pipeline_mode = #tpu.pipeline_mode<synchronous>, transform_indices = @transform_4, window_bounds = array<i64: 1, 6>}, {transform_indices = @transform_5, window_bounds = array<i64: 16, 6>}]} {
    %c0 = arith.constant 0 : index
    %c0_0 = arith.constant 0 : index
    %0 = vector.load %arg1[%c0, %c0_0] : memref<16x2048xbf16, #tpu.memory_space<vmem>>, vector<16x2048xbf16>
    %c0_1 = arith.constant 0 : index
    %c0_2 = arith.constant 0 : index
    %1 = vector.load %arg2[%c0_1, %c0_2] : memref<2048x128xbf16, #tpu.memory_space<vmem>>, vector<2048x128xbf16>
    %cst = arith.constant dense<0.000000e+00> : vector<16x128xf32>
    %2 = tpu.matmul %0, %1, %cst {dimension_numbers = #tpu.dot_dimension_numbers<[1], [0], [0], [1], [0, 0, 1, 1], [], []>} : vector<16x2048xbf16>, vector<2048x128xbf16>, vector<16x128xf32> -> vector<16x128xf32>
    %c0_3 = arith.constant 0 : index
    %c0_4 = arith.constant 0 : index
    %3 = vector.load %arg3[%c0_3, %c0_4] : memref<1x128xf32, #tpu.memory_space<vmem>>, vector<1x128xf32>
    %4 = vector.broadcast %3 : vector<1x128xf32> to vector<16x128xf32>
    %5 = arith.addf %2, %4 : vector<16x128xf32>
    %cst_5 = arith.constant 0.000000e+00 : f32
    %6 = vector.broadcast %cst_5 : f32 to vector<16x128xf32>
    %7 = arith.maximumf %5, %6 : vector<16x128xf32>
    %c0_6 = arith.constant 0 : index
    %c0_7 = arith.constant 0 : index
    %8 = vector.load %arg4[%c0_6, %c0_7] : memref<128x6xf32, #tpu.memory_space<vmem>>, vector<128x6xf32>
    %cst_8 = arith.constant dense<0.000000e+00> : vector<16x6xf32>
    %9 = tpu.matmul %7, %8, %cst_8 {dimension_numbers = #tpu.dot_dimension_numbers<[1], [0], [0], [1], [0, 0, 1, 1], [], []>} : vector<16x128xf32>, vector<128x6xf32>, vector<16x6xf32> -> vector<16x6xf32>
    %c0_9 = arith.constant 0 : index
    %c0_10 = arith.constant 0 : index
    %10 = vector.load %arg5[%c0_9, %c0_10] : memref<1x6xf32, #tpu.memory_space<vmem>>, vector<1x6xf32>
    %11 = vector.broadcast %10 : vector<1x6xf32> to vector<16x6xf32>
    %12 = arith.addf %9, %11 : vector<16x6xf32>
    %cst_11 = arith.constant dense<0xFF800000> : vector<16xf32>
    %13 = vector.multi_reduction <maximumf>, %12, %cst_11 [1] : vector<16x6xf32> to vector<16xf32>
    %14 = vector.shape_cast %13 : vector<16xf32> to vector<16x1xf32>
    %15 = vector.broadcast %14 : vector<16x1xf32> to vector<16x6xf32>
    %16 = arith.subf %12, %15 : vector<16x6xf32>
    %17 = math.exp %16 : vector<16x6xf32>
    %cst_12 = arith.constant dense<0.000000e+00> : vector<16xf32>
    %18 = vector.multi_reduction <add>, %17, %cst_12 [1] : vector<16x6xf32> to vector<16xf32>
    %19 = vector.shape_cast %18 : vector<16xf32> to vector<16x1xf32>
    %20 = tpu.reciprocal %19 {approx = true} : vector<16x1xf32> -> vector<16x1xf32>
    %21 = vector.broadcast %20 : vector<16x1xf32> to vector<16x6xf32>
    %22 = arith.mulf %17, %21 : vector<16x6xf32>
    %cst_13 = arith.constant 1.000000e-16 : f32
    %23 = vector.broadcast %cst_13 : f32 to vector<16x6xf32>
    %24 = arith.addf %22, %23 : vector<16x6xf32>
    %c0_14 = arith.constant 0 : index
    %c0_15 = arith.constant 0 : index
    %25 = vector.load %arg6[%c0_14, %c0_15] : memref<16x6xf32, #tpu.memory_space<vmem>>, vector<16x6xf32>
    tpu.vector_store %arg6[%c0_14, %c0_15], %24 {strides = array<i32>} : memref<16x6xf32, #tpu.memory_space<vmem>>, vector<16x6xf32>,
    return
  }
  func.func @transform_0(%arg0: i32) -> (i32, i32) {
    %c0_i32 = arith.constant 0 : i32
    %c0_i32_0 = arith.constant 0 : i32
    return %arg0, %c0_i32 : i32, i32
  }
  func.func @transform_1(%arg0: i32) -> (i32, i32) {
    %c0_i32 = arith.constant 0 : i32
    %c0_i32_0 = arith.constant 0 : i32
    %c0_i32_1 = arith.constant 0 : i32
    return %c0_i32, %c0_i32_0 : i32, i32
  }
  func.func @transform_2(%arg0: i32) -> (i32, i32) {
    %c0_i32 = arith.constant 0 : i32
    %c0_i32_0 = arith.constant 0 : i32
    %c0_i32_1 = arith.constant 0 : i32
    return %c0_i32, %c0_i32_0 : i32, i32
  }
  func.func @transform_3(%arg0: i32) -> (i32, i32) {
    %c0_i32 = arith.constant 0 : i32
    %c0_i32_0 = arith.constant 0 : i32
    %c0_i32_1 = arith.constant 0 : i32
    return %c0_i32, %c0_i32_0 : i32, i32
  }
  func.func @transform_4(%arg0: i32) -> (i32, i32) {
    %c0_i32 = arith.constant 0 : i32
    %c0_i32_0 = arith.constant 0 : i32
    %c0_i32_1 = arith.constant 0 : i32
    return %c0_i32, %c0_i32_0 : i32, i32
  }
  func.func @transform_5(%arg0: i32) -> (i32, i32) {
    %c0_i32 = arith.constant 0 : i32
    %c0_i32_0 = arith.constant 0 : i32
    return %arg0, %c0_i32 : i32, i32
  }
}

</mosaic_0001>

<llo_original>
// kernel: conv_abstraction_forward.2
$region0: #{conv_abstraction_forward.2}
  #allocation0 [shape = 'u32[]', space=smem, size = 0x4, offset = 0x4, fixed_abs, tag = 'smem constant byte address 0x4 - core index']
  #allocation1 [shape = 'u32[144,128]{1,0:T(1,128)}', space=vmem, size = 0x12000, scoped, tag = 'internal scratch']
  #allocation2 [shape = 'f32[16,8,256]{2,1,0:T(8,128)}', space=vmem, size = 0x20000, scoped, tag = 'scratch operand']
  %s0 = inlined_call_operand.vmem [shape: f32[16,9,512], index: 0, kind: input, shape index: {}]
  %s1 = inlined_call_operand.vmem [shape: f32[8,9], index: 1, kind: input, shape index: {}]
  %s2 = inlined_call_operand.vmem [shape: f32[8,1], index: 2, kind: input, shape index: {}]
  %s3 = inlined_call_operand.vmem [shape: f32[16,72], index: 3, kind: input, shape index: {}]
  %s4 = inlined_call_operand.vmem [shape: f32[16,1], index: 4, kind: input, shape index: {}]
  %s5 = inlined_call_operand.vmem [shape: f32[32,144], index: 5, kind: input, shape index: {}]
  %s6 = inlined_call_operand.vmem [shape: f32[32,1], index: 6, kind: input, shape index: {}]
  %s7 = inlined_call_operand.vmem [shape: bf16[32,512], index: 7, kind: output, shape index: {}]
  %s8 = sld [smem:[#allocation0]]
  $region118: #{conv_abstraction_forward.2} parent=0
    _
  %s10 = ssub.s32 1, %s8
  %s11 = scalar_select 0, %s10, %s8
  $region1: #{conv_abstraction_forward.2} parent=0
    #allocation3 [shape = 'u8[524288]{0}', space=vmem, size = 0x80000, scoped, tag = 'input window, operand 0']
    #allocation4 [shape = 'u8[32768]{0}', space=vmem, size = 0x8000, scoped, tag = 'output window, operand 0']
    loop: start=0, step=1, limit=4
    $region2: #{conv_abstraction_forward.2} parent=1 // loop_pre_header
      _
    $region3: #{conv_abstraction_forward.2} parent=1 // loop_header
      %s13 = sphi 0, %s17
      %p14 = scmp.ge.s32.totalorder %s13, 4
      %s23 = sphi 0, %s25
      %s26 = sphi 0, %s23
      %s27 = sphi 0, %s26
      %s43 = sphi 0, %s27
      %s47 = sphi 0, %s47
      %s49 = sphi 0, %s47
      %s50 = sphi 0, %s49
      %s64 = sphi 0, %s50
      %s68 = sphi 0, %s68
      %s70 = sphi 0, %s68
      %s71 = sphi 0, %s70
      %s85 = sphi 0, %s71
      %s89 = sphi 0, %s89
      %s91 = sphi 0, %s89
      %s92 = sphi 0, %s91
      %s106 = sphi 0, %s92
      %s110 = sphi 0, %s110
      %s112 = sphi 0, %s110
      %s113 = sphi 0, %s112
      %s127 = sphi 0, %s113
      %s131 = sphi 0, %s131
      %s133 = sphi 0, %s131
      %s134 = sphi 0, %s133
      %s148 = sphi 0, %s134
      %s152 = sphi 0, %s152
      %s154 = sphi 0, %s152
      %s155 = sphi 0, %s154
      %s169 = sphi 0, %s155
      %s175 = sphi 0, %s177
      %s178 = sphi 0, %s175
      %s179 = sphi 0, %s178
      %s195 = sphi 0, %s179
    $region4: #{conv_abstraction_forward.2} parent=1 // loop_header_branch
      %16 = sbr.rel (%p14) target = $region8
    $region5: #{conv_abstraction_forward.2} parent=1 // loop_body
      %s18 = ssub.s32 %s13, 1
      %s19 = ssub.s32 %s13, 2
      %s20 = sadd.s32 %s13, 1
      %s21 = ssub.s32 %s13, %s20
      %p22 = scmp.eq.s32.totalorder %s21, 0
      %s24 = sadd.s32 %s23, 1
      %s25 = scalar_select %p22, %s23, %s24
      %p28 = pneg %p22
      %p29 = scmp.eq.s32.totalorder %s13, 1
      %p30 = por %p28, %p29
      %p31 = scmp.ne.s32.totalorder %s23, %s26
      %p32 = scmp.eq.s32.totalorder %s13, 0
      %p33 = por %p31, %p32
      %p34 = scmp.ne.s32.totalorder %s23, %s26
      %p35 = scmp.eq.s32.totalorder %s18, 1
      %p36 = por %p34, %p35
      %p37 = scmp.ne.s32.totalorder %s26, %s27
      %p38 = scmp.eq.s32.totalorder %s18, 0
      %p39 = por %p37, %p38
      %p40 = scmp.ne.s32.totalorder %s26, %s27
      %p41 = scmp.eq.s32.totalorder %s19, 1
      %p42 = por %p40, %p41
      %p44 = scmp.ne.s32.totalorder %s27, %s43
      %p45 = scmp.eq.s32.totalorder %s19, 0
      %p46 = por %p44, %p45
      %s48 = sadd.s32 %s47, 1
      %p51 = scmp.eq.s32.totalorder %s13, 1
      %p52 = scmp.ne.s32.totalorder %s47, %s49
      %p53 = scmp.eq.s32.totalorder %s13, 0
      %p54 = por %p52, %p53
      %p55 = scmp.ne.s32.totalorder %s47, %s49
      %p56 = scmp.eq.s32.totalorder %s18, 1
      %p57 = por %p55, %p56
      %p58 = scmp.ne.s32.totalorder %s49, %s50
      %p59 = scmp.eq.s32.totalorder %s18, 0
      %p60 = por %p58, %p59
      %p61 = scmp.ne.s32.totalorder %s49, %s50
      %p62 = scmp.eq.s32.totalorder %s19, 1
      %p63 = por %p61, %p62
      %p65 = scmp.ne.s32.totalorder %s50, %s64
      %p66 = scmp.eq.s32.totalorder %s19, 0
      %p67 = por %p65, %p66
      %s69 = sadd.s32 %s68, 1
      %p72 = scmp.eq.s32.totalorder %s13, 1
      %p73 = scmp.ne.s32.totalorder %s68, %s70
      %p74 = scmp.eq.s32.totalorder %s13, 0
      %p75 = por %p73, %p74
      %p76 = scmp.ne.s32.totalorder %s68, %s70
      %p77 = scmp.eq.s32.totalorder %s18, 1
      %p78 = por %p76, %p77
      %p79 = scmp.ne.s32.totalorder %s70, %s71
      %p80 = scmp.eq.s32.totalorder %s18, 0
      %p81 = por %p79, %p80
      %p82 = scmp.ne.s32.totalorder %s70, %s71
      %p83 = scmp.eq.s32.totalorder %s19, 1
      %p84 = por %p82, %p83
      %p86 = scmp.ne.s32.totalorder %s71, %s85
      %p87 = scmp.eq.s32.totalorder %s19, 0
      %p88 = por %p86, %p87
      %s90 = sadd.s32 %s89, 1
      %p93 = scmp.eq.s32.totalorder %s13, 1
      %p94 = scmp.ne.s32.totalorder %s89, %s91
      %p95 = scmp.eq.s32.totalorder %s13, 0
      %p96 = por %p94, %p95
      %p97 = scmp.ne.s32.totalorder %s89, %s91
      %p98 = scmp.eq.s32.totalorder %s18, 1
      %p99 = por %p97, %p98
      %p100 = scmp.ne.s32.totalorder %s91, %s92
      %p101 = scmp.eq.s32.totalorder %s18, 0
      %p102 = por %p100, %p101
      %p103 = scmp.ne.s32.totalorder %s91, %s92
      %p104 = scmp.eq.s32.totalorder %s19, 1
      %p105 = por %p103, %p104
      %p107 = scmp.ne.s32.totalorder %s92, %s106
      %p108 = scmp.eq.s32.totalorder %s19, 0
      %p109 = por %p107, %p108
      %s111 = sadd.s32 %s110, 1
      %p114 = scmp.eq.s32.totalorder %s13, 1
      %p115 = scmp.ne.s32.totalorder %s110, %s112
      %p116 = scmp.eq.s32.totalorder %s13, 0
      %p117 = por %p115, %p116
      %p118 = scmp.ne.s32.totalorder %s110, %s112
      %p119 = scmp.eq.s32.totalorder %s18, 1
      %p120 = por %p118, %p119
      %p121 = scmp.ne.s32.totalorder %s112, %s113
      %p122 = scmp.eq.s32.totalorder %s18, 0
      %p123 = por %p121, %p122
      %p124 = scmp.ne.s32.totalorder %s112, %s113
      %p125 = scmp.eq.s32.totalorder %s19, 1
      %p126 = por %p124, %p125
      %p128 = scmp.ne.s32.totalorder %s113, %s127
      %p129 = scmp.eq.s32.totalorder %s19, 0
      %p130 = por %p128, %p129
      %s132 = sadd.s32 %s131, 1
      %p135 = scmp.eq.s32.totalorder %s13, 1
      %p136 = scmp.ne.s32.totalorder %s131, %s133
      %p137 = scmp.eq.s32.totalorder %s13, 0
      %p138 = por %p136, %p137
      %p139 = scmp.ne.s32.totalorder %s131, %s133
      %p140 = scmp.eq.s32.totalorder %s18, 1
      %p141 = por %p139, %p140
      %p142 = scmp.ne.s32.totalorder %s133, %s134
      %p143 = scmp.eq.s32.totalorder %s18, 0
      %p144 = por %p142, %p143
      %p145 = scmp.ne.s32.totalorder %s133, %s134
      %p146 = scmp.eq.s32.totalorder %s19, 1
      %p147 = por %p145, %p146
      %p149 = scmp.ne.s32.totalorder %s134, %s148
      %p150 = scmp.eq.s32.totalorder %s19, 0
      %p151 = por %p149, %p150
      %s153 = sadd.s32 %s152, 1
      %p156 = scmp.eq.s32.totalorder %s13, 1
      %p157 = scmp.ne.s32.totalorder %s152, %s154
      %p158 = scmp.eq.s32.totalorder %s13, 0
      %p159 = por %p157, %p158
      %p160 = scmp.ne.s32.totalorder %s152, %s154
      %p161 = scmp.eq.s32.totalorder %s18, 1
      %p162 = por %p160, %p161
      %p163 = scmp.ne.s32.totalorder %s154, %s155
      %p164 = scmp.eq.s32.totalorder %s18, 0
      %p165 = por %p163, %p164
      %p166 = scmp.ne.s32.totalorder %s154, %s155
      %p167 = scmp.eq.s32.totalorder %s19, 1
      %p168 = por %p166, %p167
      %p170 = scmp.ne.s32.totalorder %s155, %s169
      %p171 = scmp.eq.s32.totalorder %s19, 0
      %p172 = por %p170, %p171
      %s173 = ssub.s32 %s13, %s20
      %p174 = scmp.eq.s32.totalorder %s173, 0
      %s176 = sadd.s32 %s175, 1
      %s177 = scalar_select %p174, %s175, %s176
      %p180 = pneg %p174
      %p181 = scmp.eq.s32.totalorder %s13, 1
      %p182 = por %p180, %p181
      %p183 = scmp.ne.s32.totalorder %s175, %s178
      %p184 = scmp.eq.s32.totalorder %s13, 0
      %p185 = por %p183, %p184
      %p186 = scmp.ne.s32.totalorder %s175, %s178
      %p187 = scmp.eq.s32.totalorder %s18, 1
      %p188 = por %p186, %p187
      %p189 = scmp.ne.s32.totalorder %s178, %s179
      %p190 = scmp.eq.s32.totalorder %s18, 0
      %p191 = por %p189, %p190
      %p192 = scmp.ne.s32.totalorder %s178, %s179
      %p193 = scmp.eq.s32.totalorder %s19, 1
      %p194 = por %p192, %p193
      %p196 = scmp.ne.s32.totalorder %s179, %s195
      %p197 = scmp.eq.s32.totalorder %s19, 0
      %p198 = por %p196, %p197
      %p199 = scmp.le.s32.totalorder 1, %s13
      %p200 = scmp.lt.s32.totalorder %s13, 3
      %p201 = pnand %p199, %p200
      %p202 = pneg %p201
      // Predicated region
      $region9: #{conv_abstraction_forward.2} parent=5 // pred_check
        _
      $region10: #{conv_abstraction_forward.2} parent=5 // pred_check_branch
        %204 = sbr.rel (%p201) target = $region12
      $region11: #{conv_abstraction_forward.2} parent=5 // pred_region
        %s205 = ssub.s32 %s13, 1
        // Predicated region
        $region13: #{conv_abstraction_forward.2} parent=11 // pred_check
          %p206 = pneg %p60
        $region14: #{conv_abstraction_forward.2} parent=11 // pred_check_branch
          %208 = sbr.rel (%p206) target = $region16
        $region15: #{conv_abstraction_forward.2} parent=11 // pred_region
          _
        $region16: #{conv_abstraction_forward.2} parent=11 // pred_fallthru
          _
        // Predicated region
        $region17: #{conv_abstraction_forward.2} parent=11 // pred_check
          %p209 = pneg %p81
        $region18: #{conv_abstraction_forward.2} parent=11 // pred_check_branch
          %211 = sbr.rel (%p209) target = $region20
        $region19: #{conv_abstraction_forward.2} parent=11 // pred_region
          _
        $region20: #{conv_abstraction_forward.2} parent=11 // pred_fallthru
          _
        // Predicated region
        $region21: #{conv_abstraction_forward.2} parent=11 // pred_check
          %p212 = pneg %p102
        $region22: #{conv_abstraction_forward.2} parent=11 // pred_check_branch
          %214 = sbr.rel (%p212) target = $region24
        $region23: #{conv_abstraction_forward.2} parent=11 // pred_region
          _
        $region24: #{conv_abstraction_forward.2} parent=11 // pred_fallthru
          _
        // Predicated region
        $region25: #{conv_abstraction_forward.2} parent=11 // pred_check
          %p215 = pneg %p123
        $region26: #{conv_abstraction_forward.2} parent=11 // pred_check_branch
          %217 = sbr.rel (%p215) target = $region28
        $region27: #{conv_abstraction_forward.2} parent=11 // pred_region
          _
        $region28: #{conv_abstraction_forward.2} parent=11 // pred_fallthru
          _
        // Predicated region
        $region29: #{conv_abstraction_forward.2} parent=11 // pred_check
          %p218 = pneg %p144
        $region30: #{conv_abstraction_forward.2} parent=11 // pred_check_branch
          %220 = sbr.rel (%p218) target = $region32
        $region31: #{conv_abstraction_forward.2} parent=11 // pred_region
          _
        $region32: #{conv_abstraction_forward.2} parent=11 // pred_fallthru
          _
        // Predicated region
        $region33: #{conv_abstraction_forward.2} parent=11 // pred_check
          %p221 = pneg %p165
        $region34: #{conv_abstraction_forward.2} parent=11 // pred_check_branch
          %223 = sbr.rel (%p221) target = $region36
        $region35: #{conv_abstraction_forward.2} parent=11 // pred_region
          _
        $region36: #{conv_abstraction_forward.2} parent=11 // pred_fallthru
          _
      $region12: #{conv_abstraction_forward.2} parent=5 // pred_fallthru
        _
      %p224 = scmp.lt.s32.totalorder %s13, 2
      // Predicated region
      $region37: #{conv_abstraction_forward.2} parent=5 // pred_check
        %p225 = pneg %p224
      $region38: #{conv_abstraction_forward.2} parent=5 // pred_check_branch
        %227 = sbr.rel (%p225) target = $region40
      $region39: #{conv_abstraction_forward.2} parent=5 // pred_region
        // Predicated region
        $region41: #{conv_abstraction_forward.2} parent=39 // pred_check
          %p228 = pneg %p33
        $region42: #{conv_abstraction_forward.2} parent=39 // pred_check_branch
          %230 = sbr.rel (%p228) target = $region44
        $region43: #{conv_abstraction_forward.2} parent=39 // pred_region
          %s231 = sand.u32 %s23, 1
          %s232 = sand.u32 %s23, 1
          %s233 = smul.addr %s232, 512
          %s234 = scalar_lea.vmem [#allocation3], %s233
          %s235 = smul.u32 2, %s13
          %s236 = smul.addr %s235, 8
          %s237 = scalar_lea.vmem %s0, %s236
          // Predicated region
          $region45: #{conv_abstraction_forward.2} parent=43 // pred_check
            _
          $region46: #{conv_abstraction_forward.2} parent=43 // pred_check_branch
            %239 = sbr.rel (0) target = $region48
          $region47: #{conv_abstraction_forward.2} parent=43 // pred_region
            // Predicated region
            $region49: #{conv_abstraction_forward.2} parent=47 // pred_check
              _
            $region50: #{conv_abstraction_forward.2} parent=47 // pred_check_branch
              %241 = sbr.rel (0) target = $region52
            $region51: #{conv_abstraction_forward.2} parent=47 // pred_region
              loop: start=0, step=1, limit=1
              $region53: #{conv_abstraction_forward.2} parent=51 // loop_pre_header
                _
              $region54: #{conv_abstraction_forward.2} parent=51 // loop_header
                %s243 = sphi 0, %s247
                %p244 = scmp.ge.s32.totalorder %s243, 1
                %s248 = sphi %s237, %s237
                %s249 = sphi %s234, %s234
              $region55: #{conv_abstraction_forward.2} parent=51 // loop_header_branch
                %246 = sbr.rel (%p244) target = $region59
              $region56: #{conv_abstraction_forward.2} parent=51 // loop_body
                %v250 = vld [vmem:[%s248] sm:$0xff]
                %251 = vst [vmem:[%s249] sm:$0xff] %v250
                %v252 = vld [vmem:[%s248 + $0x8] sm:$0xff]
                %253 = vst [vmem:[%s249 + $0x8] sm:$0xff] %v252
                %v254 = vld [vmem:[%s248 + $0x20] sm:$0xff]
                %255 = vst [vmem:[%s249 + $0x10] sm:$0xff] %v254
                %v256 = vld [vmem:[%s248 + $0x28] sm:$0xff]
                %257 = vst [vmem:[%s249 + $0x18] sm:$0xff] %v256
                %v258 = vld [vmem:[%s248 + $0x40] sm:$0xff]
                %259 = vst [vmem:[%s249 + $0x20] sm:$0xff] %v258
                %v260 = vld [vmem:[%s248 + $0x48] sm:$0xff]
                %261 = vst [vmem:[%s249 + $0x28] sm:$0xff] %v260
                %v262 = vld [vmem:[%s248 + $0x60] sm:$0xff]
                %263 = vst [vmem:[%s249 + $0x30] sm:$0xff] %v262
                %v264 = vld [vmem:[%s248 + $0x68] sm:$0xff]
                %265 = vst [vmem:[%s249 + $0x38] sm:$0xff] %v264
                %v266 = vld [vmem:[%s248 + $0x80] sm:$0xff]
                %267 = vst [vmem:[%s249 + $0x40] sm:$0xff] %v266
                %v268 = vld [vmem:[%s248 + $0x88] sm:$0xff]
                %269 = vst [vmem:[%s249 + $0x48] sm:$0xff] %v268
                %v270 = vld [vmem:[%s248 + $0xa0] sm:$0xff]
                %271 = vst [vmem:[%s249 + $0x50] sm:$0xff] %v270
                %v272 = vld [vmem:[%s248 + $0xa8] sm:$0xff]
                %273 = vst [vmem:[%s249 + $0x58] sm:$0xff] %v272
                %v274 = vld [vmem:[%s248 + $0xc0] sm:$0xff]
                %275 = vst [vmem:[%s249 + $0x60] sm:$0xff] %v274
                %v276 = vld [vmem:[%s248 + $0xc8] sm:$0xff]
                %277 = vst [vmem:[%s249 + $0x68] sm:$0xff] %v276
                %v278 = vld [vmem:[%s248 + $0xe0] sm:$0xff]
                %279 = vst [vmem:[%s249 + $0x70] sm:$0xff] %v278
                %v280 = vld [vmem:[%s248 + $0xe8] sm:$0xff]
                %281 = vst [vmem:[%s249 + $0x78] sm:$0xff] %v280
                %v282 = vld [vmem:[%s248 + $0x100] sm:$0xff]
                %283 = vst [vmem:[%s249 + $0x80] sm:$0xff] %v282
                %v284 = vld [vmem:[%s248 + $0x108] sm:$0xff]
                %285 = vst [vmem:[%s249 + $0x88] sm:$0xff] %v284
                %v286 = vld [vmem:[%s248 + $0x120] sm:$0xff]
                %287 = vst [vmem:[%s249 + $0x90] sm:$0xff] %v286
                %v288 = vld [vmem:[%s248 + $0x128] sm:$0xff]
                %289 = vst [vmem:[%s249 + $0x98] sm:$0xff] %v288
                %v290 = vld [vmem:[%s248 + $0x140] sm:$0xff]
                %291 = vst [vmem:[%s249 + $0xa0] sm:$0xff] %v290
                %v292 = vld [vmem:[%s248 + $0x148] sm:$0xff]
                %293 = vst [vmem:[%s249 + $0xa8] sm:$0xff] %v292
                %v294 = vld [vmem:[%s248 + $0x160] sm:$0xff]
                %295 = vst [vmem:[%s249 + $0xb0] sm:$0xff] %v294
                %v296 = vld [vmem:[%s248 + $0x168] sm:$0xff]
                %297 = vst [vmem:[%s249 + $0xb8] sm:$0xff] %v296
                %v298 = vld [vmem:[%s248 + $0x180] sm:$0xff]
                %299 = vst [vmem:[%s249 + $0xc0] sm:$0xff] %v298
                %v300 = vld [vmem:[%s248 + $0x188] sm:$0xff]
                %301 = vst [vmem:[%s249 + $0xc8] sm:$0xff] %v300
                %v302 = vld [vmem:[%s248 + $0x1a0] sm:$0xff]
                %303 = vst [vmem:[%s249 + $0xd0] sm:$0xff] %v302
                %v304 = vld [vmem:[%s248 + $0x1a8] sm:$0xff]
                %305 = vst [vmem:[%s249 + $0xd8] sm:$0xff] %v304
                %v306 = vld [vmem:[%s248 + $0x1c0] sm:$0xff]
                %307 = vst [vmem:[%s249 + $0xe0] sm:$0xff] %v306
                %v308 = vld [vmem:[%s248 + $0x1c8] sm:$0xff]
                %309 = vst [vmem:[%s249 + $0xe8] sm:$0xff] %v308
                %v310 = vld [vmem:[%s248 + $0x1e0] sm:$0xff]
                %311 = vst [vmem:[%s249 + $0xf0] sm:$0xff] %v310
                %v312 = vld [vmem:[%s248 + $0x1e8] sm:$0xff]
                %313 = vst [vmem:[%s249 + $0xf8] sm:$0xff] %v312
                %v314 = vld [vmem:[%s248 + $0x200] sm:$0xff]
                %315 = vst [vmem:[%s249 + $0x100] sm:$0xff] %v314
                %v316 = vld [vmem:[%s248 + $0x208] sm:$0xff]
                %317 = vst [vmem:[%s249 + $0x108] sm:$0xff] %v316
                %v318 = vld [vmem:[%s248 + $0x220] sm:$0xff]
                %319 = vst [vmem:[%s249 + $0x110] sm:$0xff] %v318
                %v320 = vld [vmem:[%s248 + $0x228] sm:$0xff]
                %321 = vst [vmem:[%s249 + $0x118] sm:$0xff] %v320
                %v322 = vld [vmem:[%s248 + $0x240] sm:$0xff]
                %323 = vst [vmem:[%s249 + $0x120] sm:$0xff] %v322
                %v324 = vld [vmem:[%s248 + $0x248] sm:$0xff]
                %325 = vst [vmem:[%s249 + $0x128] sm:$0xff] %v324
                %v326 = vld [vmem:[%s248 + $0x260] sm:$0xff]
                %327 = vst [vmem:[%s249 + $0x130] sm:$0xff] %v326
                %v328 = vld [vmem:[%s248 + $0x268] sm:$0xff]
                %329 = vst [vmem:[%s249 + $0x138] sm:$0xff] %v328
                %v330 = vld [vmem:[%s248 + $0x280] sm:$0xff]
                %331 = vst [vmem:[%s249 + $0x140] sm:$0xff] %v330
                %v332 = vld [vmem:[%s248 + $0x288] sm:$0xff]
                %333 = vst [vmem:[%s249 + $0x148] sm:$0xff] %v332
                %v334 = vld [vmem:[%s248 + $0x2a0] sm:$0xff]
                %335 = vst [vmem:[%s249 + $0x150] sm:$0xff] %v334
                %v336 = vld [vmem:[%s248 + $0x2a8] sm:$0xff]
                %337 = vst [vmem:[%s249 + $0x158] sm:$0xff] %v336
                %v338 = vld [vmem:[%s248 + $0x2c0] sm:$0xff]
                %339 = vst [vmem:[%s249 + $0x160] sm:$0xff] %v338
                %v340 = vld [vmem:[%s248 + $0x2c8] sm:$0xff]
                %341 = vst [vmem:[%s249 + $0x168] sm:$0xff] %v340
                %v342 = vld [vmem:[%s248 + $0x2e0] sm:$0xff]
                %343 = vst [vmem:[%s249 + $0x170] sm:$0xff] %v342
                %v344 = vld [vmem:[%s248 + $0x2e8] sm:$0xff]
                %345 = vst [vmem:[%s249 + $0x178] sm:$0xff] %v344
                %v346 = vld [vmem:[%s248 + $0x300] sm:$0xff]
                %347 = vst [vmem:[%s249 + $0x180] sm:$0xff] %v346
                %v348 = vld [vmem:[%s248 + $0x308] sm:$0xff]
                %349 = vst [vmem:[%s249 + $0x188] sm:$0xff] %v348
                %v350 = vld [vmem:[%s248 + $0x320] sm:$0xff]
                %351 = vst [vmem:[%s249 + $0x190] sm:$0xff] %v350
                %v352 = vld [vmem:[%s248 + $0x328] sm:$0xff]
                %353 = vst [vmem:[%s249 + $0x198] sm:$0xff] %v352
                %v354 = vld [vmem:[%s248 + $0x340] sm:$0xff]
                %355 = vst [vmem:[%s249 + $0x1a0] sm:$0xff] %v354
                %v356 = vld [vmem:[%s248 + $0x348] sm:$0xff]
                %357 = vst [vmem:[%s249 + $0x1a8] sm:$0xff] %v356
                %v358 = vld [vmem:[%s248 + $0x360] sm:$0xff]
                %359 = vst [vmem:[%s249 + $0x1b0] sm:$0xff] %v358
                %v360 = vld [vmem:[%s248 + $0x368] sm:$0xff]
                %361 = vst [vmem:[%s249 + $0x1b8] sm:$0xff] %v360
                %v362 = vld [vmem:[%s248 + $0x380] sm:$0xff]
                %363 = vst [vmem:[%s249 + $0x1c0] sm:$0xff] %v362
                %v364 = vld [vmem:[%s248 + $0x388] sm:$0xff]
                %365 = vst [vmem:[%s249 + $0x1c8] sm:$0xff] %v364
                %v366 = vld [vmem:[%s248 + $0x3a0] sm:$0xff]
                %367 = vst [vmem:[%s249 + $0x1d0] sm:$0xff] %v366
                %v368 = vld [vmem:[%s248 + $0x3a8] sm:$0xff]
                %369 = vst [vmem:[%s249 + $0x1d8] sm:$0xff] %v368
                %v370 = vld [vmem:[%s248 + $0x3c0] sm:$0xff]
                %371 = vst [vmem:[%s249 + $0x1e0] sm:$0xff] %v370
                %v372 = vld [vmem:[%s248 + $0x3c8] sm:$0xff]
                %373 = vst [vmem:[%s249 + $0x1e8] sm:$0xff] %v372
                %v374 = vld [vmem:[%s248 + $0x3e0] sm:$0xff]
                %375 = vst [vmem:[%s249 + $0x1f0] sm:$0xff] %v374
                %v376 = vld [vmem:[%s248 + $0x3e8] sm:$0xff]
                %377 = vst [vmem:[%s249 + $0x1f8] sm:$0xff] %v376
              $region57: #{conv_abstraction_forward.2} parent=51 // loop_footer
                %s247 = sadd.s32 1, %s243
              $region58: #{conv_abstraction_forward.2} parent=51 // loop_footer_branch
                %242 = sbr.rel target = $region54
              $region59: #{conv_abstraction_forward.2} parent=51 // loop_exit
                _
            $region52: #{conv_abstraction_forward.2} parent=47 // pred_fallthru
              _
            // Predicated region
            $region60: #{conv_abstraction_forward.2} parent=47 // pred_check
              _
            $region61: #{conv_abstraction_forward.2} parent=47 // pred_check_branch
              %379 = sbr.rel target = $region63
            $region62: #{conv_abstraction_forward.2} parent=47 // pred_region
              _
            $region63: #{conv_abstraction_forward.2} parent=47 // pred_fallthru
              _
          $region48: #{conv_abstraction_forward.2} parent=43 // pred_fallthru
            _
          %380 = vnop
        $region44: #{conv_abstraction_forward.2} parent=39 // pred_fallthru
          _
      $region40: #{conv_abstraction_forward.2} parent=5 // pred_fallthru
        _
      %p381 = scmp.le.s32.totalorder 1, %s13
      %p382 = scmp.lt.s32.totalorder %s13, 3
      %p383 = pnand %p381, %p382
      %p384 = pneg %p383
      // Predicated region
      $region64: #{conv_abstraction_forward.2} parent=5 // pred_check
        _
      $region65: #{conv_abstraction_forward.2} parent=5 // pred_check_branch
        %386 = sbr.rel (%p383) target = $region67
      $region66: #{conv_abstraction_forward.2} parent=5 // pred_region
        %s387 = ssub.s32 %s13, 1
        %s388 = sand.u32 %s26, 1
        %s389 = sand.u32 %s26, 1
        %s390 = smul.addr %s389, 512
        %s391 = scalar_lea.vmem [#allocation3], %s390
        // Predicated region
        $region68: #{conv_abstraction_forward.2} parent=66 // pred_check
          %p392 = pneg %p39
        $region69: #{conv_abstraction_forward.2} parent=66 // pred_check_branch
          %394 = sbr.rel (%p392) target = $region71
        $region70: #{conv_abstraction_forward.2} parent=66 // pred_region
          _
        $region71: #{conv_abstraction_forward.2} parent=66 // pred_fallthru
          _
        %s395 = sand.u32 %s26, 1
        %s396 = sand.u32 %s26, 1
        %s397 = smul.addr %s396, 512
        %s398 = scalar_lea.vmem [#allocation3], %s397
        %p399 = pneg %p39
        %p400 = pneg %p36
        %p401 = pneg %p60
        %p402 = pneg %p57
        %p403 = pneg %p81
        %p404 = pneg %p78
        %p405 = pneg %p102
        %p406 = pneg %p99
        %p407 = pneg %p123
        %p408 = pneg %p120
        %p409 = pneg %p144
        %p410 = pneg %p141
        %p411 = pneg %p165
        %p412 = pneg %p162
        %p413 = pneg %p191
        %p414 = pneg %p188
        %s415 = sand.u32 %s178, 1
        %s416 = sand.u32 %s178, 1
        %s417 = smul.addr %s416, 32
        %s418 = scalar_lea.vmem [#allocation4], %s417
        %s419 = smul.u32 2, %s18
        %s420 = smul.u32 2, %s18
        %v421 = vld [vmem:[%s1] sm:$0xff]
        %v422 = vld [vmem:[%s2] sm:$0xff]
        %v423 = vld [vmem:[%s391] sm:$0xff]
        %v424 = vld [vmem:[%s391 + $0x8] sm:$0xff]
        %v425 = vld [vmem:[%s391 + $0x10] sm:$0x1]
        %v426 = vld [vmem:[%s391 + $0x18] sm:$0x1]
        %428 = vset.pattern.permute.xlu0 0
        %429 = vperm.xlu0 %428, %v422
        %v430 = vpop.permute.xlu0 %429
        %vm432 = vcmask 72704
        %v434 = vsel %vm432, %v421, 0
        %vm436 = vcmask 1040384
        %v438 = vsel %vm436, %v425, 0
        %v441 = vsel %vm436, %v426, 0
        %443 = vmatprep.subr.mxu0 %v424
        %444 = vmatpush1.msra.mxu0 %v423
        %445 = vmatprep.subr.mxu0 %v441
        %446 = vmatpush1.msra.mxu0 %v438
        %447 = vmatprep.subr.mxu0 0.0
        %448 = vmatpush1.msra.mxu0 0.0
        %449 = vmatprep.subr.mxu0 0.0
        %450 = vmatpush1.msra.mxu0 0.0
        %451 = vmatprep.subr.mxu0 0.0
        %452 = vmatpush1.msra.mxu0 0.0
        %453 = vmatprep.subr.mxu0 0.0
        %454 = vmatpush1.msra.mxu0 0.0
        %455 = vmatprep.subr.mxu0 0.0
        %456 = vmatpush1.msra.mxu0 0.0
        %457 = vmatprep.subr.mxu0 0.0
        %458 = vmatpush1.msra.mxu0 0.0
        %459 = vmatprep.subr.mxu0 0.0
        %460 = vmatpush1.msra.mxu0 0.0
        %461 = vmatprep.subr.mxu0 0.0
        %462 = vmatpush1.msra.mxu0 0.0
        %463 = vmatprep.subr.mxu0 0.0
        %464 = vmatpush1.msra.mxu0 0.0
        %465 = vmatprep.subr.mxu0 0.0
        %466 = vmatpush1.msra.mxu0 0.0
        %467 = vmatprep.subr.mxu0 0.0
        %468 = vmatpush1.msra.mxu0 0.0
        %469 = vmatprep.subr.mxu0 0.0
        %470 = vmatpush1.msra.mxu0 0.0
        %471 = vmatprep.subr.mxu0 0.0
        %472 = vmatpush1.msra.mxu0 0.0
        %473 = vmatprep.subr.mxu0 0.0
        %474 = vmatpush1.msra.mxu0 0.0
        %475 = vmatprep.subr.mxu0 0.0
        %476 = vmatpush1.msra.mxu0 0.0
        %477 = vmatprep.subr.mxu0 0.0
        %478 = vmatpush1.msra.mxu0 0.0
        %479 = vmatprep.subr.mxu0 0.0
        %480 = vmatpush1.msra.mxu0 0.0
        %481 = vmatprep.subr.mxu0 0.0
        %482 = vmatpush1.msra.mxu0 0.0
        %483 = vmatprep.subr.mxu0 0.0
        %484 = vmatpush1.msra.mxu0 0.0
        %485 = vmatprep.subr.mxu0 0.0
        %486 = vmatpush1.msra.mxu0 0.0
        %487 = vmatprep.subr.mxu0 0.0
        %488 = vmatpush1.msra.mxu0 0.0
        %489 = vmatprep.subr.mxu0 0.0
        %490 = vmatpush1.msra.mxu0 0.0
        %491 = vmatprep.subr.mxu0 0.0
        %492 = vmatpush1.msra.mxu0 0.0
        %493 = vmatprep.subr.mxu0 0.0
        %494 = vmatpush1.msra.mxu0 0.0
        %495 = vmatprep.subr.mxu0 0.0
        %496 = vmatpush1.msra.mxu0 0.0
        %497 = vmatprep.subr.mxu0 0.0
        %498 = vmatpush1.msra.mxu0 0.0
        %499 = vmatprep.subr.mxu0 0.0
        %500 = vmatpush1.msra.mxu0 0.0
        %501 = vmatprep.subr.mxu0 0.0
        %502 = vmatpush1.msra.mxu0 0.0
        %503 = vmatprep.subr.mxu0 0.0
        %504 = vmatpush1.msra.mxu0 0.0
        %505 = vmatprep.subr.mxu0 0.0
        %506 = vmatpush1.msra.mxu0 0.0
        %507 = vmatprep.mubr.f32.mxu0 0.0
        %508 = vmatmul.mubr.f32.gmra.mrb[0].mxu0 %v434
        %v509 = vpop.f32.mrb[0].mxu0
        %v510 = vadd.f32 %v430, %v509
        %v511 = vpop.f32.mrb[0].mxu0
        %v512 = vadd.f32 %v430, %v511
        %513 = vdwg.mxu0
        %v514 = vmax.f32 %v510, 0.0
        %v515 = vmax.f32 %v512, 0.0
        %516 = vst [vmem:[#allocation2] sm:$0xff] %v514
        %517 = vst [vmem:[#allocation2 + $0x8] sm:$0xff] %v515
        %s518 = scalar_lea.vmem %s391, 32 [#allocation3]
        %v519 = vld [vmem:[%s518] sm:$0xff]
        %v520 = vld [vmem:[%s518 + $0x8] sm:$0xff]
        %v521 = vld [vmem:[%s518 + $0x10] sm:$0x1]
        %v522 = vld [vmem:[%s518 + $0x18] sm:$0x1]
        %v524 = vsel %vm436, %v521, 0
        %v527 = vsel %vm436, %v522, 0
        %529 = vmatprep.subr.mxu0 %v520
        %530 = vmatpush1.msra.mxu0 %v519
        %531 = vmatprep.subr.mxu0 %v527
        %532 = vmatpush1.msra.mxu0 %v524
        %533 = vmatprep.subr.mxu0 0.0
        %534 = vmatpush1.msra.mxu0 0.0
        %535 = vmatprep.subr.mxu0 0.0
        %536 = vmatpush1.msra.mxu0 0.0
        %537 = vmatprep.subr.mxu0 0.0
        %538 = vmatpush1.msra.mxu0 0.0
        %539 = vmatprep.subr.mxu0 0.0
        %540 = vmatpush1.msra.mxu0 0.0
        %541 = vmatprep.subr.mxu0 0.0
        %542 = vmatpush1.msra.mxu0 0.0
        %543 = vmatprep.subr.mxu0 0.0
        %544 = vmatpush1.msra.mxu0 0.0
        %545 = vmatprep.subr.mxu0 0.0
        %546 = vmatpush1.msra.mxu0 0.0
        %547 = vmatprep.subr.mxu0 0.0
        %548 = vmatpush1.msra.mxu0 0.0
        %549 = vmatprep.subr.mxu0 0.0
        %550 = vmatpush1.msra.mxu0 0.0
        %551 = vmatprep.subr.mxu0 0.0
        %552 = vmatpush1.msra.mxu0 0.0
        %553 = vmatprep.subr.mxu0 0.0
        %554 = vmatpush1.msra.mxu0 0.0
        %555 = vmatprep.subr.mxu0 0.0
        %556 = vmatpush1.msra.mxu0 0.0
        %557 = vmatprep.subr.mxu0 0.0
        %558 = vmatpush1.msra.mxu0 0.0
        %559 = vmatprep.subr.mxu0 0.0
        %560 = vmatpush1.msra.mxu0 0.0
        %561 = vmatprep.subr.mxu0 0.0
        %562 = vmatpush1.msra.mxu0 0.0
        %563 = vmatprep.subr.mxu0 0.0
        %564 = vmatpush1.msra.mxu0 0.0
        %565 = vmatprep.subr.mxu0 0.0
        %566 = vmatpush1.msra.mxu0 0.0
        %567 = vmatprep.subr.mxu0 0.0
        %568 = vmatpush1.msra.mxu0 0.0
        %569 = vmatprep.subr.mxu0 0.0
        %570 = vmatpush1.msra.mxu0 0.0
        %571 = vmatprep.subr.mxu0 0.0
        %572 = vmatpush1.msra.mxu0 0.0
        %573 = vmatprep.subr.mxu0 0.0
        %574 = vmatpush1.msra.mxu0 0.0
        %575 = vmatprep.subr.mxu0 0.0
        %576 = vmatpush1.msra.mxu0 0.0
        %577 = vmatprep.subr.mxu0 0.0
        %578 = vmatpush1.msra.mxu0 0.0
        %579 = vmatprep.subr.mxu0 0.0
        %580 = vmatpush1.msra.mxu0 0.0
        %581 = vmatprep.subr.mxu0 0.0
        %582 = vmatpush1.msra.mxu0 0.0
        %583 = vmatprep.subr.mxu0 0.0
        %584 = vmatpush1.msra.mxu0 0.0
        %585 = vmatprep.subr.mxu0 0.0
        %586 = vmatpush1.msra.mxu0 0.0
        %587 = vmatprep.subr.mxu0 0.0
        %588 = vmatpush1.msra.mxu0 0.0
        %589 = vmatprep.subr.mxu0 0.0
        %590 = vmatpush1.msra.mxu0 0.0
        %591 = vmatprep.subr.mxu0 0.0
        %592 = vmatpush1.msra.mxu0 0.0
        %593 = vmatprep.mubr.f32.mxu0 0.0
        %594 = vmatmul.mubr.f32.gmra.mrb[0].mxu0 %v434
        %v595 = vpop.f32.mrb[0].mxu0
        %v596 = vadd.f32 %v430, %v595
        %v597 = vpop.f32.mrb[0].mxu0
        %v598 = vadd.f32 %v430, %v597
        %599 = vdwg.mxu0
        %v600 = vmax.f32 %v596, 0.0
        %v601 = vmax.f32 %v598, 0.0
        %s602 = scalar_lea.vmem [#allocation2], 16
        %603 = vst [vmem:[%s602] sm:$0xff] %v600
        %604 = vst [vmem:[%s602 + $0x8] sm:$0xff] %v601
        %s605 = scalar_lea.vmem %s391, 64 [#allocation3]
        %v606 = vld [vmem:[%s605] sm:$0xff]
        %v607 = vld [vmem:[%s605 + $0x8] sm:$0xff]
        %v608 = vld [vmem:[%s605 + $0x10] sm:$0x1]
        %v609 = vld [vmem:[%s605 + $0x18] sm:$0x1]
        %v611 = vsel %vm436, %v608, 0
        %v614 = vsel %vm436, %v609, 0
        %616 = vmatprep.subr.mxu0 %v607
        %617 = vmatpush1.msra.mxu0 %v606
        %618 = vmatprep.subr.mxu0 %v614
        %619 = vmatpush1.msra.mxu0 %v611
        %620 = vmatprep.subr.mxu0 0.0
        %621 = vmatpush1.msra.mxu0 0.0
        %622 = vmatprep.subr.mxu0 0.0
        %623 = vmatpush1.msra.mxu0 0.0
        %624 = vmatprep.subr.mxu0 0.0
        %625 = vmatpush1.msra.mxu0 0.0
        %626 = vmatprep.subr.mxu0 0.0
        %627 = vmatpush1.msra.mxu0 0.0
        %628 = vmatprep.subr.mxu0 0.0
        %629 = vmatpush1.msra.mxu0 0.0
        %630 = vmatprep.subr.mxu0 0.0
        %631 = vmatpush1.msra.mxu0 0.0
        %632 = vmatprep.subr.mxu0 0.0
        %633 = vmatpush1.msra.mxu0 0.0
        %634 = vmatprep.subr.mxu0 0.0
        %635 = vmatpush1.msra.mxu0 0.0
        %636 = vmatprep.subr.mxu0 0.0
        %637 = vmatpush1.msra.mxu0 0.0
        %638 = vmatprep.subr.mxu0 0.0
        %639 = vmatpush1.msra.mxu0 0.0
        %640 = vmatprep.subr.mxu0 0.0
        %641 = vmatpush1.msra.mxu0 0.0
        %642 = vmatprep.subr.mxu0 0.0
        %643 = vmatpush1.msra.mxu0 0.0
        %644 = vmatprep.subr.mxu0 0.0
        %645 = vmatpush1.msra.mxu0 0.0
        %646 = vmatprep.subr.mxu0 0.0
        %647 = vmatpush1.msra.mxu0 0.0
        %648 = vmatprep.subr.mxu0 0.0
        %649 = vmatpush1.msra.mxu0 0.0
        %650 = vmatprep.subr.mxu0 0.0
        %651 = vmatpush1.msra.mxu0 0.0
        %652 = vmatprep.subr.mxu0 0.0
        %653 = vmatpush1.msra.mxu0 0.0
        %654 = vmatprep.subr.mxu0 0.0
        %655 = vmatpush1.msra.mxu0 0.0
        %656 = vmatprep.subr.mxu0 0.0
        %657 = vmatpush1.msra.mxu0 0.0
        %658 = vmatprep.subr.mxu0 0.0
        %659 = vmatpush1.msra.mxu0 0.0
        %660 = vmatprep.subr.mxu0 0.0
        %661 = vmatpush1.msra.mxu0 0.0
        %662 = vmatprep.subr.mxu0 0.0
        %663 = vmatpush1.msra.mxu0 0.0
        %664 = vmatprep.subr.mxu0 0.0
        %665 = vmatpush1.msra.mxu0 0.0
        %666 = vmatprep.subr.mxu0 0.0
        %667 = vmatpush1.msra.mxu0 0.0
        %668 = vmatprep.subr.mxu0 0.0
        %669 = vmatpush1.msra.mxu0 0.0
        %670 = vmatprep.subr.mxu0 0.0
        %671 = vmatpush1.msra.mxu0 0.0
        %672 = vmatprep.subr.mxu0 0.0
        %673 = vmatpush1.msra.mxu0 0.0
        %674 = vmatprep.subr.mxu0 0.0
        %675 = vmatpush1.msra.mxu0 0.0
        %676 = vmatprep.subr.mxu0 0.0
        %677 = vmatpush1.msra.mxu0 0.0
        %678 = vmatprep.subr.mxu0 0.0
        %679 = vmatpush1.msra.mxu0 0.0
        %680 = vmatprep.mubr.f32.mxu0 0.0
        %681 = vmatmul.mubr.f32.gmra.mrb[0].mxu0 %v434
        %v682 = vpop.f32.mrb[0].mxu0
        %v683 = vadd.f32 %v430, %v682
        %v684 = vpop.f32.mrb[0].mxu0
        %v685 = vadd.f32 %v430, %v684
        %686 = vdwg.mxu0
        %v687 = vmax.f32 %v683, 0.0
        %v688 = vmax.f32 %v685, 0.0
        %s689 = scalar_lea.vmem [#allocation2], 32
        %690 = vst [vmem:[%s689] sm:$0xff] %v687
        %691 = vst [vmem:[%s689 + $0x8] sm:$0xff] %v688
        %s692 = scalar_lea.vmem %s391, 96 [#allocation3]
        %v693 = vld [vmem:[%s692] sm:$0xff]
        %v694 = vld [vmem:[%s692 + $0x8] sm:$0xff]
        %v695 = vld [vmem:[%s692 + $0x10] sm:$0x1]
        %v696 = vld [vmem:[%s692 + $0x18] sm:$0x1]
        %v698 = vsel %vm436, %v695, 0
        %v701 = vsel %vm436, %v696, 0
        %703 = vmatprep.subr.mxu0 %v694
        %704 = vmatpush1.msra.mxu0 %v693
        %705 = vmatprep.subr.mxu0 %v701
        %706 = vmatpush1.msra.mxu0 %v698
        %707 = vmatprep.subr.mxu0 0.0
        %708 = vmatpush1.msra.mxu0 0.0
        %709 = vmatprep.subr.mxu0 0.0
        %710 = vmatpush1.msra.mxu0 0.0
        %711 = vmatprep.subr.mxu0 0.0
        %712 = vmatpush1.msra.mxu0 0.0
        %713 = vmatprep.subr.mxu0 0.0
        %714 = vmatpush1.msra.mxu0 0.0
        %715 = vmatprep.subr.mxu0 0.0
        %716 = vmatpush1.msra.mxu0 0.0
        %717 = vmatprep.subr.mxu0 0.0
        %718 = vmatpush1.msra.mxu0 0.0
        %719 = vmatprep.subr.mxu0 0.0
        %720 = vmatpush1.msra.mxu0 0.0
        %721 = vmatprep.subr.mxu0 0.0
        %722 = vmatpush1.msra.mxu0 0.0
        %723 = vmatprep.subr.mxu0 0.0
        %724 = vmatpush1.msra.mxu0 0.0
        %725 = vmatprep.subr.mxu0 0.0
        %726 = vmatpush1.msra.mxu0 0.0
        %727 = vmatprep.subr.mxu0 0.0
        %728 = vmatpush1.msra.mxu0 0.0
        %729 = vmatprep.subr.mxu0 0.0
        %730 = vmatpush1.msra.mxu0 0.0
        %731 = vmatprep.subr.mxu0 0.0
        %732 = vmatpush1.msra.mxu0 0.0
        %733 = vmatprep.subr.mxu0 0.0
        %734 = vmatpush1.msra.mxu0 0.0
        %735 = vmatprep.subr.mxu0 0.0
        %736 = vmatpush1.msra.mxu0 0.0
        %737 = vmatprep.subr.mxu0 0.0
        %738 = vmatpush1.msra.mxu0 0.0
        %739 = vmatprep.subr.mxu0 0.0
        %740 = vmatpush1.msra.mxu0 0.0
        %741 = vmatprep.subr.mxu0 0.0
        %742 = vmatpush1.msra.mxu0 0.0
        %743 = vmatprep.subr.mxu0 0.0
        %744 = vmatpush1.msra.mxu0 0.0
        %745 = vmatprep.subr.mxu0 0.0
        %746 = vmatpush1.msra.mxu0 0.0
        %747 = vmatprep.subr.mxu0 0.0
        %748 = vmatpush1.msra.mxu0 0.0
        %749 = vmatprep.subr.mxu0 0.0
        %750 = vmatpush1.msra.mxu0 0.0
        %751 = vmatprep.subr.mxu0 0.0
        %752 = vmatpush1.msra.mxu0 0.0
        %753 = vmatprep.subr.mxu0 0.0
        %754 = vmatpush1.msra.mxu0 0.0
        %755 = vmatprep.subr.mxu0 0.0
        %756 = vmatpush1.msra.mxu0 0.0
        %757 = vmatprep.subr.mxu0 0.0
        %758 = vmatpush1.msra.mxu0 0.0
        %759 = vmatprep.subr.mxu0 0.0
        %760 = vmatpush1.msra.mxu0 0.0
        %761 = vmatprep.subr.mxu0 0.0
        %762 = vmatpush1.msra.mxu0 0.0
        %763 = vmatprep.subr.mxu0 0.0
        %764 = vmatpush1.msra.mxu0 0.0
        %765 = vmatprep.subr.mxu0 0.0
        %766 = vmatpush1.msra.mxu0 0.0
        %767 = vmatprep.mubr.f32.mxu0 0.0
        %768 = vmatmul.mubr.f32.gmra.mrb[0].mxu0 %v434
        %v769 = vpop.f32.mrb[0].mxu0
        %v770 = vadd.f32 %v430, %v769
        %v771 = vpop.f32.mrb[0].mxu0
        %v772 = vadd.f32 %v430, %v771
        %773 = vdwg.mxu0
        %v774 = vmax.f32 %v770, 0.0
        %v775 = vmax.f32 %v772, 0.0
        %s776 = scalar_lea.vmem [#allocation2], 48
        %777 = vst [vmem:[%s776] sm:$0xff] %v774
        %778 = vst [vmem:[%s776 + $0x8] sm:$0xff] %v775
        %s779 = scalar_lea.vmem %s391, 128 [#allocation3]
        %v780 = vld [vmem:[%s779] sm:$0xff]
        %v781 = vld [vmem:[%s779 + $0x8] sm:$0xff]
        %v782 = vld [vmem:[%s779 + $0x10] sm:$0x1]
        %v783 = vld [vmem:[%s779 + $0x18] sm:$0x1]
        %v785 = vsel %vm436, %v782, 0
        %v788 = vsel %vm436, %v783, 0
        %790 = vmatprep.subr.mxu0 %v781
        %791 = vmatpush1.msra.mxu0 %v780
        %792 = vmatprep.subr.mxu0 %v788
        %793 = vmatpush1.msra.mxu0 %v785
        %794 = vmatprep.subr.mxu0 0.0
        %795 = vmatpush1.msra.mxu0 0.0
        %796 = vmatprep.subr.mxu0 0.0
        %797 = vmatpush1.msra.mxu0 0.0
        %798 = vmatprep.subr.mxu0 0.0
        %799 = vmatpush1.msra.mxu0 0.0
        %800 = vmatprep.subr.mxu0 0.0
        %801 = vmatpush1.msra.mxu0 0.0
        %802 = vmatprep.subr.mxu0 0.0
        %803 = vmatpush1.msra.mxu0 0.0
        %804 = vmatprep.subr.mxu0 0.0
        %805 = vmatpush1.msra.mxu0 0.0
        %806 = vmatprep.subr.mxu0 0.0
        %807 = vmatpush1.msra.mxu0 0.0
        %808 = vmatprep.subr.mxu0 0.0
        %809 = vmatpush1.msra.mxu0 0.0
        %810 = vmatprep.subr.mxu0 0.0
        %811 = vmatpush1.msra.mxu0 0.0
        %812 = vmatprep.subr.mxu0 0.0
        %813 = vmatpush1.msra.mxu0 0.0
        %814 = vmatprep.subr.mxu0 0.0
        %815 = vmatpush1.msra.mxu0 0.0
        %816 = vmatprep.subr.mxu0 0.0
        %817 = vmatpush1.msra.mxu0 0.0
        %818 = vmatprep.subr.mxu0 0.0
        %819 = vmatpush1.msra.mxu0 0.0
        %820 = vmatprep.subr.mxu0 0.0
        %821 = vmatpush1.msra.mxu0 0.0
        %822 = vmatprep.subr.mxu0 0.0
        %823 = vmatpush1.msra.mxu0 0.0
        %824 = vmatprep.subr.mxu0 0.0
        %825 = vmatpush1.msra.mxu0 0.0
        %826 = vmatprep.subr.mxu0 0.0
        %827 = vmatpush1.msra.mxu0 0.0
        %828 = vmatprep.subr.mxu0 0.0
        %829 = vmatpush1.msra.mxu0 0.0
        %830 = vmatprep.subr.mxu0 0.0
        %831 = vmatpush1.msra.mxu0 0.0
        %832 = vmatprep.subr.mxu0 0.0
        %833 = vmatpush1.msra.mxu0 0.0
        %834 = vmatprep.subr.mxu0 0.0
        %835 = vmatpush1.msra.mxu0 0.0
        %836 = vmatprep.subr.mxu0 0.0
        %837 = vmatpush1.msra.mxu0 0.0
        %838 = vmatprep.subr.mxu0 0.0
        %839 = vmatpush1.msra.mxu0 0.0
        %840 = vmatprep.subr.mxu0 0.0
        %841 = vmatpush1.msra.mxu0 0.0
        %842 = vmatprep.subr.mxu0 0.0
        %843 = vmatpush1.msra.mxu0 0.0
        %844 = vmatprep.subr.mxu0 0.0
        %845 = vmatpush1.msra.mxu0 0.0
        %846 = vmatprep.subr.mxu0 0.0
        %847 = vmatpush1.msra.mxu0 0.0
        %848 = vmatprep.subr.mxu0 0.0
        %849 = vmatpush1.msra.mxu0 0.0
        %850 = vmatprep.subr.mxu0 0.0
        %851 = vmatpush1.msra.mxu0 0.0
        %852 = vmatprep.subr.mxu0 0.0
        %853 = vmatpush1.msra.mxu0 0.0
        %854 = vmatprep.mubr.f32.mxu0 0.0
        %855 = vmatmul.mubr.f32.gmra.mrb[0].mxu0 %v434
        %v856 = vpop.f32.mrb[0].mxu0
        %v857 = vadd.f32 %v430, %v856
        %v858 = vpop.f32.mrb[0].mxu0
        %v859 = vadd.f32 %v430, %v858
        %860 = vdwg.mxu0
        %v861 = vmax.f32 %v857, 0.0
        %v862 = vmax.f32 %v859, 0.0
        %s863 = scalar_lea.vmem [#allocation2], 64
        %864 = vst [vmem:[%s863] sm:$0xff] %v861
        %865 = vst [vmem:[%s863 + $0x8] sm:$0xff] %v862
        %s866 = scalar_lea.vmem %s391, 160 [#allocation3]
        %v867 = vld [vmem:[%s866] sm:$0xff]
        %v868 = vld [vmem:[%s866 + $0x8] sm:$0xff]
        %v869 = vld [vmem:[%s866 + $0x10] sm:$0x1]
        %v870 = vld [vmem:[%s866 + $0x18] sm:$0x1]
        %v872 = vsel %vm436, %v869, 0
        %v875 = vsel %vm436, %v870, 0
        %877 = vmatprep.subr.mxu0 %v868
        %878 = vmatpush1.msra.mxu0 %v867
        %879 = vmatprep.subr.mxu0 %v875
        %880 = vmatpush1.msra.mxu0 %v872
        %881 = vmatprep.subr.mxu0 0.0
        %882 = vmatpush1.msra.mxu0 0.0
        %883 = vmatprep.subr.mxu0 0.0
        %884 = vmatpush1.msra.mxu0 0.0
        %885 = vmatprep.subr.mxu0 0.0
        %886 = vmatpush1.msra.mxu0 0.0
        %887 = vmatprep.subr.mxu0 0.0
        %888 = vmatpush1.msra.mxu0 0.0
        %889 = vmatprep.subr.mxu0 0.0
        %890 = vmatpush1.msra.mxu0 0.0
        %891 = vmatprep.subr.mxu0 0.0
        %892 = vmatpush1.msra.mxu0 0.0
        %893 = vmatprep.subr.mxu0 0.0
        %894 = vmatpush1.msra.mxu0 0.0
        %895 = vmatprep.subr.mxu0 0.0
        %896 = vmatpush1.msra.mxu0 0.0
        %897 = vmatprep.subr.mxu0 0.0
        %898 = vmatpush1.msra.mxu0 0.0
        %899 = vmatprep.subr.mxu0 0.0
        %900 = vmatpush1.msra.mxu0 0.0
        %901 = vmatprep.subr.mxu0 0.0
        %902 = vmatpush1.msra.mxu0 0.0
        %903 = vmatprep.subr.mxu0 0.0
        %904 = vmatpush1.msra.mxu0 0.0
        %905 = vmatprep.subr.mxu0 0.0
        %906 = vmatpush1.msra.mxu0 0.0
        %907 = vmatprep.subr.mxu0 0.0
        %908 = vmatpush1.msra.mxu0 0.0
        %909 = vmatprep.subr.mxu0 0.0
        %910 = vmatpush1.msra.mxu0 0.0
        %911 = vmatprep.subr.mxu0 0.0
        %912 = vmatpush1.msra.mxu0 0.0
        %913 = vmatprep.subr.mxu0 0.0
        %914 = vmatpush1.msra.mxu0 0.0
        %915 = vmatprep.subr.mxu0 0.0
        %916 = vmatpush1.msra.mxu0 0.0
        %917 = vmatprep.subr.mxu0 0.0
        %918 = vmatpush1.msra.mxu0 0.0
        %919 = vmatprep.subr.mxu0 0.0
        %920 = vmatpush1.msra.mxu0 0.0
        %921 = vmatprep.subr.mxu0 0.0
        %922 = vmatpush1.msra.mxu0 0.0
        %923 = vmatprep.subr.mxu0 0.0
        %924 = vmatpush1.msra.mxu0 0.0
        %925 = vmatprep.subr.mxu0 0.0
        %926 = vmatpush1.msra.mxu0 0.0
        %927 = vmatprep.subr.mxu0 0.0
        %928 = vmatpush1.msra.mxu0 0.0
        %929 = vmatprep.subr.mxu0 0.0
        %930 = vmatpush1.msra.mxu0 0.0
        %931 = vmatprep.subr.mxu0 0.0
        %932 = vmatpush1.msra.mxu0 0.0
        %933 = vmatprep.subr.mxu0 0.0
        %934 = vmatpush1.msra.mxu0 0.0
        %935 = vmatprep.subr.mxu0 0.0
        %936 = vmatpush1.msra.mxu0 0.0
        %937 = vmatprep.subr.mxu0 0.0
        %938 = vmatpush1.msra.mxu0 0.0
        %939 = vmatprep.subr.mxu0 0.0
        %940 = vmatpush1.msra.mxu0 0.0
        %941 = vmatprep.mubr.f32.mxu0 0.0
        %942 = vmatmul.mubr.f32.gmra.mrb[0].mxu0 %v434
        %v943 = vpop.f32.mrb[0].mxu0
        %v944 = vadd.f32 %v430, %v943
        %v945 = vpop.f32.mrb[0].mxu0
        %v946 = vadd.f32 %v430, %v945
        %947 = vdwg.mxu0
        %v948 = vmax.f32 %v944, 0.0
        %v949 = vmax.f32 %v946, 0.0
        %s950 = scalar_lea.vmem [#allocation2], 80
        %951 = vst [vmem:[%s950] sm:$0xff] %v948
        %952 = vst [vmem:[%s950 + $0x8] sm:$0xff] %v949
        %s953 = scalar_lea.vmem %s391, 192 [#allocation3]
        %v954 = vld [vmem:[%s953] sm:$0xff]
        %v955 = vld [vmem:[%s953 + $0x8] sm:$0xff]
        %v956 = vld [vmem:[%s953 + $0x10] sm:$0x1]
        %v957 = vld [vmem:[%s953 + $0x18] sm:$0x1]
        %v959 = vsel %vm436, %v956, 0
        %v962 = vsel %vm436, %v957, 0
        %964 = vmatprep.subr.mxu0 %v955
        %965 = vmatpush1.msra.mxu0 %v954
        %966 = vmatprep.subr.mxu0 %v962
        %967 = vmatpush1.msra.mxu0 %v959
        %968 = vmatprep.subr.mxu0 0.0
        %969 = vmatpush1.msra.mxu0 0.0
        %970 = vmatprep.subr.mxu0 0.0
        %971 = vmatpush1.msra.mxu0 0.0
        %972 = vmatprep.subr.mxu0 0.0
        %973 = vmatpush1.msra.mxu0 0.0
        %974 = vmatprep.subr.mxu0 0.0
        %975 = vmatpush1.msra.mxu0 0.0
        %976 = vmatprep.subr.mxu0 0.0
        %977 = vmatpush1.msra.mxu0 0.0
        %978 = vmatprep.subr.mxu0 0.0
        %979 = vmatpush1.msra.mxu0 0.0
        %980 = vmatprep.subr.mxu0 0.0
        %981 = vmatpush1.msra.mxu0 0.0
        %982 = vmatprep.subr.mxu0 0.0
        %983 = vmatpush1.msra.mxu0 0.0
        %984 = vmatprep.subr.mxu0 0.0
        %985 = vmatpush1.msra.mxu0 0.0
        %986 = vmatprep.subr.mxu0 0.0
        %987 = vmatpush1.msra.mxu0 0.0
        %988 = vmatprep.subr.mxu0 0.0
        %989 = vmatpush1.msra.mxu0 0.0
        %990 = vmatprep.subr.mxu0 0.0
        %991 = vmatpush1.msra.mxu0 0.0
        %992 = vmatprep.subr.mxu0 0.0
        %993 = vmatpush1.msra.mxu0 0.0
        %994 = vmatprep.subr.mxu0 0.0
        %995 = vmatpush1.msra.mxu0 0.0
        %996 = vmatprep.subr.mxu0 0.0
        %997 = vmatpush1.msra.mxu0 0.0
        %998 = vmatprep.subr.mxu0 0.0
        %999 = vmatpush1.msra.mxu0 0.0
        %1000 = vmatprep.subr.mxu0 0.0
        %1001 = vmatpush1.msra.mxu0 0.0
        %1002 = vmatprep.subr.mxu0 0.0
        %1003 = vmatpush1.msra.mxu0 0.0
        %1004 = vmatprep.subr.mxu0 0.0
        %1005 = vmatpush1.msra.mxu0 0.0
        %1006 = vmatprep.subr.mxu0 0.0
        %1007 = vmatpush1.msra.mxu0 0.0
        %1008 = vmatprep.subr.mxu0 0.0
        %1009 = vmatpush1.msra.mxu0 0.0
        %1010 = vmatprep.subr.mxu0 0.0
        %1011 = vmatpush1.msra.mxu0 0.0
        %1012 = vmatprep.subr.mxu0 0.0
        %1013 = vmatpush1.msra.mxu0 0.0
        %1014 = vmatprep.subr.mxu0 0.0
        %1015 = vmatpush1.msra.mxu0 0.0
        %1016 = vmatprep.subr.mxu0 0.0
        %1017 = vmatpush1.msra.mxu0 0.0
        %1018 = vmatprep.subr.mxu0 0.0
        %1019 = vmatpush1.msra.mxu0 0.0
        %1020 = vmatprep.subr.mxu0 0.0
        %1021 = vmatpush1.msra.mxu0 0.0
        %1022 = vmatprep.subr.mxu0 0.0
        %1023 = vmatpush1.msra.mxu0 0.0
        %1024 = vmatprep.subr.mxu0 0.0
        %1025 = vmatpush1.msra.mxu0 0.0
        %1026 = vmatprep.subr.mxu0 0.0
        %1027 = vmatpush1.msra.mxu0 0.0
        %1028 = vmatprep.mubr.f32.mxu0 0.0
        %1029 = vmatmul.mubr.f32.gmra.mrb[0].mxu0 %v434
        %v1030 = vpop.f32.mrb[0].mxu0
        %v1031 = vadd.f32 %v430, %v1030
        %v1032 = vpop.f32.mrb[0].mxu0
        %v1033 = vadd.f32 %v430, %v1032
        %1034 = vdwg.mxu0
        %v1035 = vmax.f32 %v1031, 0.0
        %v1036 = vmax.f32 %v1033, 0.0
        %s1037 = scalar_lea.vmem [#allocation2], 96
        %1038 = vst [vmem:[%s1037] sm:$0xff] %v1035
        %1039 = vst [vmem:[%s1037 + $0x8] sm:$0xff] %v1036
        %s1040 = scalar_lea.vmem %s391, 224 [#allocation3]
        %v1041 = vld [vmem:[%s1040] sm:$0xff]
        %v1042 = vld [vmem:[%s1040 + $0x8] sm:$0xff]
        %v1043 = vld [vmem:[%s1040 + $0x10] sm:$0x1]
        %v1044 = vld [vmem:[%s1040 + $0x18] sm:$0x1]
        %v1046 = vsel %vm436, %v1043, 0
        %v1049 = vsel %vm436, %v1044, 0
        %1051 = vmatprep.subr.mxu0 %v1042
        %1052 = vmatpush1.msra.mxu0 %v1041
        %1053 = vmatprep.subr.mxu0 %v1049
        %1054 = vmatpush1.msra.mxu0 %v1046
        %1055 = vmatprep.subr.mxu0 0.0
        %1056 = vmatpush1.msra.mxu0 0.0
        %1057 = vmatprep.subr.mxu0 0.0
        %1058 = vmatpush1.msra.mxu0 0.0
        %1059 = vmatprep.subr.mxu0 0.0
        %1060 = vmatpush1.msra.mxu0 0.0
        %1061 = vmatprep.subr.mxu0 0.0
        %1062 = vmatpush1.msra.mxu0 0.0
        %1063 = vmatprep.subr.mxu0 0.0
        %1064 = vmatpush1.msra.mxu0 0.0
        %1065 = vmatprep.subr.mxu0 0.0
        %1066 = vmatpush1.msra.mxu0 0.0
        %1067 = vmatprep.subr.mxu0 0.0
        %1068 = vmatpush1.msra.mxu0 0.0
        %1069 = vmatprep.subr.mxu0 0.0
        %1070 = vmatpush1.msra.mxu0 0.0
        %1071 = vmatprep.subr.mxu0 0.0
        %1072 = vmatpush1.msra.mxu0 0.0
        %1073 = vmatprep.subr.mxu0 0.0
        %1074 = vmatpush1.msra.mxu0 0.0
        %1075 = vmatprep.subr.mxu0 0.0
        %1076 = vmatpush1.msra.mxu0 0.0
        %1077 = vmatprep.subr.mxu0 0.0
        %1078 = vmatpush1.msra.mxu0 0.0
        %1079 = vmatprep.subr.mxu0 0.0
        %1080 = vmatpush1.msra.mxu0 0.0
        %1081 = vmatprep.subr.mxu0 0.0
        %1082 = vmatpush1.msra.mxu0 0.0
        %1083 = vmatprep.subr.mxu0 0.0
        %1084 = vmatpush1.msra.mxu0 0.0
        %1085 = vmatprep.subr.mxu0 0.0
        %1086 = vmatpush1.msra.mxu0 0.0
        %1087 = vmatprep.subr.mxu0 0.0
        %1088 = vmatpush1.msra.mxu0 0.0
        %1089 = vmatprep.subr.mxu0 0.0
        %1090 = vmatpush1.msra.mxu0 0.0
        %1091 = vmatprep.subr.mxu0 0.0
        %1092 = vmatpush1.msra.mxu0 0.0
        %1093 = vmatprep.subr.mxu0 0.0
        %1094 = vmatpush1.msra.mxu0 0.0
        %1095 = vmatprep.subr.mxu0 0.0
        %1096 = vmatpush1.msra.mxu0 0.0
        %1097 = vmatprep.subr.mxu0 0.0
        %1098 = vmatpush1.msra.mxu0 0.0
        %1099 = vmatprep.subr.mxu0 0.0
        %1100 = vmatpush1.msra.mxu0 0.0
        %1101 = vmatprep.subr.mxu0 0.0
        %1102 = vmatpush1.msra.mxu0 0.0
        %1103 = vmatprep.subr.mxu0 0.0
        %1104 = vmatpush1.msra.mxu0 0.0
        %1105 = vmatprep.subr.mxu0 0.0
        %1106 = vmatpush1.msra.mxu0 0.0
        %1107 = vmatprep.subr.mxu0 0.0
        %1108 = vmatpush1.msra.mxu0 0.0
        %1109 = vmatprep.subr.mxu0 0.0
        %1110 = vmatpush1.msra.mxu0 0.0
        %1111 = vmatprep.subr.mxu0 0.0
        %1112 = vmatpush1.msra.mxu0 0.0
        %1113 = vmatprep.subr.mxu0 0.0
        %1114 = vmatpush1.msra.mxu0 0.0
        %1115 = vmatprep.mubr.f32.mxu0 0.0
        %1116 = vmatmul.mubr.f32.gmra.mrb[0].mxu0 %v434
        %v1117 = vpop.f32.mrb[0].mxu0
        %v1118 = vadd.f32 %v430, %v1117
        %v1119 = vpop.f32.mrb[0].mxu0
        %v1120 = vadd.f32 %v430, %v1119
        %1121 = vdwg.mxu0
        %v1122 = vmax.f32 %v1118, 0.0
        %v1123 = vmax.f32 %v1120, 0.0
        %s1124 = scalar_lea.vmem [#allocation2], 112
        %1125 = vst [vmem:[%s1124] sm:$0xff] %v1122
        %1126 = vst [vmem:[%s1124 + $0x8] sm:$0xff] %v1123
        %s1127 = scalar_lea.vmem %s391, 256 [#allocation3]
        %v1128 = vld [vmem:[%s1127] sm:$0xff]
        %v1129 = vld [vmem:[%s1127 + $0x8] sm:$0xff]
        %v1130 = vld [vmem:[%s1127 + $0x10] sm:$0x1]
        %v1131 = vld [vmem:[%s1127 + $0x18] sm:$0x1]
        %v1133 = vsel %vm436, %v1130, 0
        %v1136 = vsel %vm436, %v1131, 0
        %1138 = vmatprep.subr.mxu0 %v1129
        %1139 = vmatpush1.msra.mxu0 %v1128
        %1140 = vmatprep.subr.mxu0 %v1136
        %1141 = vmatpush1.msra.mxu0 %v1133
        %1142 = vmatprep.subr.mxu0 0.0
        %1143 = vmatpush1.msra.mxu0 0.0
        %1144 = vmatprep.subr.mxu0 0.0
        %1145 = vmatpush1.msra.mxu0 0.0
        %1146 = vmatprep.subr.mxu0 0.0
        %1147 = vmatpush1.msra.mxu0 0.0
        %1148 = vmatprep.subr.mxu0 0.0
        %1149 = vmatpush1.msra.mxu0 0.0
        %1150 = vmatprep.subr.mxu0 0.0
        %1151 = vmatpush1.msra.mxu0 0.0
        %1152 = vmatprep.subr.mxu0 0.0
        %1153 = vmatpush1.msra.mxu0 0.0
        %1154 = vmatprep.subr.mxu0 0.0
        %1155 = vmatpush1.msra.mxu0 0.0
        %1156 = vmatprep.subr.mxu0 0.0
        %1157 = vmatpush1.msra.mxu0 0.0
        %1158 = vmatprep.subr.mxu0 0.0
        %1159 = vmatpush1.msra.mxu0 0.0
        %1160 = vmatprep.subr.mxu0 0.0
        %1161 = vmatpush1.msra.mxu0 0.0
        %1162 = vmatprep.subr.mxu0 0.0
        %1163 = vmatpush1.msra.mxu0 0.0
        %1164 = vmatprep.subr.mxu0 0.0
        %1165 = vmatpush1.msra.mxu0 0.0
        %1166 = vmatprep.subr.mxu0 0.0
        %1167 = vmatpush1.msra.mxu0 0.0
        %1168 = vmatprep.subr.mxu0 0.0
        %1169 = vmatpush1.msra.mxu0 0.0
        %1170 = vmatprep.subr.mxu0 0.0
        %1171 = vmatpush1.msra.mxu0 0.0
        %1172 = vmatprep.subr.mxu0 0.0
        %1173 = vmatpush1.msra.mxu0 0.0
        %1174 = vmatprep.subr.mxu0 0.0
        %1175 = vmatpush1.msra.mxu0 0.0
        %1176 = vmatprep.subr.mxu0 0.0
        %1177 = vmatpush1.msra.mxu0 0.0
        %1178 = vmatprep.subr.mxu0 0.0
        %1179 = vmatpush1.msra.mxu0 0.0
        %1180 = vmatprep.subr.mxu0 0.0
        %1181 = vmatpush1.msra.mxu0 0.0
        %1182 = vmatprep.subr.mxu0 0.0
        %1183 = vmatpush1.msra.mxu0 0.0
        %1184 = vmatprep.subr.mxu0 0.0
        %1185 = vmatpush1.msra.mxu0 0.0
        %1186 = vmatprep.subr.mxu0 0.0
        %1187 = vmatpush1.msra.mxu0 0.0
        %1188 = vmatprep.subr.mxu0 0.0
        %1189 = vmatpush1.msra.mxu0 0.0
        %1190 = vmatprep.subr.mxu0 0.0
        %1191 = vmatpush1.msra.mxu0 0.0
        %1192 = vmatprep.subr.mxu0 0.0
        %1193 = vmatpush1.msra.mxu0 0.0
        %1194 = vmatprep.subr.mxu0 0.0
        %1195 = vmatpush1.msra.mxu0 0.0
        %1196 = vmatprep.subr.mxu0 0.0
        %1197 = vmatpush1.msra.mxu0 0.0
        %1198 = vmatprep.subr.mxu0 0.0
        %1199 = vmatpush1.msra.mxu0 0.0
        %1200 = vmatprep.subr.mxu0 0.0
        %1201 = vmatpush1.msra.mxu0 0.0
        %1202 = vmatprep.mubr.f32.mxu0 0.0
        %1203 = vmatmul.mubr.f32.gmra.mrb[0].mxu0 %v434
        %v1204 = vpop.f32.mrb[0].mxu0
        %v1205 = vadd.f32 %v430, %v1204
        %v1206 = vpop.f32.mrb[0].mxu0
        %v1207 = vadd.f32 %v430, %v1206
        %1208 = vdwg.mxu0
        %v1209 = vmax.f32 %v1205, 0.0
        %v1210 = vmax.f32 %v1207, 0.0
        %s1211 = scalar_lea.vmem [#allocation2], 128
        %1212 = vst [vmem:[%s1211] sm:$0xff] %v1209
        %1213 = vst [vmem:[%s1211 + $0x8] sm:$0xff] %v1210
        %s1214 = scalar_lea.vmem %s391, 288 [#allocation3]
        %v1215 = vld [vmem:[%s1214] sm:$0xff]
        %v1216 = vld [vmem:[%s1214 + $0x8] sm:$0xff]
        %v1217 = vld [vmem:[%s1214 + $0x10] sm:$0x1]
        %v1218 = vld [vmem:[%s1214 + $0x18] sm:$0x1]
        %v1220 = vsel %vm436, %v1217, 0
        %v1223 = vsel %vm436, %v1218, 0
        %1225 = vmatprep.subr.mxu0 %v1216
        %1226 = vmatpush1.msra.mxu0 %v1215
        %1227 = vmatprep.subr.mxu0 %v1223
        %1228 = vmatpush1.msra.mxu0 %v1220
        %1229 = vmatprep.subr.mxu0 0.0
        %1230 = vmatpush1.msra.mxu0 0.0
        %1231 = vmatprep.subr.mxu0 0.0
        %1232 = vmatpush1.msra.mxu0 0.0
        %1233 = vmatprep.subr.mxu0 0.0
        %1234 = vmatpush1.msra.mxu0 0.0
        %1235 = vmatprep.subr.mxu0 0.0
        %1236 = vmatpush1.msra.mxu0 0.0
        %1237 = vmatprep.subr.mxu0 0.0
        %1238 = vmatpush1.msra.mxu0 0.0
        %1239 = vmatprep.subr.mxu0 0.0
        %1240 = vmatpush1.msra.mxu0 0.0
        %1241 = vmatprep.subr.mxu0 0.0
        %1242 = vmatpush1.msra.mxu0 0.0
        %1243 = vmatprep.subr.mxu0 0.0
        %1244 = vmatpush1.msra.mxu0 0.0
        %1245 = vmatprep.subr.mxu0 0.0
        %1246 = vmatpush1.msra.mxu0 0.0
        %1247 = vmatprep.subr.mxu0 0.0
        %1248 = vmatpush1.msra.mxu0 0.0
        %1249 = vmatprep.subr.mxu0 0.0
        %1250 = vmatpush1.msra.mxu0 0.0
        %1251 = vmatprep.subr.mxu0 0.0
        %1252 = vmatpush1.msra.mxu0 0.0
        %1253 = vmatprep.subr.mxu0 0.0
        %1254 = vmatpush1.msra.mxu0 0.0
        %1255 = vmatprep.subr.mxu0 0.0
        %1256 = vmatpush1.msra.mxu0 0.0
        %1257 = vmatprep.subr.mxu0 0.0
        %1258 = vmatpush1.msra.mxu0 0.0
        %1259 = vmatprep.subr.mxu0 0.0
        %1260 = vmatpush1.msra.mxu0 0.0
        %1261 = vmatprep.subr.mxu0 0.0
        %1262 = vmatpush1.msra.mxu0 0.0
        %1263 = vmatprep.subr.mxu0 0.0
        %1264 = vmatpush1.msra.mxu0 0.0
        %1265 = vmatprep.subr.mxu0 0.0
        %1266 = vmatpush1.msra.mxu0 0.0
        %1267 = vmatprep.subr.mxu0 0.0
        %1268 = vmatpush1.msra.mxu0 0.0
        %1269 = vmatprep.subr.mxu0 0.0
        %1270 = vmatpush1.msra.mxu0 0.0
        %1271 = vmatprep.subr.mxu0 0.0
        %1272 = vmatpush1.msra.mxu0 0.0
        %1273 = vmatprep.subr.mxu0 0.0
        %1274 = vmatpush1.msra.mxu0 0.0
        %1275 = vmatprep.subr.mxu0 0.0
        %1276 = vmatpush1.msra.mxu0 0.0
        %1277 = vmatprep.subr.mxu0 0.0
        %1278 = vmatpush1.msra.mxu0 0.0
        %1279 = vmatprep.subr.mxu0 0.0
        %1280 = vmatpush1.msra.mxu0 0.0
        %1281 = vmatprep.subr.mxu0 0.0
        %1282 = vmatpush1.msra.mxu0 0.0
        %1283 = vmatprep.subr.mxu0 0.0
        %1284 = vmatpush1.msra.mxu0 0.0
        %1285 = vmatprep.subr.mxu0 0.0
        %1286 = vmatpush1.msra.mxu0 0.0
        %1287 = vmatprep.subr.mxu0 0.0
        %1288 = vmatpush1.msra.mxu0 0.0
        %1289 = vmatprep.mubr.f32.mxu0 0.0
        %1290 = vmatmul.mubr.f32.gmra.mrb[0].mxu0 %v434
        %v1291 = vpop.f32.mrb[0].mxu0
        %v1292 = vadd.f32 %v430, %v1291
        %v1293 = vpop.f32.mrb[0].mxu0
        %v1294 = vadd.f32 %v430, %v1293
        %1295 = vdwg.mxu0
        %v1296 = vmax.f32 %v1292, 0.0
        %v1297 = vmax.f32 %v1294, 0.0
        %s1298 = scalar_lea.vmem [#allocation2], 144
        %1299 = vst [vmem:[%s1298] sm:$0xff] %v1296
        %1300 = vst [vmem:[%s1298 + $0x8] sm:$0xff] %v1297
        %s1301 = scalar_lea.vmem %s391, 320 [#allocation3]
        %v1302 = vld [vmem:[%s1301] sm:$0xff]
        %v1303 = vld [vmem:[%s1301 + $0x8] sm:$0xff]
        %v1304 = vld [vmem:[%s1301 + $0x10] sm:$0x1]
        %v1305 = vld [vmem:[%s1301 + $0x18] sm:$0x1]
        %v1307 = vsel %vm436, %v1304, 0
        %v1310 = vsel %vm436, %v1305, 0
        %1312 = vmatprep.subr.mxu0 %v1303
        %1313 = vmatpush1.msra.mxu0 %v1302
        %1314 = vmatprep.subr.mxu0 %v1310
        %1315 = vmatpush1.msra.mxu0 %v1307
        %1316 = vmatprep.subr.mxu0 0.0
        %1317 = vmatpush1.msra.mxu0 0.0
        %1318 = vmatprep.subr.mxu0 0.0
        %1319 = vmatpush1.msra.mxu0 0.0
        %1320 = vmatprep.subr.mxu0 0.0
        %1321 = vmatpush1.msra.mxu0 0.0
        %1322 = vmatprep.subr.mxu0 0.0
        %1323 = vmatpush1.msra.mxu0 0.0
        %1324 = vmatprep.subr.mxu0 0.0
        %1325 = vmatpush1.msra.mxu0 0.0
        %1326 = vmatprep.subr.mxu0 0.0
        %1327 = vmatpush1.msra.mxu0 0.0
        %1328 = vmatprep.subr.mxu0 0.0
        %1329 = vmatpush1.msra.mxu0 0.0
        %1330 = vmatprep.subr.mxu0 0.0
        %1331 = vmatpush1.msra.mxu0 0.0
        %1332 = vmatprep.subr.mxu0 0.0
        %1333 = vmatpush1.msra.mxu0 0.0
        %1334 = vmatprep.subr.mxu0 0.0
        %1335 = vmatpush1.msra.mxu0 0.0
        %1336 = vmatprep.subr.mxu0 0.0
        %1337 = vmatpush1.msra.mxu0 0.0
        %1338 = vmatprep.subr.mxu0 0.0
        %1339 = vmatpush1.msra.mxu0 0.0
        %1340 = vmatprep.subr.mxu0 0.0
        %1341 = vmatpush1.msra.mxu0 0.0
        %1342 = vmatprep.subr.mxu0 0.0
        %1343 = vmatpush1.msra.mxu0 0.0
        %1344 = vmatprep.subr.mxu0 0.0
        %1345 = vmatpush1.msra.mxu0 0.0
        %1346 = vmatprep.subr.mxu0 0.0
        %1347 = vmatpush1.msra.mxu0 0.0
        %1348 = vmatprep.subr.mxu0 0.0
        %1349 = vmatpush1.msra.mxu0 0.0
        %1350 = vmatprep.subr.mxu0 0.0
        %1351 = vmatpush1.msra.mxu0 0.0
        %1352 = vmatprep.subr.mxu0 0.0
        %1353 = vmatpush1.msra.mxu0 0.0
        %1354 = vmatprep.subr.mxu0 0.0
        %1355 = vmatpush1.msra.mxu0 0.0
        %1356 = vmatprep.subr.mxu0 0.0
        %1357 = vmatpush1.msra.mxu0 0.0
        %1358 = vmatprep.subr.mxu0 0.0
        %1359 = vmatpush1.msra.mxu0 0.0
        %1360 = vmatprep.subr.mxu0 0.0
        %1361 = vmatpush1.msra.mxu0 0.0
        %1362 = vmatprep.subr.mxu0 0.0
        %1363 = vmatpush1.msra.mxu0 0.0
        %1364 = vmatprep.subr.mxu0 0.0
        %1365 = vmatpush1.msra.mxu0 0.0
        %1366 = vmatprep.subr.mxu0 0.0
        %1367 = vmatpush1.msra.mxu0 0.0
        %1368 = vmatprep.subr.mxu0 0.0
        %1369 = vmatpush1.msra.mxu0 0.0
        %1370 = vmatprep.subr.mxu0 0.0
        %1371 = vmatpush1.msra.mxu0 0.0
        %1372 = vmatprep.subr.mxu0 0.0
        %1373 = vmatpush1.msra.mxu0 0.0
        %1374 = vmatprep.subr.mxu0 0.0
        %1375 = vmatpush1.msra.mxu0 0.0
        %1376 = vmatprep.mubr.f32.mxu0 0.0
        %1377 = vmatmul.mubr.f32.gmra.mrb[0].mxu0 %v434
        %v1378 = vpop.f32.mrb[0].mxu0
        %v1379 = vadd.f32 %v430, %v1378
        %v1380 = vpop.f32.mrb[0].mxu0
        %v1381 = vadd.f32 %v430, %v1380
        %1382 = vdwg.mxu0
        %v1383 = vmax.f32 %v1379, 0.0
        %v1384 = vmax.f32 %v1381, 0.0
        %s1385 = scalar_lea.vmem [#allocation2], 160
        %1386 = vst [vmem:[%s1385] sm:$0xff] %v1383
        %1387 = vst [vmem:[%s1385 + $0x8] sm:$0xff] %v1384
        %s1388 = scalar_lea.vmem %s391, 352 [#allocation3]
        %v1389 = vld [vmem:[%s1388] sm:$0xff]
        %v1390 = vld [vmem:[%s1388 + $0x8] sm:$0xff]
        %v1391 = vld [vmem:[%s1388 + $0x10] sm:$0x1]
        %v1392 = vld [vmem:[%s1388 + $0x18] sm:$0x1]
        %v1394 = vsel %vm436, %v1391, 0
        %v1397 = vsel %vm436, %v1392, 0
        %1399 = vmatprep.subr.mxu0 %v1390
        %1400 = vmatpush1.msra.mxu0 %v1389
        %1401 = vmatprep.subr.mxu0 %v1397
        %1402 = vmatpush1.msra.mxu0 %v1394
        %1403 = vmatprep.subr.mxu0 0.0
        %1404 = vmatpush1.msra.mxu0 0.0
        %1405 = vmatprep.subr.mxu0 0.0
        %1406 = vmatpush1.msra.mxu0 0.0
        %1407 = vmatprep.subr.mxu0 0.0
        %1408 = vmatpush1.msra.mxu0 0.0
        %1409 = vmatprep.subr.mxu0 0.0
        %1410 = vmatpush1.msra.mxu0 0.0
        %1411 = vmatprep.subr.mxu0 0.0
        %1412 = vmatpush1.msra.mxu0 0.0
        %1413 = vmatprep.subr.mxu0 0.0
        %1414 = vmatpush1.msra.mxu0 0.0
        %1415 = vmatprep.subr.mxu0 0.0
        %1416 = vmatpush1.msra.mxu0 0.0
        %1417 = vmatprep.subr.mxu0 0.0
        %1418 = vmatpush1.msra.mxu0 0.0
        %1419 = vmatprep.subr.mxu0 0.0
        %1420 = vmatpush1.msra.mxu0 0.0
        %1421 = vmatprep.subr.mxu0 0.0
        %1422 = vmatpush1.msra.mxu0 0.0
        %1423 = vmatprep.subr.mxu0 0.0
        %1424 = vmatpush1.msra.mxu0 0.0
        %1425 = vmatprep.subr.mxu0 0.0
        %1426 = vmatpush1.msra.mxu0 0.0
        %1427 = vmatprep.subr.mxu0 0.0
        %1428 = vmatpush1.msra.mxu0 0.0
        %1429 = vmatprep.subr.mxu0 0.0
        %1430 = vmatpush1.msra.mxu0 0.0
        %1431 = vmatprep.subr.mxu0 0.0
        %1432 = vmatpush1.msra.mxu0 0.0
        %1433 = vmatprep.subr.mxu0 0.0
        %1434 = vmatpush1.msra.mxu0 0.0
        %1435 = vmatprep.subr.mxu0 0.0
        %1436 = vmatpush1.msra.mxu0 0.0
        %1437 = vmatprep.subr.mxu0 0.0
        %1438 = vmatpush1.msra.mxu0 0.0
        %1439 = vmatprep.subr.mxu0 0.0
        %1440 = vmatpush1.msra.mxu0 0.0
        %1441 = vmatprep.subr.mxu0 0.0
        %1442 = vmatpush1.msra.mxu0 0.0
        %1443 = vmatprep.subr.mxu0 0.0
        %1444 = vmatpush1.msra.mxu0 0.0
        %1445 = vmatprep.subr.mxu0 0.0
        %1446 = vmatpush1.msra.mxu0 0.0
        %1447 = vmatprep.subr.mxu0 0.0
        %1448 = vmatpush1.msra.mxu0 0.0
        %1449 = vmatprep.subr.mxu0 0.0
        %1450 = vmatpush1.msra.mxu0 0.0
        %1451 = vmatprep.subr.mxu0 0.0
        %1452 = vmatpush1.msra.mxu0 0.0
        %1453 = vmatprep.subr.mxu0 0.0
        %1454 = vmatpush1.msra.mxu0 0.0
        %1455 = vmatprep.subr.mxu0 0.0
        %1456 = vmatpush1.msra.mxu0 0.0
        %1457 = vmatprep.subr.mxu0 0.0
        %1458 = vmatpush1.msra.mxu0 0.0
        %1459 = vmatprep.subr.mxu0 0.0
        %1460 = vmatpush1.msra.mxu0 0.0
        %1461 = vmatprep.subr.mxu0 0.0
        %1462 = vmatpush1.msra.mxu0 0.0
        %1463 = vmatprep.mubr.f32.mxu0 0.0
        %1464 = vmatmul.mubr.f32.gmra.mrb[0].mxu0 %v434
        %v1465 = vpop.f32.mrb[0].mxu0
        %v1466 = vadd.f32 %v430, %v1465
        %v1467 = vpop.f32.mrb[0].mxu0
        %v1468 = vadd.f32 %v430, %v1467
        %1469 = vdwg.mxu0
        %v1470 = vmax.f32 %v1466, 0.0
        %v1471 = vmax.f32 %v1468, 0.0
        %s1472 = scalar_lea.vmem [#allocation2], 176
        %1473 = vst [vmem:[%s1472] sm:$0xff] %v1470
        %1474 = vst [vmem:[%s1472 + $0x8] sm:$0xff] %v1471
        %s1475 = scalar_lea.vmem %s391, 384 [#allocation3]
        %v1476 = vld [vmem:[%s1475] sm:$0xff]
        %v1477 = vld [vmem:[%s1475 + $0x8] sm:$0xff]
        %v1478 = vld [vmem:[%s1475 + $0x10] sm:$0x1]
        %v1479 = vld [vmem:[%s1475 + $0x18] sm:$0x1]
        %v1481 = vsel %vm436, %v1478, 0
        %v1484 = vsel %vm436, %v1479, 0
        %1486 = vmatprep.subr.mxu0 %v1477
        %1487 = vmatpush1.msra.mxu0 %v1476
        %1488 = vmatprep.subr.mxu0 %v1484
        %1489 = vmatpush1.msra.mxu0 %v1481
        %1490 = vmatprep.subr.mxu0 0.0
        %1491 = vmatpush1.msra.mxu0 0.0
        %1492 = vmatprep.subr.mxu0 0.0
        %1493 = vmatpush1.msra.mxu0 0.0
        %1494 = vmatprep.subr.mxu0 0.0
        %1495 = vmatpush1.msra.mxu0 0.0
        %1496 = vmatprep.subr.mxu0 0.0
        %1497 = vmatpush1.msra.mxu0 0.0
        %1498 = vmatprep.subr.mxu0 0.0
        %1499 = vmatpush1.msra.mxu0 0.0
        %1500 = vmatprep.subr.mxu0 0.0
        %1501 = vmatpush1.msra.mxu0 0.0
        %1502 = vmatprep.subr.mxu0 0.0
        %1503 = vmatpush1.msra.mxu0 0.0
        %1504 = vmatprep.subr.mxu0 0.0
        %1505 = vmatpush1.msra.mxu0 0.0
        %1506 = vmatprep.subr.mxu0 0.0
        %1507 = vmatpush1.msra.mxu0 0.0
        %1508 = vmatprep.subr.mxu0 0.0
        %1509 = vmatpush1.msra.mxu0 0.0
        %1510 = vmatprep.subr.mxu0 0.0
        %1511 = vmatpush1.msra.mxu0 0.0
        %1512 = vmatprep.subr.mxu0 0.0
        %1513 = vmatpush1.msra.mxu0 0.0
        %1514 = vmatprep.subr.mxu0 0.0
        %1515 = vmatpush1.msra.mxu0 0.0
        %1516 = vmatprep.subr.mxu0 0.0
        %1517 = vmatpush1.msra.mxu0 0.0
        %1518 = vmatprep.subr.mxu0 0.0
        %1519 = vmatpush1.msra.mxu0 0.0
        %1520 = vmatprep.subr.mxu0 0.0
        %1521 = vmatpush1.msra.mxu0 0.0
        %1522 = vmatprep.subr.mxu0 0.0
        %1523 = vmatpush1.msra.mxu0 0.0
        %1524 = vmatprep.subr.mxu0 0.0
        %1525 = vmatpush1.msra.mxu0 0.0
        %1526 = vmatprep.subr.mxu0 0.0
        %1527 = vmatpush1.msra.mxu0 0.0
        %1528 = vmatprep.subr.mxu0 0.0
        %1529 = vmatpush1.msra.mxu0 0.0
        %1530 = vmatprep.subr.mxu0 0.0
        %1531 = vmatpush1.msra.mxu0 0.0
        %1532 = vmatprep.subr.mxu0 0.0
        %1533 = vmatpush1.msra.mxu0 0.0
        %1534 = vmatprep.subr.mxu0 0.0
        %1535 = vmatpush1.msra.mxu0 0.0
        %1536 = vmatprep.subr.mxu0 0.0
        %1537 = vmatpush1.msra.mxu0 0.0
        %1538 = vmatprep.subr.mxu0 0.0
        %1539 = vmatpush1.msra.mxu0 0.0
        %1540 = vmatprep.subr.mxu0 0.0
        %1541 = vmatpush1.msra.mxu0 0.0
        %1542 = vmatprep.subr.mxu0 0.0
        %1543 = vmatpush1.msra.mxu0 0.0
        %1544 = vmatprep.subr.mxu0 0.0
        %1545 = vmatpush1.msra.mxu0 0.0
        %1546 = vmatprep.subr.mxu0 0.0
        %1547 = vmatpush1.msra.mxu0 0.0
        %1548 = vmatprep.subr.mxu0 0.0
        %1549 = vmatpush1.msra.mxu0 0.0
        %1550 = vmatprep.mubr.f32.mxu0 0.0
        %1551 = vmatmul.mubr.f32.gmra.mrb[0].mxu0 %v434
        %v1552 = vpop.f32.mrb[0].mxu0
        %v1553 = vadd.f32 %v430, %v1552
        %v1554 = vpop.f32.mrb[0].mxu0
        %v1555 = vadd.f32 %v430, %v1554
        %1556 = vdwg.mxu0
        %v1557 = vmax.f32 %v1553, 0.0
        %v1558 = vmax.f32 %v1555, 0.0
        %s1559 = scalar_lea.vmem [#allocation2], 192
        %1560 = vst [vmem:[%s1559] sm:$0xff] %v1557
        %1561 = vst [vmem:[%s1559 + $0x8] sm:$0xff] %v1558
        %s1562 = scalar_lea.vmem %s391, 416 [#allocation3]
        %v1563 = vld [vmem:[%s1562] sm:$0xff]
        %v1564 = vld [vmem:[%s1562 + $0x8] sm:$0xff]
        %v1565 = vld [vmem:[%s1562 + $0x10] sm:$0x1]
        %v1566 = vld [vmem:[%s1562 + $0x18] sm:$0x1]
        %v1568 = vsel %vm436, %v1565, 0
        %v1571 = vsel %vm436, %v1566, 0
        %1573 = vmatprep.subr.mxu0 %v1564
        %1574 = vmatpush1.msra.mxu0 %v1563
        %1575 = vmatprep.subr.mxu0 %v1571
        %1576 = vmatpush1.msra.mxu0 %v1568
        %1577 = vmatprep.subr.mxu0 0.0
        %1578 = vmatpush1.msra.mxu0 0.0
        %1579 = vmatprep.subr.mxu0 0.0
        %1580 = vmatpush1.msra.mxu0 0.0
        %1581 = vmatprep.subr.mxu0 0.0
        %1582 = vmatpush1.msra.mxu0 0.0
        %1583 = vmatprep.subr.mxu0 0.0
        %1584 = vmatpush1.msra.mxu0 0.0
        %1585 = vmatprep.subr.mxu0 0.0
        %1586 = vmatpush1.msra.mxu0 0.0
        %1587 = vmatprep.subr.mxu0 0.0
        %1588 = vmatpush1.msra.mxu0 0.0
        %1589 = vmatprep.subr.mxu0 0.0
        %1590 = vmatpush1.msra.mxu0 0.0
        %1591 = vmatprep.subr.mxu0 0.0
        %1592 = vmatpush1.msra.mxu0 0.0
        %1593 = vmatprep.subr.mxu0 0.0
        %1594 = vmatpush1.msra.mxu0 0.0
        %1595 = vmatprep.subr.mxu0 0.0
        %1596 = vmatpush1.msra.mxu0 0.0
        %1597 = vmatprep.subr.mxu0 0.0
        %1598 = vmatpush1.msra.mxu0 0.0
        %1599 = vmatprep.subr.mxu0 0.0
        %1600 = vmatpush1.msra.mxu0 0.0
        %1601 = vmatprep.subr.mxu0 0.0
        %1602 = vmatpush1.msra.mxu0 0.0
        %1603 = vmatprep.subr.mxu0 0.0
        %1604 = vmatpush1.msra.mxu0 0.0
        %1605 = vmatprep.subr.mxu0 0.0
        %1606 = vmatpush1.msra.mxu0 0.0
        %1607 = vmatprep.subr.mxu0 0.0
        %1608 = vmatpush1.msra.mxu0 0.0
        %1609 = vmatprep.subr.mxu0 0.0
        %1610 = vmatpush1.msra.mxu0 0.0
        %1611 = vmatprep.subr.mxu0 0.0
        %1612 = vmatpush1.msra.mxu0 0.0
        %1613 = vmatprep.subr.mxu0 0.0
        %1614 = vmatpush1.msra.mxu0 0.0
        %1615 = vmatprep.subr.mxu0 0.0
        %1616 = vmatpush1.msra.mxu0 0.0
        %1617 = vmatprep.subr.mxu0 0.0
        %1618 = vmatpush1.msra.mxu0 0.0
        %1619 = vmatprep.subr.mxu0 0.0
        %1620 = vmatpush1.msra.mxu0 0.0
        %1621 = vmatprep.subr.mxu0 0.0
        %1622 = vmatpush1.msra.mxu0 0.0
        %1623 = vmatprep.subr.mxu0 0.0
        %1624 = vmatpush1.msra.mxu0 0.0
        %1625 = vmatprep.subr.mxu0 0.0
        %1626 = vmatpush1.msra.mxu0 0.0
        %1627 = vmatprep.subr.mxu0 0.0
        %1628 = vmatpush1.msra.mxu0 0.0
        %1629 = vmatprep.subr.mxu0 0.0
        %1630 = vmatpush1.msra.mxu0 0.0
        %1631 = vmatprep.subr.mxu0 0.0
        %1632 = vmatpush1.msra.mxu0 0.0
        %1633 = vmatprep.subr.mxu0 0.0
        %1634 = vmatpush1.msra.mxu0 0.0
        %1635 = vmatprep.subr.mxu0 0.0
        %1636 = vmatpush1.msra.mxu0 0.0
        %1637 = vmatprep.mubr.f32.mxu0 0.0
        %1638 = vmatmul.mubr.f32.gmra.mrb[0].mxu0 %v434
        %v1639 = vpop.f32.mrb[0].mxu0
        %v1640 = vadd.f32 %v430, %v1639
        %v1641 = vpop.f32.mrb[0].mxu0
        %v1642 = vadd.f32 %v430, %v1641
        %1643 = vdwg.mxu0
        %v1644 = vmax.f32 %v1640, 0.0
        %v1645 = vmax.f32 %v1642, 0.0
        %s1646 = scalar_lea.vmem [#allocation2], 208
        %1647 = vst [vmem:[%s1646] sm:$0xff] %v1644
        %1648 = vst [vmem:[%s1646 + $0x8] sm:$0xff] %v1645
        %s1649 = scalar_lea.vmem %s391, 448 [#allocation3]
        %v1650 = vld [vmem:[%s1649] sm:$0xff]
        %v1651 = vld [vmem:[%s1649 + $0x8] sm:$0xff]
        %v1652 = vld [vmem:[%s1649 + $0x10] sm:$0x1]
        %v1653 = vld [vmem:[%s1649 + $0x18] sm:$0x1]
        %v1655 = vsel %vm436, %v1652, 0
        %v1658 = vsel %vm436, %v1653, 0
        %1660 = vmatprep.subr.mxu0 %v1651
        %1661 = vmatpush1.msra.mxu0 %v1650
        %1662 = vmatprep.subr.mxu0 %v1658
        %1663 = vmatpush1.msra.mxu0 %v1655
        %1664 = vmatprep.subr.mxu0 0.0
        %1665 = vmatpush1.msra.mxu0 0.0
        %1666 = vmatprep.subr.mxu0 0.0
        %1667 = vmatpush1.msra.mxu0 0.0
        %1668 = vmatprep.subr.mxu0 0.0
        %1669 = vmatpush1.msra.mxu0 0.0
        %1670 = vmatprep.subr.mxu0 0.0
        %1671 = vmatpush1.msra.mxu0 0.0
        %1672 = vmatprep.subr.mxu0 0.0
        %1673 = vmatpush1.msra.mxu0 0.0
        %1674 = vmatprep.subr.mxu0 0.0
        %1675 = vmatpush1.msra.mxu0 0.0
        %1676 = vmatprep.subr.mxu0 0.0
        %1677 = vmatpush1.msra.mxu0 0.0
        %1678 = vmatprep.subr.mxu0 0.0
        %1679 = vmatpush1.msra.mxu0 0.0
        %1680 = vmatprep.subr.mxu0 0.0
        %1681 = vmatpush1.msra.mxu0 0.0
        %1682 = vmatprep.subr.mxu0 0.0
        %1683 = vmatpush1.msra.mxu0 0.0
        %1684 = vmatprep.subr.mxu0 0.0
        %1685 = vmatpush1.msra.mxu0 0.0
        %1686 = vmatprep.subr.mxu0 0.0
        %1687 = vmatpush1.msra.mxu0 0.0
        %1688 = vmatprep.subr.mxu0 0.0
        %1689 = vmatpush1.msra.mxu0 0.0
        %1690 = vmatprep.subr.mxu0 0.0
        %1691 = vmatpush1.msra.mxu0 0.0
        %1692 = vmatprep.subr.mxu0 0.0
        %1693 = vmatpush1.msra.mxu0 0.0
        %1694 = vmatprep.subr.mxu0 0.0
        %1695 = vmatpush1.msra.mxu0 0.0
        %1696 = vmatprep.subr.mxu0 0.0
        %1697 = vmatpush1.msra.mxu0 0.0
        %1698 = vmatprep.subr.mxu0 0.0
        %1699 = vmatpush1.msra.mxu0 0.0
        %1700 = vmatprep.subr.mxu0 0.0
        %1701 = vmatpush1.msra.mxu0 0.0
        %1702 = vmatprep.subr.mxu0 0.0
        %1703 = vmatpush1.msra.mxu0 0.0
        %1704 = vmatprep.subr.mxu0 0.0
        %1705 = vmatpush1.msra.mxu0 0.0
        %1706 = vmatprep.subr.mxu0 0.0
        %1707 = vmatpush1.msra.mxu0 0.0
        %1708 = vmatprep.subr.mxu0 0.0
        %1709 = vmatpush1.msra.mxu0 0.0
        %1710 = vmatprep.subr.mxu0 0.0
        %1711 = vmatpush1.msra.mxu0 0.0
        %1712 = vmatprep.subr.mxu0 0.0
        %1713 = vmatpush1.msra.mxu0 0.0
        %1714 = vmatprep.subr.mxu0 0.0
        %1715 = vmatpush1.msra.mxu0 0.0
        %1716 = vmatprep.subr.mxu0 0.0
        %1717 = vmatpush1.msra.mxu0 0.0
        %1718 = vmatprep.subr.mxu0 0.0
        %1719 = vmatpush1.msra.mxu0 0.0
        %1720 = vmatprep.subr.mxu0 0.0
        %1721 = vmatpush1.msra.mxu0 0.0
        %1722 = vmatprep.subr.mxu0 0.0
        %1723 = vmatpush1.msra.mxu0 0.0
        %1724 = vmatprep.mubr.f32.mxu0 0.0
        %1725 = vmatmul.mubr.f32.gmra.mrb[0].mxu0 %v434
        %v1726 = vpop.f32.mrb[0].mxu0
        %v1727 = vadd.f32 %v430, %v1726
        %v1728 = vpop.f32.mrb[0].mxu0
        %v1729 = vadd.f32 %v430, %v1728
        %1730 = vdwg.mxu0
        %v1731 = vmax.f32 %v1727, 0.0
        %v1732 = vmax.f32 %v1729, 0.0
        %s1733 = scalar_lea.vmem [#allocation2], 224
        %1734 = vst [vmem:[%s1733] sm:$0xff] %v1731
        %1735 = vst [vmem:[%s1733 + $0x8] sm:$0xff] %v1732
        %s1736 = scalar_lea.vmem %s391, 480 [#allocation3]
        %v1737 = vld [vmem:[%s1736] sm:$0xff]
        %v1738 = vld [vmem:[%s1736 + $0x8] sm:$0xff]
        %v1739 = vld [vmem:[%s1736 + $0x10] sm:$0x1]
        %v1740 = vld [vmem:[%s1736 + $0x18] sm:$0x1]
        %v1742 = vsel %vm436, %v1739, 0
        %v1745 = vsel %vm436, %v1740, 0
        %1747 = vmatprep.subr.mxu0 %v1738
        %1748 = vmatpush1.msra.mxu0 %v1737
        %1749 = vmatprep.subr.mxu0 %v1745
        %1750 = vmatpush1.msra.mxu0 %v1742
        %1751 = vmatprep.subr.mxu0 0.0
        %1752 = vmatpush1.msra.mxu0 0.0
        %1753 = vmatprep.subr.mxu0 0.0
        %1754 = vmatpush1.msra.mxu0 0.0
        %1755 = vmatprep.subr.mxu0 0.0
        %1756 = vmatpush1.msra.mxu0 0.0
        %1757 = vmatprep.subr.mxu0 0.0
        %1758 = vmatpush1.msra.mxu0 0.0
        %1759 = vmatprep.subr.mxu0 0.0
        %1760 = vmatpush1.msra.mxu0 0.0
        %1761 = vmatprep.subr.mxu0 0.0
        %1762 = vmatpush1.msra.mxu0 0.0
        %1763 = vmatprep.subr.mxu0 0.0
        %1764 = vmatpush1.msra.mxu0 0.0
        %1765 = vmatprep.subr.mxu0 0.0
        %1766 = vmatpush1.msra.mxu0 0.0
        %1767 = vmatprep.subr.mxu0 0.0
        %1768 = vmatpush1.msra.mxu0 0.0
        %1769 = vmatprep.subr.mxu0 0.0
        %1770 = vmatpush1.msra.mxu0 0.0
        %1771 = vmatprep.subr.mxu0 0.0
        %1772 = vmatpush1.msra.mxu0 0.0
        %1773 = vmatprep.subr.mxu0 0.0
        %1774 = vmatpush1.msra.mxu0 0.0
        %1775 = vmatprep.subr.mxu0 0.0
        %1776 = vmatpush1.msra.mxu0 0.0
        %1777 = vmatprep.subr.mxu0 0.0
        %1778 = vmatpush1.msra.mxu0 0.0
        %1779 = vmatprep.subr.mxu0 0.0
        %1780 = vmatpush1.msra.mxu0 0.0
        %1781 = vmatprep.subr.mxu0 0.0
        %1782 = vmatpush1.msra.mxu0 0.0
        %1783 = vmatprep.subr.mxu0 0.0
        %1784 = vmatpush1.msra.mxu0 0.0
        %1785 = vmatprep.subr.mxu0 0.0
        %1786 = vmatpush1.msra.mxu0 0.0
        %1787 = vmatprep.subr.mxu0 0.0
        %1788 = vmatpush1.msra.mxu0 0.0
        %1789 = vmatprep.subr.mxu0 0.0
        %1790 = vmatpush1.msra.mxu0 0.0
        %1791 = vmatprep.subr.mxu0 0.0
        %1792 = vmatpush1.msra.mxu0 0.0
        %1793 = vmatprep.subr.mxu0 0.0
        %1794 = vmatpush1.msra.mxu0 0.0
        %1795 = vmatprep.subr.mxu0 0.0
        %1796 = vmatpush1.msra.mxu0 0.0
        %1797 = vmatprep.subr.mxu0 0.0
        %1798 = vmatpush1.msra.mxu0 0.0
        %1799 = vmatprep.subr.mxu0 0.0
        %1800 = vmatpush1.msra.mxu0 0.0
        %1801 = vmatprep.subr.mxu0 0.0
        %1802 = vmatpush1.msra.mxu0 0.0
        %1803 = vmatprep.subr.mxu0 0.0
        %1804 = vmatpush1.msra.mxu0 0.0
        %1805 = vmatprep.subr.mxu0 0.0
        %1806 = vmatpush1.msra.mxu0 0.0
        %1807 = vmatprep.subr.mxu0 0.0
        %1808 = vmatpush1.msra.mxu0 0.0
        %1809 = vmatprep.subr.mxu0 0.0
        %1810 = vmatpush1.msra.mxu0 0.0
        %1811 = vmatprep.mubr.f32.mxu0 0.0
        %1812 = vmatmul.mubr.f32.gmra.mrb[0].mxu0 %v434
        %v1813 = vpop.f32.mrb[0].mxu0
        %v1814 = vadd.f32 %v430, %v1813
        %v1815 = vpop.f32.mrb[0].mxu0
        %v1816 = vadd.f32 %v430, %v1815
        %1817 = vdwg.mxu0
        %v1818 = vmax.f32 %v1814, 0.0
        %v1819 = vmax.f32 %v1816, 0.0
        %s1820 = scalar_lea.vmem [#allocation2], 240
        %1821 = vst [vmem:[%s1820] sm:$0xff] %v1818
        %1822 = vst [vmem:[%s1820 + $0x8] sm:$0xff] %v1819
        %v1823 = vld [vmem:[%s3] sm:$0xff]
        %v1824 = vld [vmem:[%s3 + $0x8] sm:$0xff]
        %v1825 = vld [vmem:[%s4] sm:$0xff]
        %v1826 = vld [vmem:[%s4 + $0x8] sm:$0xff]
        %v1827 = vld [vmem:[%s1820] sm:$0xff]
        %v1828 = vld [vmem:[%s1820 + $0x8] sm:$0xff]
        %1831 = vrot.lane.b32.xlu0 %v1827, 9
        %v1832 = vpop.permute.xlu0 %1831
        %1833 = vrot.lane.b32.xlu0 %v1828, 9
        %v1834 = vpop.permute.xlu0 %1833
        %v1835 = vsel %vm432, %v1832, %v1834
        %v1838 = vsel %vm432, 0.0, %v1832
        %v1839 = vlaneseq
        %v1840 = vand.u32 %v1839, 127
        %v1841 = vadd.s32 %v1840, 128
        %v1842 = vand.u32 %v1840, 63
        %v1843 = vand.u32 %v1841, 63
        %vm1844 = vcmp.lt.s32.totalorder %v1842, 8
        %vm1845 = vcmp.lt.s32.totalorder %v1843, 8
        %v1846 = vand.u32 %v1840, 7
        %v1847 = vand.u32 %v1841, 7
        %vm1848 = vcmp.eq.s32.totalorder %v1846, 0
        %vm1849 = vcmp.eq.s32.totalorder %v1847, 0
        %vm1850 = vmor %vm1844, %vm1848
        %vm1851 = vmor %vm1845, %vm1849
        %v1852 = vsel %vm1850, 0.0, %v1838
        %v1853 = vsel %vm1851, 0.0, %v1835
        %v1854 = vld [vmem:[%s1559] sm:$0xff]
        %v1855 = vld [vmem:[%s1559 + $0x8] sm:$0xff]
        %1858 = vrot.lane.b32.xlu0 %v1854, 8
        %v1859 = vpop.permute.xlu0 %1858
        %1860 = vrot.lane.b32.xlu0 %v1855, 8
        %v1861 = vpop.permute.xlu0 %1860
        %vm1862 = vcmask 64512
        %v1863 = vsel %vm1862, %v1859, %v1861
        %v1866 = vsel %vm1862, 0.0, %v1859
        %v1867 = vsel %vm1844, 0.0, %v1866
        %v1868 = vsel %vm1845, 0.0, %v1863
        %v1869 = vld [vmem:[%s1646] sm:$0xff]
        %v1870 = vld [vmem:[%s1646 + $0x8] sm:$0xff]
        %1873 = vrot.lane.b32.xlu0 %v1869, 8
        %v1874 = vpop.permute.xlu0 %1873
        %1875 = vrot.lane.b32.xlu0 %v1870, 8
        %v1876 = vpop.permute.xlu0 %1875
        %v1877 = vsel %vm1862, %v1874, %v1876
        %v1880 = vsel %vm1862, 0.0, %v1874
        %v1881 = vsel %vm1844, 0.0, %v1880
        %v1882 = vsel %vm1845, 0.0, %v1877
        %v1883 = vld [vmem:[%s776] sm:$0xff]
        %v1884 = vld [vmem:[%s776 + $0x8] sm:$0xff]
        %1887 = vrot.lane.b32.xlu0 %v1883, 1
        %v1888 = vpop.permute.xlu0 %1887
        %1889 = vrot.lane.b32.xlu0 %v1884, 1
        %v1890 = vpop.permute.xlu0 %1889
        %vm1891 = vcmask 7168
        %v1892 = vsel %vm1891, %v1888, %v1890
        %v1895 = vsel %vm1891, 0.0, %v1888
        %v1896 = vsel %vm1848, 0.0, %v1895
        %v1897 = vsel %vm1849, 0.0, %v1892
        %v1898 = vld [vmem:[#allocation2] sm:$0xff]
        %v1899 = vld [vmem:[#allocation2 + $0x8] sm:$0xff]
        %v1900 = vld [vmem:[%s602] sm:$0xff]
        %v1901 = vld [vmem:[%s602 + $0x8] sm:$0xff]
        %v1902 = vld [vmem:[%s1124] sm:$0xff]
        %v1903 = vld [vmem:[%s1124 + $0x8] sm:$0xff]
        %1906 = vrot.lane.b32.xlu0 %v1902, 1
        %v1907 = vpop.permute.xlu0 %1906
        %1908 = vrot.lane.b32.xlu0 %v1903, 1
        %v1909 = vpop.permute.xlu0 %1908
        %v1910 = vsel %vm1891, %v1907, %v1909
        %v1913 = vsel %vm1891, 0.0, %v1907
        %v1914 = vsel %vm1848, 0.0, %v1913
        %v1915 = vsel %vm1849, 0.0, %v1910
        %v1916 = vld [vmem:[%s863] sm:$0xff]
        %v1917 = vld [vmem:[%s863 + $0x8] sm:$0xff]
        %v1918 = vld [vmem:[%s950] sm:$0xff]
        %v1919 = vld [vmem:[%s950 + $0x8] sm:$0xff]
        %1921 = vset.pattern.permute.xlu0 0
        %1922 = vperm.xlu0 %1921, %v1825
        %v1923 = vpop.permute.xlu0 %1922
        %1926 = vset.pattern.permute.xlu0 0
        %1927 = vperm.xlu0 %1926, %v1826
        %v1928 = vpop.permute.xlu0 %1927
        %vm1930 = vcmask 588800
        %v1932 = vsel %vm1930, %v1823, 0
        %v1935 = vsel %vm1930, %v1824, 0
        %1937 = vmatprep.subr.mxu0 %v1853
        %1938 = vmatpush1.msra.mxu0 %v1852
        %1939 = vmatprep.subr.mxu0 %v1868
        %1940 = vmatpush1.msra.mxu0 %v1867
        %1941 = vmatprep.subr.mxu0 %v1882
        %1942 = vmatpush1.msra.mxu0 %v1881
        %1943 = vmatprep.subr.mxu0 %v1897
        %1944 = vmatpush1.msra.mxu0 %v1896
        %1945 = vmatprep.subr.mxu0 %v1899
        %1946 = vmatpush1.msra.mxu0 %v1898
        %1947 = vmatprep.subr.mxu0 %v1901
        %1948 = vmatpush1.msra.mxu0 %v1900
        %1949 = vmatprep.subr.mxu0 %v1915
        %1950 = vmatpush1.msra.mxu0 %v1914
        %1951 = vmatprep.subr.mxu0 %v1917
        %1952 = vmatpush1.msra.mxu0 %v1916
        %1953 = vmatprep.subr.mxu0 %v1919
        %1954 = vmatpush1.msra.mxu0 %v1918
        %1955 = vmatprep.subr.mxu0 0.0
        %1956 = vmatpush1.msra.mxu0 0.0
        %1957 = vmatprep.subr.mxu0 0.0
        %1958 = vmatpush1.msra.mxu0 0.0
        %1959 = vmatprep.subr.mxu0 0.0
        %1960 = vmatpush1.msra.mxu0 0.0
        %1961 = vmatprep.subr.mxu0 0.0
        %1962 = vmatpush1.msra.mxu0 0.0
        %1963 = vmatprep.subr.mxu0 0.0
        %1964 = vmatpush1.msra.mxu0 0.0
        %1965 = vmatprep.subr.mxu0 0.0
        %1966 = vmatpush1.msra.mxu0 0.0
        %1967 = vmatprep.subr.mxu0 0.0
        %1968 = vmatpush1.msra.mxu0 0.0
        %1969 = vmatprep.subr.mxu0 0.0
        %1970 = vmatpush1.msra.mxu0 0.0
        %1971 = vmatprep.subr.mxu0 0.0
        %1972 = vmatpush1.msra.mxu0 0.0
        %1973 = vmatprep.subr.mxu0 0.0
        %1974 = vmatpush1.msra.mxu0 0.0
        %1975 = vmatprep.subr.mxu0 0.0
        %1976 = vmatpush1.msra.mxu0 0.0
        %1977 = vmatprep.subr.mxu0 0.0
        %1978 = vmatpush1.msra.mxu0 0.0
        %1979 = vmatprep.subr.mxu0 0.0
        %1980 = vmatpush1.msra.mxu0 0.0
        %1981 = vmatprep.subr.mxu0 0.0
        %1982 = vmatpush1.msra.mxu0 0.0
        %1983 = vmatprep.subr.mxu0 0.0
        %1984 = vmatpush1.msra.mxu0 0.0
        %1985 = vmatprep.subr.mxu0 0.0
        %1986 = vmatpush1.msra.mxu0 0.0
        %1987 = vmatprep.subr.mxu0 0.0
        %1988 = vmatpush1.msra.mxu0 0.0
        %1989 = vmatprep.subr.mxu0 0.0
        %1990 = vmatpush1.msra.mxu0 0.0
        %1991 = vmatprep.subr.mxu0 0.0
        %1992 = vmatpush1.msra.mxu0 0.0
        %1993 = vmatprep.subr.mxu0 0.0
        %1994 = vmatpush1.msra.mxu0 0.0
        %1995 = vmatprep.subr.mxu0 0.0
        %1996 = vmatpush1.msra.mxu0 0.0
        %1997 = vmatprep.subr.mxu0 0.0
        %1998 = vmatpush1.msra.mxu0 0.0
        %1999 = vmatprep.subr.mxu0 0.0
        %2000 = vmatpush1.msra.mxu0 0.0
        %2001 = vmatprep.mubr.f32.mxu0 0.0
        %2002 = vmatmul.mubr.f32.gmra.mrb[0].mxu0 %v1932
        %v2003 = vpop.f32.mrb[0].mxu0
        %v2004 = vadd.f32 %v1923, %v2003
        %v2005 = vpop.f32.mrb[0].mxu0
        %v2006 = vadd.f32 %v1923, %v2005
        %2007 = vmatprep.mubr.f32.mxu0 0.0
        %2008 = vmatmul.mubr.f32.gmra.mrb[0].mxu0 %v1935
        %v2009 = vpop.f32.mrb[0].mxu0
        %v2010 = vadd.f32 %v1928, %v2009
        %v2011 = vpop.f32.mrb[0].mxu0
        %v2012 = vadd.f32 %v1928, %v2011
        %2013 = vdwg.mxu0
        %v2014 = vmax.f32 %v2004, 0.0
        %v2015 = vmax.f32 %v2006, 0.0
        %v2016 = vmax.f32 %v2010, 0.0
        %v2017 = vmax.f32 %v2012, 0.0
        %v2018 = vld [vmem:[%s1733] sm:$0xff]
        %v2019 = vld [vmem:[%s1733 + $0x8] sm:$0xff]
        %2022 = vrot.lane.b32.xlu0 %v2018, 8
        %v2023 = vpop.permute.xlu0 %2022
        %2024 = vrot.lane.b32.xlu0 %v2019, 8
        %v2025 = vpop.permute.xlu0 %2024
        %v2026 = vsel %vm1862, %v2023, %v2025
        %v2029 = vsel %vm1862, 0.0, %v2023
        %v2030 = vsel %vm1844, 0.0, %v2029
        %v2031 = vsel %vm1845, 0.0, %v2026
        %2032 = vrot.lane.b32.xlu0 %v1827, 8
        %v2033 = vpop.permute.xlu0 %2032
        %2034 = vrot.lane.b32.xlu0 %v1828, 8
        %v2035 = vpop.permute.xlu0 %2034
        %v2036 = vsel %vm1862, %v2033, %v2035
        %v2039 = vsel %vm1862, 0.0, %v2033
        %v2040 = vsel %vm1844, 0.0, %v2039
        %v2041 = vsel %vm1845, 0.0, %v2036
        %v2042 = vld [vmem:[%s689] sm:$0xff]
        %v2043 = vld [vmem:[%s689 + $0x8] sm:$0xff]
        %v2044 = vld [vmem:[%s1037] sm:$0xff]
        %v2045 = vld [vmem:[%s1037 + $0x8] sm:$0xff]
        %2046 = vmatprep.subr.mxu0 %v1882
        %2047 = vmatpush1.msra.mxu0 %v1881
        %2048 = vmatprep.subr.mxu0 %v2031
        %2049 = vmatpush1.msra.mxu0 %v2030
        %2050 = vmatprep.subr.mxu0 %v2041
        %2051 = vmatpush1.msra.mxu0 %v2040
        %2052 = vmatprep.subr.mxu0 %v1901
        %2053 = vmatpush1.msra.mxu0 %v1900
        %2054 = vmatprep.subr.mxu0 %v2043
        %2055 = vmatpush1.msra.mxu0 %v2042
        %2056 = vmatprep.subr.mxu0 %v1884
        %2057 = vmatpush1.msra.mxu0 %v1883
        %2058 = vmatprep.subr.mxu0 %v1919
        %2059 = vmatpush1.msra.mxu0 %v1918
        %2060 = vmatprep.subr.mxu0 %v2045
        %2061 = vmatpush1.msra.mxu0 %v2044
        %2062 = vmatprep.subr.mxu0 %v1903
        %2063 = vmatpush1.msra.mxu0 %v1902
        %2064 = vmatprep.subr.mxu0 0.0
        %2065 = vmatpush1.msra.mxu0 0.0
        %2066 = vmatprep.subr.mxu0 0.0
        %2067 = vmatpush1.msra.mxu0 0.0
        %2068 = vmatprep.subr.mxu0 0.0
        %2069 = vmatpush1.msra.mxu0 0.0
        %2070 = vmatprep.subr.mxu0 0.0
        %2071 = vmatpush1.msra.mxu0 0.0
        %2072 = vmatprep.subr.mxu0 0.0
        %2073 = vmatpush1.msra.mxu0 0.0
        %2074 = vmatprep.subr.mxu0 0.0
        %2075 = vmatpush1.msra.mxu0 0.0
        %2076 = vmatprep.subr.mxu0 0.0
        %2077 = vmatpush1.msra.mxu0 0.0
        %2078 = vmatprep.subr.mxu0 0.0
        %2079 = vmatpush1.msra.mxu0 0.0
        %2080 = vmatprep.subr.mxu0 0.0
        %2081 = vmatpush1.msra.mxu0 0.0
        %2082 = vmatprep.subr.mxu0 0.0
        %2083 = vmatpush1.msra.mxu0 0.0
        %2084 = vmatprep.subr.mxu0 0.0
        %2085 = vmatpush1.msra.mxu0 0.0
        %2086 = vmatprep.subr.mxu0 0.0
        %2087 = vmatpush1.msra.mxu0 0.0
        %2088 = vmatprep.subr.mxu0 0.0
        %2089 = vmatpush1.msra.mxu0 0.0
        %2090 = vmatprep.subr.mxu0 0.0
        %2091 = vmatpush1.msra.mxu0 0.0
        %2092 = vmatprep.subr.mxu0 0.0
        %2093 = vmatpush1.msra.mxu0 0.0
        %2094 = vmatprep.subr.mxu0 0.0
        %2095 = vmatpush1.msra.mxu0 0.0
        %2096 = vmatprep.subr.mxu0 0.0
        %2097 = vmatpush1.msra.mxu0 0.0
        %2098 = vmatprep.subr.mxu0 0.0
        %2099 = vmatpush1.msra.mxu0 0.0
        %2100 = vmatprep.subr.mxu0 0.0
        %2101 = vmatpush1.msra.mxu0 0.0
        %2102 = vmatprep.subr.mxu0 0.0
        %2103 = vmatpush1.msra.mxu0 0.0
        %2104 = vmatprep.subr.mxu0 0.0
        %2105 = vmatpush1.msra.mxu0 0.0
        %2106 = vmatprep.subr.mxu0 0.0
        %2107 = vmatpush1.msra.mxu0 0.0
        %2108 = vmatprep.subr.mxu0 0.0
        %2109 = vmatpush1.msra.mxu0 0.0
        %2110 = vmatprep.mubr.f32.mxu0 0.0
        %2111 = vmatmul.mubr.f32.gmra.mrb[0].mxu0 %v1932
        %v2112 = vpop.f32.mrb[0].mxu0
        %v2113 = vadd.f32 %v1923, %v2112
        %v2114 = vpop.f32.mrb[0].mxu0
        %v2115 = vadd.f32 %v1923, %v2114
        %2116 = vmatprep.mubr.f32.mxu0 0.0
        %2117 = vmatmul.mubr.f32.gmra.mrb[0].mxu0 %v1935
        %v2118 = vpop.f32.mrb[0].mxu0
        %v2119 = vadd.f32 %v1928, %v2118
        %v2120 = vpop.f32.mrb[0].mxu0
        %v2121 = vadd.f32 %v1928, %v2120
        %2122 = vdwg.mxu0
        %v2123 = vmax.f32 %v2113, 0.0
        %v2124 = vmax.f32 %v2115, 0.0
        %v2125 = vmax.f32 %v2119, 0.0
        %v2126 = vmax.f32 %v2121, 0.0
        %v2127 = vld [vmem:[%s1472] sm:$0xff]
        %v2128 = vld [vmem:[%s1472 + $0x8] sm:$0xff]
        %2131 = vrot.lane.b32.xlu0 %v2127, 1
        %v2132 = vpop.permute.xlu0 %2131
        %2133 = vrot.lane.b32.xlu0 %v2128, 1
        %v2134 = vpop.permute.xlu0 %2133
        %v2135 = vsel %vm1891, %v2132, %v2134
        %v2138 = vsel %vm1891, 0.0, %v2132
        %v2139 = vsel %vm1848, 0.0, %v2138
        %v2140 = vsel %vm1849, 0.0, %v2135
        %v2141 = vld [vmem:[%s1211] sm:$0xff]
        %v2142 = vld [vmem:[%s1211 + $0x8] sm:$0xff]
        %v2143 = vld [vmem:[%s1298] sm:$0xff]
        %v2144 = vld [vmem:[%s1298 + $0x8] sm:$0xff]
        %2145 = vrot.lane.b32.xlu0 %v1827, 1
        %v2146 = vpop.permute.xlu0 %2145
        %2147 = vrot.lane.b32.xlu0 %v1828, 1
        %v2148 = vpop.permute.xlu0 %2147
        %v2149 = vsel %vm1891, %v2146, %v2148
        %v2152 = vsel %vm1891, 0.0, %v2146
        %v2153 = vsel %vm1848, 0.0, %v2152
        %v2154 = vsel %vm1849, 0.0, %v2149
        %2155 = vmatprep.subr.mxu0 %v1915
        %2156 = vmatpush1.msra.mxu0 %v1914
        %2157 = vmatprep.subr.mxu0 %v1917
        %2158 = vmatpush1.msra.mxu0 %v1916
        %2159 = vmatprep.subr.mxu0 %v1919
        %2160 = vmatpush1.msra.mxu0 %v1918
        %2161 = vmatprep.subr.mxu0 %v2140
        %2162 = vmatpush1.msra.mxu0 %v2139
        %2163 = vmatprep.subr.mxu0 %v2142
        %2164 = vmatpush1.msra.mxu0 %v2141
        %2165 = vmatprep.subr.mxu0 %v2144
        %2166 = vmatpush1.msra.mxu0 %v2143
        %2167 = vmatprep.subr.mxu0 %v2154
        %2168 = vmatpush1.msra.mxu0 %v2153
        %2169 = vmatprep.subr.mxu0 %v1855
        %2170 = vmatpush1.msra.mxu0 %v1854
        %2171 = vmatprep.subr.mxu0 %v1870
        %2172 = vmatpush1.msra.mxu0 %v1869
        %2173 = vmatprep.subr.mxu0 0.0
        %2174 = vmatpush1.msra.mxu0 0.0
        %2175 = vmatprep.subr.mxu0 0.0
        %2176 = vmatpush1.msra.mxu0 0.0
        %2177 = vmatprep.subr.mxu0 0.0
        %2178 = vmatpush1.msra.mxu0 0.0
        %2179 = vmatprep.subr.mxu0 0.0
        %2180 = vmatpush1.msra.mxu0 0.0
        %2181 = vmatprep.subr.mxu0 0.0
        %2182 = vmatpush1.msra.mxu0 0.0
        %2183 = vmatprep.subr.mxu0 0.0
        %2184 = vmatpush1.msra.mxu0 0.0
        %2185 = vmatprep.subr.mxu0 0.0
        %2186 = vmatpush1.msra.mxu0 0.0
        %2187 = vmatprep.subr.mxu0 0.0
        %2188 = vmatpush1.msra.mxu0 0.0
        %2189 = vmatprep.subr.mxu0 0.0
        %2190 = vmatpush1.msra.mxu0 0.0
        %2191 = vmatprep.subr.mxu0 0.0
        %2192 = vmatpush1.msra.mxu0 0.0
        %2193 = vmatprep.subr.mxu0 0.0
        %2194 = vmatpush1.msra.mxu0 0.0
        %2195 = vmatprep.subr.mxu0 0.0
        %2196 = vmatpush1.msra.mxu0 0.0
        %2197 = vmatprep.subr.mxu0 0.0
        %2198 = vmatpush1.msra.mxu0 0.0
        %2199 = vmatprep.subr.mxu0 0.0
        %2200 = vmatpush1.msra.mxu0 0.0
        %2201 = vmatprep.subr.mxu0 0.0
        %2202 = vmatpush1.msra.mxu0 0.0
        %2203 = vmatprep.subr.mxu0 0.0
        %2204 = vmatpush1.msra.mxu0 0.0
        %2205 = vmatprep.subr.mxu0 0.0
        %2206 = vmatpush1.msra.mxu0 0.0
        %2207 = vmatprep.subr.mxu0 0.0
        %2208 = vmatpush1.msra.mxu0 0.0
        %2209 = vmatprep.subr.mxu0 0.0
        %2210 = vmatpush1.msra.mxu0 0.0
        %2211 = vmatprep.subr.mxu0 0.0
        %2212 = vmatpush1.msra.mxu0 0.0
        %2213 = vmatprep.subr.mxu0 0.0
        %2214 = vmatpush1.msra.mxu0 0.0
        %2215 = vmatprep.subr.mxu0 0.0
        %2216 = vmatpush1.msra.mxu0 0.0
        %2217 = vmatprep.subr.mxu0 0.0
        %2218 = vmatpush1.msra.mxu0 0.0
        %2219 = vmatprep.mubr.f32.mxu0 0.0
        %2220 = vmatmul.mubr.f32.gmra.mrb[0].mxu0 %v1932
        %v2221 = vpop.f32.mrb[0].mxu0
        %v2222 = vadd.f32 %v1923, %v2221
        %v2223 = vpop.f32.mrb[0].mxu0
        %v2224 = vadd.f32 %v1923, %v2223
        %2225 = vmatprep.mubr.f32.mxu0 0.0
        %2226 = vmatmul.mubr.f32.gmra.mrb[0].mxu0 %v1935
        %v2227 = vpop.f32.mrb[0].mxu0
        %v2228 = vadd.f32 %v1928, %v2227
        %v2229 = vpop.f32.mrb[0].mxu0
        %v2230 = vadd.f32 %v1928, %v2229
        %2231 = vdwg.mxu0
        %v2232 = vmax.f32 %v2222, 0.0
        %v2233 = vmax.f32 %v2224, 0.0
        %v2234 = vmax.f32 %v2228, 0.0
        %v2235 = vmax.f32 %v2230, 0.0
        %v2236 = vld [vmem:[%s1385] sm:$0xff]
        %v2237 = vld [vmem:[%s1385 + $0x8] sm:$0xff]
        %2238 = vmatprep.subr.mxu0 %v1919
        %2239 = vmatpush1.msra.mxu0 %v1918
        %2240 = vmatprep.subr.mxu0 %v2045
        %2241 = vmatpush1.msra.mxu0 %v2044
        %2242 = vmatprep.subr.mxu0 %v1903
        %2243 = vmatpush1.msra.mxu0 %v1902
        %2244 = vmatprep.subr.mxu0 %v2144
        %2245 = vmatpush1.msra.mxu0 %v2143
        %2246 = vmatprep.subr.mxu0 %v2237
        %2247 = vmatpush1.msra.mxu0 %v2236
        %2248 = vmatprep.subr.mxu0 %v2128
        %2249 = vmatpush1.msra.mxu0 %v2127
        %2250 = vmatprep.subr.mxu0 %v1870
        %2251 = vmatpush1.msra.mxu0 %v1869
        %2252 = vmatprep.subr.mxu0 %v2019
        %2253 = vmatpush1.msra.mxu0 %v2018
        %2254 = vmatprep.subr.mxu0 %v1828
        %2255 = vmatpush1.msra.mxu0 %v1827
        %2256 = vmatprep.subr.mxu0 0.0
        %2257 = vmatpush1.msra.mxu0 0.0
        %2258 = vmatprep.subr.mxu0 0.0
        %2259 = vmatpush1.msra.mxu0 0.0
        %2260 = vmatprep.subr.mxu0 0.0
        %2261 = vmatpush1.msra.mxu0 0.0
        %2262 = vmatprep.subr.mxu0 0.0
        %2263 = vmatpush1.msra.mxu0 0.0
        %2264 = vmatprep.subr.mxu0 0.0
        %2265 = vmatpush1.msra.mxu0 0.0
        %2266 = vmatprep.subr.mxu0 0.0
        %2267 = vmatpush1.msra.mxu0 0.0
        %2268 = vmatprep.subr.mxu0 0.0
        %2269 = vmatpush1.msra.mxu0 0.0
        %2270 = vmatprep.subr.mxu0 0.0
        %2271 = vmatpush1.msra.mxu0 0.0
        %2272 = vmatprep.subr.mxu0 0.0
        %2273 = vmatpush1.msra.mxu0 0.0
        %2274 = vmatprep.subr.mxu0 0.0
        %2275 = vmatpush1.msra.mxu0 0.0
        %2276 = vmatprep.subr.mxu0 0.0
        %2277 = vmatpush1.msra.mxu0 0.0
        %2278 = vmatprep.subr.mxu0 0.0
        %2279 = vmatpush1.msra.mxu0 0.0
        %2280 = vmatprep.subr.mxu0 0.0
        %2281 = vmatpush1.msra.mxu0 0.0
        %2282 = vmatprep.subr.mxu0 0.0
        %2283 = vmatpush1.msra.mxu0 0.0
        %2284 = vmatprep.subr.mxu0 0.0
        %2285 = vmatpush1.msra.mxu0 0.0
        %2286 = vmatprep.subr.mxu0 0.0
        %2287 = vmatpush1.msra.mxu0 0.0
        %2288 = vmatprep.subr.mxu0 0.0
        %2289 = vmatpush1.msra.mxu0 0.0
        %2290 = vmatprep.subr.mxu0 0.0
        %2291 = vmatpush1.msra.mxu0 0.0
        %2292 = vmatprep.subr.mxu0 0.0
        %2293 = vmatpush1.msra.mxu0 0.0
        %2294 = vmatprep.subr.mxu0 0.0
        %2295 = vmatpush1.msra.mxu0 0.0
        %2296 = vmatprep.subr.mxu0 0.0
        %2297 = vmatpush1.msra.mxu0 0.0
        %2298 = vmatprep.subr.mxu0 0.0
        %2299 = vmatpush1.msra.mxu0 0.0
        %2300 = vmatprep.subr.mxu0 0.0
        %2301 = vmatpush1.msra.mxu0 0.0
        %2302 = vmatprep.mubr.f32.mxu0 0.0
        %2303 = vmatmul.mubr.f32.gmra.mrb[0].mxu0 %v1932
        %v2304 = vpop.f32.mrb[0].mxu0
        %v2305 = vadd.f32 %v1923, %v2304
        %v2306 = vpop.f32.mrb[0].mxu0
        %v2307 = vadd.f32 %v1923, %v2306
        %2308 = vmatprep.mubr.f32.mxu0 0.0
        %2309 = vmatmul.mubr.f32.gmra.mrb[0].mxu0 %v1935
        %v2310 = vpop.f32.mrb[0].mxu0
        %v2311 = vadd.f32 %v1928, %v2310
        %v2312 = vpop.f32.mrb[0].mxu0
        %v2313 = vadd.f32 %v1928, %v2312
        %2314 = vdwg.mxu0
        %v2315 = vmax.f32 %v2305, 0.0
        %v2316 = vmax.f32 %v2307, 0.0
        %v2317 = vmax.f32 %v2311, 0.0
        %v2318 = vmax.f32 %v2313, 0.0
        %2323 = vrot.lane.b32.xlu0 %v2315, 9
        %v2324 = vpop.permute.xlu0 %2323
        %2325 = vrot.lane.b32.xlu0 %v2316, 9
        %v2326 = vpop.permute.xlu0 %2325
        %2327 = vrot.lane.b32.xlu0 %v2317, 9
        %v2328 = vpop.permute.xlu0 %2327
        %2329 = vrot.lane.b32.xlu0 %v2318, 9
        %v2330 = vpop.permute.xlu0 %2329
        %v2331 = vsel %vm432, %v2324, %v2326
        %v2332 = vsel %vm432, %v2328, %v2330
        %v2337 = vsel %vm432, 0.0, %v2324
        %v2338 = vsel %vm432, 0.0, %v2328
        %v2339 = vsel %vm1850, 0.0, %v2337
        %v2340 = vsel %vm1851, 0.0, %v2331
        %v2341 = vsel %vm1850, 0.0, %v2338
        %v2342 = vsel %vm1851, 0.0, %v2332
        %2347 = vrot.lane.b32.xlu0 %v2232, 8
        %v2348 = vpop.permute.xlu0 %2347
        %2349 = vrot.lane.b32.xlu0 %v2233, 8
        %v2350 = vpop.permute.xlu0 %2349
        %2351 = vrot.lane.b32.xlu0 %v2234, 8
        %v2352 = vpop.permute.xlu0 %2351
        %2353 = vrot.lane.b32.xlu0 %v2235, 8
        %v2354 = vpop.permute.xlu0 %2353
        %v2355 = vsel %vm1862, %v2348, %v2350
        %v2356 = vsel %vm1862, %v2352, %v2354
        %v2361 = vsel %vm1862, 0.0, %v2348
        %v2362 = vsel %vm1862, 0.0, %v2352
        %v2363 = vsel %vm1844, 0.0, %v2361
        %v2364 = vsel %vm1845, 0.0, %v2355
        %v2365 = vsel %vm1844, 0.0, %v2362
        %v2366 = vsel %vm1845, 0.0, %v2356
        %2367 = vrot.lane.b32.xlu0 %v2315, 8
        %v2368 = vpop.permute.xlu0 %2367
        %2369 = vrot.lane.b32.xlu0 %v2316, 8
        %v2370 = vpop.permute.xlu0 %2369
        %2371 = vrot.lane.b32.xlu0 %v2317, 8
        %v2372 = vpop.permute.xlu0 %2371
        %2373 = vrot.lane.b32.xlu0 %v2318, 8
        %v2374 = vpop.permute.xlu0 %2373
        %v2375 = vsel %vm1862, %v2368, %v2370
        %v2376 = vsel %vm1862, %v2372, %v2374
        %v2381 = vsel %vm1862, 0.0, %v2368
        %v2382 = vsel %vm1862, 0.0, %v2372
        %v2383 = vsel %vm1844, 0.0, %v2381
        %v2384 = vsel %vm1845, 0.0, %v2375
        %v2385 = vsel %vm1844, 0.0, %v2382
        %v2386 = vsel %vm1845, 0.0, %v2376
        %2391 = vrot.lane.b32.xlu0 %v2123, 1
        %v2392 = vpop.permute.xlu0 %2391
        %2393 = vrot.lane.b32.xlu0 %v2124, 1
        %v2394 = vpop.permute.xlu0 %2393
        %2395 = vrot.lane.b32.xlu0 %v2125, 1
        %v2396 = vpop.permute.xlu0 %2395
        %2397 = vrot.lane.b32.xlu0 %v2126, 1
        %v2398 = vpop.permute.xlu0 %2397
        %v2399 = vsel %vm1891, %v2392, %v2394
        %v2400 = vsel %vm1891, %v2396, %v2398
        %v2405 = vsel %vm1891, 0.0, %v2392
        %v2406 = vsel %vm1891, 0.0, %v2396
        %v2407 = vsel %vm1848, 0.0, %v2405
        %v2408 = vsel %vm1849, 0.0, %v2399
        %v2409 = vsel %vm1848, 0.0, %v2406
        %v2410 = vsel %vm1849, 0.0, %v2400
        %2411 = vrot.lane.b32.xlu0 %v2315, 1
        %v2412 = vpop.permute.xlu0 %2411
        %2413 = vrot.lane.b32.xlu0 %v2316, 1
        %v2414 = vpop.permute.xlu0 %2413
        %2415 = vrot.lane.b32.xlu0 %v2317, 1
        %v2416 = vpop.permute.xlu0 %2415
        %2417 = vrot.lane.b32.xlu0 %v2318, 1
        %v2418 = vpop.permute.xlu0 %2417
        %v2419 = vsel %vm1891, %v2412, %v2414
        %v2420 = vsel %vm1891, %v2416, %v2418
        %v2425 = vsel %vm1891, 0.0, %v2412
        %v2426 = vsel %vm1891, 0.0, %v2416
        %v2427 = vsel %vm1848, 0.0, %v2425
        %v2428 = vsel %vm1849, 0.0, %v2419
        %v2429 = vsel %vm1848, 0.0, %v2426
        %v2430 = vsel %vm1849, 0.0, %v2420
        %v2431 = vld [vmem:[%s5] sm:$0xff]
        %v2432 = vld [vmem:[%s5 + $0x8] sm:$0xff]
        %v2433 = vld [vmem:[%s5 + $0x10] sm:$0xff]
        %v2434 = vld [vmem:[%s5 + $0x18] sm:$0xff]
        %v2435 = vld [vmem:[%s5 + $0x20] sm:$0xff]
        %v2436 = vld [vmem:[%s5 + $0x28] sm:$0xff]
        %v2437 = vld [vmem:[%s5 + $0x30] sm:$0xff]
        %v2438 = vld [vmem:[%s5 + $0x38] sm:$0xff]
        %v2439 = vld [vmem:[%s6] sm:$0xff]
        %v2440 = vld [vmem:[%s6 + $0x8] sm:$0xff]
        %v2441 = vld [vmem:[%s6 + $0x10] sm:$0xff]
        %v2442 = vld [vmem:[%s6 + $0x18] sm:$0xff]
        %2444 = vset.pattern.permute.xlu0 0
        %2445 = vperm.xlu0 %2444, %v2439
        %v2446 = vpop.permute.xlu0 %2445
        %2449 = vset.pattern.permute.xlu0 0
        %2450 = vperm.xlu0 %2449, %v2440
        %v2451 = vpop.permute.xlu0 %2450
        %2454 = vset.pattern.permute.xlu0 0
        %2455 = vperm.xlu0 %2454, %v2441
        %v2456 = vpop.permute.xlu0 %2455
        %2459 = vset.pattern.permute.xlu0 0
        %2460 = vperm.xlu0 %2459, %v2442
        %v2461 = vpop.permute.xlu0 %2460
        %vm2463 = vcmask 130048
        %v2465 = vsel %vm2463, %v2432, 0
        %v2468 = vsel %vm2463, %v2434, 0
        %v2471 = vsel %vm2463, %v2436, 0
        %v2474 = vsel %vm2463, %v2438, 0
        %2476 = vmatprep.subr.mxu0 %v2340
        %2477 = vmatpush1.msra.mxu0 %v2339
        %2478 = vmatprep.subr.mxu0 %v2342
        %2479 = vmatpush1.msra.mxu0 %v2341
        %2480 = vmatprep.subr.mxu0 %v2364
        %2481 = vmatpush1.msra.mxu0 %v2363
        %2482 = vmatprep.subr.mxu0 %v2366
        %2483 = vmatpush1.msra.mxu0 %v2365
        %2484 = vmatprep.subr.mxu0 %v2384
        %2485 = vmatpush1.msra.mxu0 %v2383
        %2486 = vmatprep.subr.mxu0 %v2386
        %2487 = vmatpush1.msra.mxu0 %v2385
        %2488 = vmatprep.subr.mxu0 %v2408
        %2489 = vmatpush1.msra.mxu0 %v2407
        %2490 = vmatprep.subr.mxu0 %v2410
        %2491 = vmatpush1.msra.mxu0 %v2409
        %2492 = vmatprep.subr.mxu0 %v2015
        %2493 = vmatpush1.msra.mxu0 %v2014
        %2494 = vmatprep.subr.mxu0 %v2017
        %2495 = vmatpush1.msra.mxu0 %v2016
        %2496 = vmatprep.subr.mxu0 %v2124
        %2497 = vmatpush1.msra.mxu0 %v2123
        %2498 = vmatprep.subr.mxu0 %v2126
        %2499 = vmatpush1.msra.mxu0 %v2125
        %2500 = vmatprep.subr.mxu0 %v2428
        %2501 = vmatpush1.msra.mxu0 %v2427
        %2502 = vmatprep.subr.mxu0 %v2430
        %2503 = vmatpush1.msra.mxu0 %v2429
        %2504 = vmatprep.subr.mxu0 %v2233
        %2505 = vmatpush1.msra.mxu0 %v2232
        %2506 = vmatprep.subr.mxu0 %v2235
        %2507 = vmatpush1.msra.mxu0 %v2234
        %2508 = vmatprep.subr.mxu0 %v2316
        %2509 = vmatpush1.msra.mxu0 %v2315
        %2510 = vmatprep.subr.mxu0 %v2318
        %2511 = vmatpush1.msra.mxu0 %v2317
        %2512 = vmatprep.subr.mxu0 0.0
        %2513 = vmatpush1.msra.mxu0 0.0
        %2514 = vmatprep.subr.mxu0 0.0
        %2515 = vmatpush1.msra.mxu0 0.0
        %2516 = vmatprep.subr.mxu0 0.0
        %2517 = vmatpush1.msra.mxu0 0.0
        %2518 = vmatprep.subr.mxu0 0.0
        %2519 = vmatpush1.msra.mxu0 0.0
        %2520 = vmatprep.subr.mxu0 0.0
        %2521 = vmatpush1.msra.mxu0 0.0
        %2522 = vmatprep.subr.mxu0 0.0
        %2523 = vmatpush1.msra.mxu0 0.0
        %2524 = vmatprep.subr.mxu0 0.0
        %2525 = vmatpush1.msra.mxu0 0.0
        %2526 = vmatprep.subr.mxu0 0.0
        %2527 = vmatpush1.msra.mxu0 0.0
        %2528 = vmatprep.subr.mxu0 0.0
        %2529 = vmatpush1.msra.mxu0 0.0
        %2530 = vmatprep.subr.mxu0 0.0
        %2531 = vmatpush1.msra.mxu0 0.0
        %2532 = vmatprep.subr.mxu0 0.0
        %2533 = vmatpush1.msra.mxu0 0.0
        %2534 = vmatprep.subr.mxu0 0.0
        %2535 = vmatpush1.msra.mxu0 0.0
        %2536 = vmatprep.subr.mxu0 0.0
        %2537 = vmatpush1.msra.mxu0 0.0
        %2538 = vmatprep.subr.mxu0 0.0
        %2539 = vmatpush1.msra.mxu0 0.0
        %2540 = vmatprep.mubr.f32.mxu0 %v2465
        %2541 = vmatmul.mubr.f32.gmra.mrb[0].mxu0 %v2431
        %v2542 = vpop.f32.mrb[0].mxu0
        %v2543 = vadd.f32 %v2446, %v2542
        %v2544 = vpop.f32.mrb[0].mxu0
        %v2545 = vadd.f32 %v2446, %v2544
        %2546 = vmatprep.mubr.f32.mxu0 %v2468
        %2547 = vmatmul.mubr.f32.gmra.mrb[0].mxu0 %v2433
        %v2548 = vpop.f32.mrb[0].mxu0
        %v2549 = vadd.f32 %v2451, %v2548
        %v2550 = vpop.f32.mrb[0].mxu0
        %v2551 = vadd.f32 %v2451, %v2550
        %2552 = vmatprep.mubr.f32.mxu0 %v2471
        %2553 = vmatmul.mubr.f32.gmra.mrb[0].mxu0 %v2435
        %v2554 = vpop.f32.mrb[0].mxu0
        %v2555 = vadd.f32 %v2456, %v2554
        %v2556 = vpop.f32.mrb[0].mxu0
        %v2557 = vadd.f32 %v2456, %v2556
        %2558 = vmatprep.mubr.f32.mxu0 %v2474
        %2559 = vmatmul.mubr.f32.gmra.mrb[0].mxu0 %v2437
        %v2560 = vpop.f32.mrb[0].mxu0
        %v2561 = vadd.f32 %v2461, %v2560
        %v2562 = vpop.f32.mrb[0].mxu0
        %v2563 = vadd.f32 %v2461, %v2562
        %2564 = vdwg.mxu0
        %v2565 = vmax.f32 %v2543, 0.0
        %v2566 = vmax.f32 %v2545, 0.0
        %v2567 = vmax.f32 %v2549, 0.0
        %v2568 = vmax.f32 %v2551, 0.0
        %v2569 = vmax.f32 %v2555, 0.0
        %v2570 = vmax.f32 %v2557, 0.0
        %v2571 = vmax.f32 %v2561, 0.0
        %v2572 = vmax.f32 %v2563, 0.0
        %v2573 = vpack.c.bf16 %v2567, %v2565
        %v2574 = vpack.c.bf16 %v2568, %v2566
        %v2575 = vpack.c.bf16 %v2571, %v2569
        %v2576 = vpack.c.bf16 %v2572, %v2570
        %v2581 = vunpack.c.l.b16 %v2573
        %v2582 = vunpack.c.l.b16 %v2574
        %v2583 = vunpack.c.h.b16 %v2573
        %v2584 = vunpack.c.h.b16 %v2574
        %v2585 = vunpack.c.l.b16 %v2575
        %v2586 = vunpack.c.l.b16 %v2576
        %v2587 = vunpack.c.h.b16 %v2575
        %v2588 = vunpack.c.h.b16 %v2576
        %v2589 = vpack.c.b16 %v2582, %v2581
        %v2590 = vpack.c.b16 %v2584, %v2583
        %v2591 = vpack.c.b16 %v2586, %v2585
        %v2592 = vpack.c.b16 %v2588, %v2587
        %2597 = vst [vmem:[%s418] sm:$0xff] %v2589
        %2598 = vst [vmem:[%s418 + $0x8] sm:$0xff] %v2590
        %2599 = vst [vmem:[%s418 + $0x10] sm:$0xff] %v2591
        %2600 = vst [vmem:[%s418 + $0x18] sm:$0xff] %v2592
        %s2601 = sand.u32 %s178, 1
        %s2602 = sand.u32 %s178, 1
        %s2603 = smul.addr %s2602, 32
        %s2604 = scalar_lea.vmem [#allocation4], %s2603
        // Predicated region
        $region72: #{conv_abstraction_forward.2} parent=66 // pred_check
          %p2605 = pneg %p188
        $region73: #{conv_abstraction_forward.2} parent=66 // pred_check_branch
          %2607 = sbr.rel (%p2605) target = $region75
        $region74: #{conv_abstraction_forward.2} parent=66 // pred_region
          %s2608 = smul.u32 2, %s18
          %s2609 = smul.addr %s2608, 4
          %s2610 = scalar_lea.vmem %s7, %s2609
          // Predicated region
          $region76: #{conv_abstraction_forward.2} parent=74 // pred_check
            _
          $region77: #{conv_abstraction_forward.2} parent=74 // pred_check_branch
            %2612 = sbr.rel (0) target = $region79
          $region78: #{conv_abstraction_forward.2} parent=74 // pred_region
            // Predicated region
            $region80: #{conv_abstraction_forward.2} parent=78 // pred_check
              _
            $region81: #{conv_abstraction_forward.2} parent=78 // pred_check_branch
              %2614 = sbr.rel (0) target = $region83
            $region82: #{conv_abstraction_forward.2} parent=78 // pred_region
              // Predicated region
              $region95: #{conv_abstraction_forward.2} parent=82 // pred_check
                _
              $region96: #{conv_abstraction_forward.2} parent=82 // pred_check_branch
                %2635 = sbr.rel (0) target = $region98
              $region97: #{conv_abstraction_forward.2} parent=82 // pred_region
                loop: start=0, step=1, limit=1
                $region99: #{conv_abstraction_forward.2} parent=97 // loop_pre_header
                  _
                $region100: #{conv_abstraction_forward.2} parent=97 // loop_header
                  %s2637 = sphi 0, %s2641
                  %p2638 = scmp.ge.s32.totalorder %s2637, 1
                  %s2642 = sphi %s2604, %s2604
                  %s2643 = sphi %s2610, %s2610
                $region101: #{conv_abstraction_forward.2} parent=97 // loop_header_branch
                  %2640 = sbr.rel (%p2638) target = $region105
                $region102: #{conv_abstraction_forward.2} parent=97 // loop_body
                  %v2644 = vld [vmem:[%s2642] sm:$0xff]
                  %2645 = vst [vmem:[%s2643] sm:$0xff] %v2644
                  %v2646 = vld [vmem:[%s2642 + $0x8] sm:$0xff]
                  %2647 = vst [vmem:[%s2643 + $0x10] sm:$0xff] %v2646
                  %v2648 = vld [vmem:[%s2642 + $0x10] sm:$0xff]
                  %2649 = vst [vmem:[%s2643 + $0x20] sm:$0xff] %v2648
                  %v2650 = vld [vmem:[%s2642 + $0x18] sm:$0xff]
                  %2651 = vst [vmem:[%s2643 + $0x30] sm:$0xff] %v2650
                $region103: #{conv_abstraction_forward.2} parent=97 // loop_footer
                  %s2641 = sadd.s32 1, %s2637
                $region104: #{conv_abstraction_forward.2} parent=97 // loop_footer_branch
                  %2636 = sbr.rel target = $region100
                $region105: #{conv_abstraction_forward.2} parent=97 // loop_exit
                  _
              $region98: #{conv_abstraction_forward.2} parent=82 // pred_fallthru
                _
              // Predicated region
              $region106: #{conv_abstraction_forward.2} parent=82 // pred_check
                _
              $region107: #{conv_abstraction_forward.2} parent=82 // pred_check_branch
                %2653 = sbr.rel target = $region109
              $region108: #{conv_abstraction_forward.2} parent=82 // pred_region
                _
              $region109: #{conv_abstraction_forward.2} parent=82 // pred_fallthru
                _
            $region83: #{conv_abstraction_forward.2} parent=78 // pred_fallthru
              _
            // Predicated region
            $region84: #{conv_abstraction_forward.2} parent=78 // pred_check
              _
            $region85: #{conv_abstraction_forward.2} parent=78 // pred_check_branch
              %2616 = sbr.rel target = $region87
            $region86: #{conv_abstraction_forward.2} parent=78 // pred_region
              loop: start=0, step=1, limit=1
              $region88: #{conv_abstraction_forward.2} parent=86 // loop_pre_header
                _
              $region89: #{conv_abstraction_forward.2} parent=86 // loop_header
                %s2619 = sphi 0, %s2623
                %p2620 = scmp.ge.s32.totalorder %s2619, 1
                %s2624 = sphi %s2604, %s2604
                %s2625 = sphi %s2610, %s2610
              $region90: #{conv_abstraction_forward.2} parent=86 // loop_header_branch
                %2622 = sbr.rel (%p2620) target = $region94
              $region91: #{conv_abstraction_forward.2} parent=86 // loop_body
                %v2626 = vld [vmem:[%s2624] sm:$0xff]
                %2627 = vst [vmem:[%s2625] sm:$0xff] %v2626
                %v2628 = vld [vmem:[%s2624 + $0x8] sm:$0xff]
                %2629 = vst [vmem:[%s2625 + $0x10] sm:$0xff] %v2628
                %v2630 = vld [vmem:[%s2624 + $0x10] sm:$0xff]
                %2631 = vst [vmem:[%s2625 + $0x20] sm:$0xff] %v2630
                %v2632 = vld [vmem:[%s2624 + $0x18] sm:$0xff]
                %2633 = vst [vmem:[%s2625 + $0x30] sm:$0xff] %v2632
              $region92: #{conv_abstraction_forward.2} parent=86 // loop_footer
                %s2623 = sadd.s32 1, %s2619
              $region93: #{conv_abstraction_forward.2} parent=86 // loop_footer_branch
                %2618 = sbr.rel target = $region89
              $region94: #{conv_abstraction_forward.2} parent=86 // loop_exit
                _
            $region87: #{conv_abstraction_forward.2} parent=78 // pred_fallthru
              _
          $region79: #{conv_abstraction_forward.2} parent=74 // pred_fallthru
            _
          %2654 = vnop
        $region75: #{conv_abstraction_forward.2} parent=66 // pred_fallthru
          _
      $region67: #{conv_abstraction_forward.2} parent=5 // pred_fallthru
        _
      %p2655 = scmp.le.s32.totalorder 2, %s13
      // Predicated region
      $region110: #{conv_abstraction_forward.2} parent=5 // pred_check
        %p2656 = pneg %p2655
      $region111: #{conv_abstraction_forward.2} parent=5 // pred_check_branch
        %2658 = sbr.rel (%p2656) target = $region113
      $region112: #{conv_abstraction_forward.2} parent=5 // pred_region
        %s2659 = ssub.s32 %s13, 2
        // Predicated region
        $region114: #{conv_abstraction_forward.2} parent=112 // pred_check
          %p2660 = pneg %p194
        $region115: #{conv_abstraction_forward.2} parent=112 // pred_check_branch
          %2662 = sbr.rel (%p2660) target = $region117
        $region116: #{conv_abstraction_forward.2} parent=112 // pred_region
          %s2663 = sand.u32 %s179, 1
          %s2664 = sand.u32 %s179, 1
          %s2665 = smul.addr %s2664, 32
          %s2666 = scalar_lea.vmem [#allocation4], %s2665
        $region117: #{conv_abstraction_forward.2} parent=112 // pred_fallthru
          _
      $region113: #{conv_abstraction_forward.2} parent=5 // pred_fallthru
        _
    $region6: #{conv_abstraction_forward.2} parent=1 // loop_footer
      %s17 = sadd.s32 1, %s13
    $region7: #{conv_abstraction_forward.2} parent=1 // loop_footer_branch
      %12 = sbr.rel target = $region3
    $region8: #{conv_abstraction_forward.2} parent=1 // loop_exit
      _

// kernel: conv_abstraction_forward.3
$region0: #{conv_abstraction_forward.3}
  #allocation0 [shape = 'u32[]', space=smem, size = 0x4, offset = 0x4, fixed_abs, tag = 'smem constant byte address 0x4 - core index']
  #allocation1 [shape = 'u32[144,128]{1,0:T(1,128)}', space=vmem, size = 0x12000, scoped, tag = 'internal scratch']
  %s0 = inlined_call_operand.vmem [shape: bf16[16,2048], index: 0, kind: input, shape index: {}]
  %s1 = inlined_call_operand.vmem [shape: bf16[2048,128], index: 1, kind: input, shape index: {}]
  %s2 = inlined_call_operand.vmem [shape: f32[1,128], index: 2, kind: input, shape index: {}]
  %s3 = inlined_call_operand.vmem [shape: f32[128,6], index: 3, kind: input, shape index: {}]
  %s4 = inlined_call_operand.vmem [shape: f32[1,6], index: 4, kind: input, shape index: {}]
  %s5 = inlined_call_operand.vmem [shape: f32[16,6], index: 5, kind: output, shape index: {}]
  %s6 = sld [smem:[#allocation0]]
  $region30: #{conv_abstraction_forward.3} parent=0
    _
  %s8 = ssub.s32 1, %s6
  %s9 = scalar_select 0, %s8, %s6
  // Predicated region
  $region2: #{conv_abstraction_forward.3} parent=0 // pred_check
    _
  $region3: #{conv_abstraction_forward.3} parent=0 // pred_check_branch
    %11 = sbr.rel (0) target = $region5
  $region4: #{conv_abstraction_forward.3} parent=0 // pred_region
    _
  $region5: #{conv_abstraction_forward.3} parent=0 // pred_fallthru
    _
  // Predicated region
  $region6: #{conv_abstraction_forward.3} parent=0 // pred_check
    _
  $region7: #{conv_abstraction_forward.3} parent=0 // pred_check_branch
    %13 = sbr.rel (0) target = $region9
  $region8: #{conv_abstraction_forward.3} parent=0 // pred_region
    _
  $region9: #{conv_abstraction_forward.3} parent=0 // pred_fallthru
    _
  // Predicated region
  $region10: #{conv_abstraction_forward.3} parent=0 // pred_check
    _
  $region11: #{conv_abstraction_forward.3} parent=0 // pred_check_branch
    %15 = sbr.rel (0) target = $region13
  $region12: #{conv_abstraction_forward.3} parent=0 // pred_region
    _
  $region13: #{conv_abstraction_forward.3} parent=0 // pred_fallthru
    _
  // Predicated region
  $region14: #{conv_abstraction_forward.3} parent=0 // pred_check
    _
  $region15: #{conv_abstraction_forward.3} parent=0 // pred_check_branch
    %17 = sbr.rel (0) target = $region17
  $region16: #{conv_abstraction_forward.3} parent=0 // pred_region
    _
  $region17: #{conv_abstraction_forward.3} parent=0 // pred_fallthru
    _
  // Predicated region
  $region18: #{conv_abstraction_forward.3} parent=0 // pred_check
    _
  $region19: #{conv_abstraction_forward.3} parent=0 // pred_check_branch
    %19 = sbr.rel (0) target = $region21
  $region20: #{conv_abstraction_forward.3} parent=0 // pred_region
    _
  $region21: #{conv_abstraction_forward.3} parent=0 // pred_fallthru
    _
  %v21 = vld [vmem:[%s0] sm:$0xff]
  %v22 = vld [vmem:[%s0 + $0x8] sm:$0xff]
  %v23 = vld [vmem:[%s0 + $0x10] sm:$0xff]
  %v24 = vld [vmem:[%s0 + $0x18] sm:$0xff]
  %v25 = vld [vmem:[%s0 + $0x20] sm:$0xff]
  %v26 = vld [vmem:[%s0 + $0x28] sm:$0xff]
  %v27 = vld [vmem:[%s0 + $0x30] sm:$0xff]
  %v28 = vld [vmem:[%s0 + $0x38] sm:$0xff]
  %v29 = vld [vmem:[%s0 + $0x40] sm:$0xff]
  %v30 = vld [vmem:[%s0 + $0x48] sm:$0xff]
  %v31 = vld [vmem:[%s0 + $0x50] sm:$0xff]
  %v32 = vld [vmem:[%s0 + $0x58] sm:$0xff]
  %v33 = vld [vmem:[%s0 + $0x60] sm:$0xff]
  %v34 = vld [vmem:[%s0 + $0x68] sm:$0xff]
  %v35 = vld [vmem:[%s0 + $0x70] sm:$0xff]
  %v36 = vld [vmem:[%s0 + $0x78] sm:$0xff]
  %v37 = vld [vmem:[%s1] sm:$0xf]
  %v38 = vld [vmem:[%s1 + $0x4] sm:$0xf]
  %v39 = vld [vmem:[%s1 + $0x8] sm:$0xf]
  %v40 = vld [vmem:[%s1 + $0xc] sm:$0xf]
  %v41 = vld [vmem:[%s1 + $0x10] sm:$0xf]
  %v42 = vld [vmem:[%s1 + $0x14] sm:$0xf]
  %v43 = vld [vmem:[%s1 + $0x18] sm:$0xf]
  %v44 = vld [vmem:[%s1 + $0x1c] sm:$0xf]
  %v45 = vld [vmem:[%s1 + $0x20] sm:$0xf]
  %v46 = vld [vmem:[%s1 + $0x24] sm:$0xf]
  %v47 = vld [vmem:[%s1 + $0x28] sm:$0xf]
  %v48 = vld [vmem:[%s1 + $0x2c] sm:$0xf]
  %v49 = vld [vmem:[%s1 + $0x30] sm:$0xf]
  %v50 = vld [vmem:[%s1 + $0x34] sm:$0xf]
  %v51 = vld [vmem:[%s1 + $0x38] sm:$0xf]
  %v52 = vld [vmem:[%s1 + $0x3c] sm:$0xf]
  %v53 = vld [vmem:[%s1 + $0x40] sm:$0xf]
  %v54 = vld [vmem:[%s1 + $0x44] sm:$0xf]
  %v55 = vld [vmem:[%s1 + $0x48] sm:$0xf]
  %v56 = vld [vmem:[%s1 + $0x4c] sm:$0xf]
  %v57 = vld [vmem:[%s1 + $0x50] sm:$0xf]
  %v58 = vld [vmem:[%s1 + $0x54] sm:$0xf]
  %v59 = vld [vmem:[%s1 + $0x58] sm:$0xf]
  %v60 = vld [vmem:[%s1 + $0x5c] sm:$0xf]
  %v61 = vld [vmem:[%s1 + $0x60] sm:$0xf]
  %v62 = vld [vmem:[%s1 + $0x64] sm:$0xf]
  %v63 = vld [vmem:[%s1 + $0x68] sm:$0xf]
  %v64 = vld [vmem:[%s1 + $0x6c] sm:$0xf]
  %v65 = vld [vmem:[%s1 + $0x70] sm:$0xf]
  %v66 = vld [vmem:[%s1 + $0x74] sm:$0xf]
  %v67 = vld [vmem:[%s1 + $0x78] sm:$0xf]
  %v68 = vld [vmem:[%s1 + $0x7c] sm:$0xf]
  %v69 = vld [vmem:[%s1 + $0x80] sm:$0xf]
  %v70 = vld [vmem:[%s1 + $0x84] sm:$0xf]
  %v71 = vld [vmem:[%s1 + $0x88] sm:$0xf]
  %v72 = vld [vmem:[%s1 + $0x8c] sm:$0xf]
  %v73 = vld [vmem:[%s1 + $0x90] sm:$0xf]
  %v74 = vld [vmem:[%s1 + $0x94] sm:$0xf]
  %v75 = vld [vmem:[%s1 + $0x98] sm:$0xf]
  %v76 = vld [vmem:[%s1 + $0x9c] sm:$0xf]
  %v77 = vld [vmem:[%s1 + $0xa0] sm:$0xf]
  %v78 = vld [vmem:[%s1 + $0xa4] sm:$0xf]
  %v79 = vld [vmem:[%s1 + $0xa8] sm:$0xf]
  %v80 = vld [vmem:[%s1 + $0xac] sm:$0xf]
  %v81 = vld [vmem:[%s1 + $0xb0] sm:$0xf]
  %v82 = vld [vmem:[%s1 + $0xb4] sm:$0xf]
  %v83 = vld [vmem:[%s1 + $0xb8] sm:$0xf]
  %v84 = vld [vmem:[%s1 + $0xbc] sm:$0xf]
  %v85 = vld [vmem:[%s1 + $0xc0] sm:$0xf]
  %v86 = vld [vmem:[%s1 + $0xc4] sm:$0xf]
  %v87 = vld [vmem:[%s1 + $0xc8] sm:$0xf]
  %v88 = vld [vmem:[%s1 + $0xcc] sm:$0xf]
  %v89 = vld [vmem:[%s1 + $0xd0] sm:$0xf]
  %v90 = vld [vmem:[%s1 + $0xd4] sm:$0xf]
  %v91 = vld [vmem:[%s1 + $0xd8] sm:$0xf]
  %v92 = vld [vmem:[%s1 + $0xdc] sm:$0xf]
  %v93 = vld [vmem:[%s1 + $0xe0] sm:$0xf]
  %v94 = vld [vmem:[%s1 + $0xe4] sm:$0xf]
  %v95 = vld [vmem:[%s1 + $0xe8] sm:$0xf]
  %v96 = vld [vmem:[%s1 + $0xec] sm:$0xf]
  %v97 = vld [vmem:[%s1 + $0xf0] sm:$0xf]
  %v98 = vld [vmem:[%s1 + $0xf4] sm:$0xf]
  %v99 = vld [vmem:[%s1 + $0xf8] sm:$0xf]
  %v100 = vld [vmem:[%s1 + $0xfc] sm:$0xf]
  %v101 = vld [vmem:[%s1 + $0x100] sm:$0xf]
  %v102 = vld [vmem:[%s1 + $0x104] sm:$0xf]
  %v103 = vld [vmem:[%s1 + $0x108] sm:$0xf]
  %v104 = vld [vmem:[%s1 + $0x10c] sm:$0xf]
  %v105 = vld [vmem:[%s1 + $0x110] sm:$0xf]
  %v106 = vld [vmem:[%s1 + $0x114] sm:$0xf]
  %v107 = vld [vmem:[%s1 + $0x118] sm:$0xf]
  %v108 = vld [vmem:[%s1 + $0x11c] sm:$0xf]
  %v109 = vld [vmem:[%s1 + $0x120] sm:$0xf]
  %v110 = vld [vmem:[%s1 + $0x124] sm:$0xf]
  %v111 = vld [vmem:[%s1 + $0x128] sm:$0xf]
  %v112 = vld [vmem:[%s1 + $0x12c] sm:$0xf]
  %v113 = vld [vmem:[%s1 + $0x130] sm:$0xf]
  %v114 = vld [vmem:[%s1 + $0x134] sm:$0xf]
  %v115 = vld [vmem:[%s1 + $0x138] sm:$0xf]
  %v116 = vld [vmem:[%s1 + $0x13c] sm:$0xf]
  %v117 = vld [vmem:[%s1 + $0x140] sm:$0xf]
  %v118 = vld [vmem:[%s1 + $0x144] sm:$0xf]
  %v119 = vld [vmem:[%s1 + $0x148] sm:$0xf]
  %v120 = vld [vmem:[%s1 + $0x14c] sm:$0xf]
  %v121 = vld [vmem:[%s1 + $0x150] sm:$0xf]
  %v122 = vld [vmem:[%s1 + $0x154] sm:$0xf]
  %v123 = vld [vmem:[%s1 + $0x158] sm:$0xf]
  %v124 = vld [vmem:[%s1 + $0x15c] sm:$0xf]
  %v125 = vld [vmem:[%s1 + $0x160] sm:$0xf]
  %v126 = vld [vmem:[%s1 + $0x164] sm:$0xf]
  %v127 = vld [vmem:[%s1 + $0x168] sm:$0xf]
  %v128 = vld [vmem:[%s1 + $0x16c] sm:$0xf]
  %v129 = vld [vmem:[%s1 + $0x170] sm:$0xf]
  %v130 = vld [vmem:[%s1 + $0x174] sm:$0xf]
  %v131 = vld [vmem:[%s1 + $0x178] sm:$0xf]
  %v132 = vld [vmem:[%s1 + $0x17c] sm:$0xf]
  %v133 = vld [vmem:[%s1 + $0x180] sm:$0xf]
  %v134 = vld [vmem:[%s1 + $0x184] sm:$0xf]
  %v135 = vld [vmem:[%s1 + $0x188] sm:$0xf]
  %v136 = vld [vmem:[%s1 + $0x18c] sm:$0xf]
  %v137 = vld [vmem:[%s1 + $0x190] sm:$0xf]
  %v138 = vld [vmem:[%s1 + $0x194] sm:$0xf]
  %v139 = vld [vmem:[%s1 + $0x198] sm:$0xf]
  %v140 = vld [vmem:[%s1 + $0x19c] sm:$0xf]
  %v141 = vld [vmem:[%s1 + $0x1a0] sm:$0xf]
  %v142 = vld [vmem:[%s1 + $0x1a4] sm:$0xf]
  %v143 = vld [vmem:[%s1 + $0x1a8] sm:$0xf]
  %v144 = vld [vmem:[%s1 + $0x1ac] sm:$0xf]
  %v145 = vld [vmem:[%s1 + $0x1b0] sm:$0xf]
  %v146 = vld [vmem:[%s1 + $0x1b4] sm:$0xf]
  %v147 = vld [vmem:[%s1 + $0x1b8] sm:$0xf]
  %v148 = vld [vmem:[%s1 + $0x1bc] sm:$0xf]
  %v149 = vld [vmem:[%s1 + $0x1c0] sm:$0xf]
  %v150 = vld [vmem:[%s1 + $0x1c4] sm:$0xf]
  %v151 = vld [vmem:[%s1 + $0x1c8] sm:$0xf]
  %v152 = vld [vmem:[%s1 + $0x1cc] sm:$0xf]
  %v153 = vld [vmem:[%s1 + $0x1d0] sm:$0xf]
  %v154 = vld [vmem:[%s1 + $0x1d4] sm:$0xf]
  %v155 = vld [vmem:[%s1 + $0x1d8] sm:$0xf]
  %v156 = vld [vmem:[%s1 + $0x1dc] sm:$0xf]
  %v157 = vld [vmem:[%s1 + $0x1e0] sm:$0xf]
  %v158 = vld [vmem:[%s1 + $0x1e4] sm:$0xf]
  %v159 = vld [vmem:[%s1 + $0x1e8] sm:$0xf]
  %v160 = vld [vmem:[%s1 + $0x1ec] sm:$0xf]
  %v161 = vld [vmem:[%s1 + $0x1f0] sm:$0xf]
  %v162 = vld [vmem:[%s1 + $0x1f4] sm:$0xf]
  %v163 = vld [vmem:[%s1 + $0x1f8] sm:$0xf]
  %v164 = vld [vmem:[%s1 + $0x1fc] sm:$0xf]
  %v165 = vld [vmem:[%s1 + $0x200] sm:$0xf]
  %v166 = vld [vmem:[%s1 + $0x204] sm:$0xf]
  %v167 = vld [vmem:[%s1 + $0x208] sm:$0xf]
  %v168 = vld [vmem:[%s1 + $0x20c] sm:$0xf]
  %v169 = vld [vmem:[%s1 + $0x210] sm:$0xf]
  %v170 = vld [vmem:[%s1 + $0x214] sm:$0xf]
  %v171 = vld [vmem:[%s1 + $0x218] sm:$0xf]
  %v172 = vld [vmem:[%s1 + $0x21c] sm:$0xf]
  %v173 = vld [vmem:[%s1 + $0x220] sm:$0xf]
  %v174 = vld [vmem:[%s1 + $0x224] sm:$0xf]
  %v175 = vld [vmem:[%s1 + $0x228] sm:$0xf]
  %v176 = vld [vmem:[%s1 + $0x22c] sm:$0xf]
  %v177 = vld [vmem:[%s1 + $0x230] sm:$0xf]
  %v178 = vld [vmem:[%s1 + $0x234] sm:$0xf]
  %v179 = vld [vmem:[%s1 + $0x238] sm:$0xf]
  %v180 = vld [vmem:[%s1 + $0x23c] sm:$0xf]
  %v181 = vld [vmem:[%s1 + $0x240] sm:$0xf]
  %v182 = vld [vmem:[%s1 + $0x244] sm:$0xf]
  %v183 = vld [vmem:[%s1 + $0x248] sm:$0xf]
  %v184 = vld [vmem:[%s1 + $0x24c] sm:$0xf]
  %v185 = vld [vmem:[%s1 + $0x250] sm:$0xf]
  %v186 = vld [vmem:[%s1 + $0x254] sm:$0xf]
  %v187 = vld [vmem:[%s1 + $0x258] sm:$0xf]
  %v188 = vld [vmem:[%s1 + $0x25c] sm:$0xf]
  %v189 = vld [vmem:[%s1 + $0x260] sm:$0xf]
  %v190 = vld [vmem:[%s1 + $0x264] sm:$0xf]
  %v191 = vld [vmem:[%s1 + $0x268] sm:$0xf]
  %v192 = vld [vmem:[%s1 + $0x26c] sm:$0xf]
  %v193 = vld [vmem:[%s1 + $0x270] sm:$0xf]
  %v194 = vld [vmem:[%s1 + $0x274] sm:$0xf]
  %v195 = vld [vmem:[%s1 + $0x278] sm:$0xf]
  %v196 = vld [vmem:[%s1 + $0x27c] sm:$0xf]
  %v197 = vld [vmem:[%s1 + $0x280] sm:$0xf]
  %v198 = vld [vmem:[%s1 + $0x284] sm:$0xf]
  %v199 = vld [vmem:[%s1 + $0x288] sm:$0xf]
  %v200 = vld [vmem:[%s1 + $0x28c] sm:$0xf]
  %v201 = vld [vmem:[%s1 + $0x290] sm:$0xf]
  %v202 = vld [vmem:[%s1 + $0x294] sm:$0xf]
  %v203 = vld [vmem:[%s1 + $0x298] sm:$0xf]
  %v204 = vld [vmem:[%s1 + $0x29c] sm:$0xf]
  %v205 = vld [vmem:[%s1 + $0x2a0] sm:$0xf]
  %v206 = vld [vmem:[%s1 + $0x2a4] sm:$0xf]
  %v207 = vld [vmem:[%s1 + $0x2a8] sm:$0xf]
  %v208 = vld [vmem:[%s1 + $0x2ac] sm:$0xf]
  %v209 = vld [vmem:[%s1 + $0x2b0] sm:$0xf]
  %v210 = vld [vmem:[%s1 + $0x2b4] sm:$0xf]
  %v211 = vld [vmem:[%s1 + $0x2b8] sm:$0xf]
  %v212 = vld [vmem:[%s1 + $0x2bc] sm:$0xf]
  %v213 = vld [vmem:[%s1 + $0x2c0] sm:$0xf]
  %v214 = vld [vmem:[%s1 + $0x2c4] sm:$0xf]
  %v215 = vld [vmem:[%s1 + $0x2c8] sm:$0xf]
  %v216 = vld [vmem:[%s1 + $0x2cc] sm:$0xf]
  %v217 = vld [vmem:[%s1 + $0x2d0] sm:$0xf]
  %v218 = vld [vmem:[%s1 + $0x2d4] sm:$0xf]
  %v219 = vld [vmem:[%s1 + $0x2d8] sm:$0xf]
  %v220 = vld [vmem:[%s1 + $0x2dc] sm:$0xf]
  %v221 = vld [vmem:[%s1 + $0x2e0] sm:$0xf]
  %v222 = vld [vmem:[%s1 + $0x2e4] sm:$0xf]
  %v223 = vld [vmem:[%s1 + $0x2e8] sm:$0xf]
  %v224 = vld [vmem:[%s1 + $0x2ec] sm:$0xf]
  %v225 = vld [vmem:[%s1 + $0x2f0] sm:$0xf]
  %v226 = vld [vmem:[%s1 + $0x2f4] sm:$0xf]
  %v227 = vld [vmem:[%s1 + $0x2f8] sm:$0xf]
  %v228 = vld [vmem:[%s1 + $0x2fc] sm:$0xf]
  %v229 = vld [vmem:[%s1 + $0x300] sm:$0xf]
  %v230 = vld [vmem:[%s1 + $0x304] sm:$0xf]
  %v231 = vld [vmem:[%s1 + $0x308] sm:$0xf]
  %v232 = vld [vmem:[%s1 + $0x30c] sm:$0xf]
  %v233 = vld [vmem:[%s1 + $0x310] sm:$0xf]
  %v234 = vld [vmem:[%s1 + $0x314] sm:$0xf]
  %v235 = vld [vmem:[%s1 + $0x318] sm:$0xf]
  %v236 = vld [vmem:[%s1 + $0x31c] sm:$0xf]
  %v237 = vld [vmem:[%s1 + $0x320] sm:$0xf]
  %v238 = vld [vmem:[%s1 + $0x324] sm:$0xf]
  %v239 = vld [vmem:[%s1 + $0x328] sm:$0xf]
  %v240 = vld [vmem:[%s1 + $0x32c] sm:$0xf]
  %v241 = vld [vmem:[%s1 + $0x330] sm:$0xf]
  %v242 = vld [vmem:[%s1 + $0x334] sm:$0xf]
  %v243 = vld [vmem:[%s1 + $0x338] sm:$0xf]
  %v244 = vld [vmem:[%s1 + $0x33c] sm:$0xf]
  %v245 = vld [vmem:[%s1 + $0x340] sm:$0xf]
  %v246 = vld [vmem:[%s1 + $0x344] sm:$0xf]
  %v247 = vld [vmem:[%s1 + $0x348] sm:$0xf]
  %v248 = vld [vmem:[%s1 + $0x34c] sm:$0xf]
  %v249 = vld [vmem:[%s1 + $0x350] sm:$0xf]
  %v250 = vld [vmem:[%s1 + $0x354] sm:$0xf]
  %v251 = vld [vmem:[%s1 + $0x358] sm:$0xf]
  %v252 = vld [vmem:[%s1 + $0x35c] sm:$0xf]
  %v253 = vld [vmem:[%s1 + $0x360] sm:$0xf]
  %v254 = vld [vmem:[%s1 + $0x364] sm:$0xf]
  %v255 = vld [vmem:[%s1 + $0x368] sm:$0xf]
  %v256 = vld [vmem:[%s1 + $0x36c] sm:$0xf]
  %v257 = vld [vmem:[%s1 + $0x370] sm:$0xf]
  %v258 = vld [vmem:[%s1 + $0x374] sm:$0xf]
  %v259 = vld [vmem:[%s1 + $0x378] sm:$0xf]
  %v260 = vld [vmem:[%s1 + $0x37c] sm:$0xf]
  %v261 = vld [vmem:[%s1 + $0x380] sm:$0xf]
  %v262 = vld [vmem:[%s1 + $0x384] sm:$0xf]
  %v263 = vld [vmem:[%s1 + $0x388] sm:$0xf]
  %v264 = vld [vmem:[%s1 + $0x38c] sm:$0xf]
  %v265 = vld [vmem:[%s1 + $0x390] sm:$0xf]
  %v266 = vld [vmem:[%s1 + $0x394] sm:$0xf]
  %v267 = vld [vmem:[%s1 + $0x398] sm:$0xf]
  %v268 = vld [vmem:[%s1 + $0x39c] sm:$0xf]
  %v269 = vld [vmem:[%s1 + $0x3a0] sm:$0xf]
  %v270 = vld [vmem:[%s1 + $0x3a4] sm:$0xf]
  %v271 = vld [vmem:[%s1 + $0x3a8] sm:$0xf]
  %v272 = vld [vmem:[%s1 + $0x3ac] sm:$0xf]
  %v273 = vld [vmem:[%s1 + $0x3b0] sm:$0xf]
  %v274 = vld [vmem:[%s1 + $0x3b4] sm:$0xf]
  %v275 = vld [vmem:[%s1 + $0x3b8] sm:$0xf]
  %v276 = vld [vmem:[%s1 + $0x3bc] sm:$0xf]
  %v277 = vld [vmem:[%s1 + $0x3c0] sm:$0xf]
  %v278 = vld [vmem:[%s1 + $0x3c4] sm:$0xf]
  %v279 = vld [vmem:[%s1 + $0x3c8] sm:$0xf]
  %v280 = vld [vmem:[%s1 + $0x3cc] sm:$0xf]
  %v281 = vld [vmem:[%s1 + $0x3d0] sm:$0xf]
  %v282 = vld [vmem:[%s1 + $0x3d4] sm:$0xf]
  %v283 = vld [vmem:[%s1 + $0x3d8] sm:$0xf]
  %v284 = vld [vmem:[%s1 + $0x3dc] sm:$0xf]
  %v285 = vld [vmem:[%s1 + $0x3e0] sm:$0xf]
  %v286 = vld [vmem:[%s1 + $0x3e4] sm:$0xf]
  %v287 = vld [vmem:[%s1 + $0x3e8] sm:$0xf]
  %v288 = vld [vmem:[%s1 + $0x3ec] sm:$0xf]
  %v289 = vld [vmem:[%s1 + $0x3f0] sm:$0xf]
  %v290 = vld [vmem:[%s1 + $0x3f4] sm:$0xf]
  %v291 = vld [vmem:[%s1 + $0x3f8] sm:$0xf]
  %v292 = vld [vmem:[%s1 + $0x3fc] sm:$0xf]
  %v293 = vld [vmem:[%s2] sm:$0x1]
  %v295 = vlaneseq
  %v296 = vshrl.u32 %v295, 7
  %v297 = vsub.s32 0, %v296
  %v298 = vrot.slane %v293, %v297
  %v316 = vunpack.c.l.b16 %v21
  %v317 = vunpack.c.h.b16 %v21
  %v318 = vunpack.c.l.b16 %v22
  %v319 = vunpack.c.h.b16 %v22
  %v320 = vunpack.c.l.b16 %v23
  %v321 = vunpack.c.h.b16 %v23
  %v322 = vunpack.c.l.b16 %v24
  %v323 = vunpack.c.h.b16 %v24
  %v324 = vunpack.c.l.b16 %v25
  %v325 = vunpack.c.h.b16 %v25
  %v326 = vunpack.c.l.b16 %v26
  %v327 = vunpack.c.h.b16 %v26
  %v328 = vunpack.c.l.b16 %v27
  %v329 = vunpack.c.h.b16 %v27
  %v330 = vunpack.c.l.b16 %v28
  %v331 = vunpack.c.h.b16 %v28
  %v332 = vunpack.c.l.b16 %v29
  %v333 = vunpack.c.h.b16 %v29
  %v334 = vunpack.c.l.b16 %v30
  %v335 = vunpack.c.h.b16 %v30
  %v336 = vunpack.c.l.b16 %v31
  %v337 = vunpack.c.h.b16 %v31
  %v338 = vunpack.c.l.b16 %v32
  %v339 = vunpack.c.h.b16 %v32
  %v340 = vunpack.c.l.b16 %v33
  %v341 = vunpack.c.h.b16 %v33
  %v342 = vunpack.c.l.b16 %v34
  %v343 = vunpack.c.h.b16 %v34
  %v344 = vunpack.c.l.b16 %v35
  %v345 = vunpack.c.h.b16 %v35
  %v346 = vunpack.c.l.b16 %v36
  %v347 = vunpack.c.h.b16 %v36
  %v348 = vpack.c.b16 %v332, %v316
  %v349 = vpack.c.b16 %v333, %v317
  %v350 = vpack.c.b16 %v334, %v318
  %v351 = vpack.c.b16 %v335, %v319
  %v352 = vpack.c.b16 %v336, %v320
  %v353 = vpack.c.b16 %v337, %v321
  %v354 = vpack.c.b16 %v338, %v322
  %v355 = vpack.c.b16 %v339, %v323
  %v356 = vpack.c.b16 %v340, %v324
  %v357 = vpack.c.b16 %v341, %v325
  %v358 = vpack.c.b16 %v342, %v326
  %v359 = vpack.c.b16 %v343, %v327
  %v360 = vpack.c.b16 %v344, %v328
  %v361 = vpack.c.b16 %v345, %v329
  %v362 = vpack.c.b16 %v346, %v330
  %v363 = vpack.c.b16 %v347, %v331
  %v636 = vunpack.c.l.b16 %v37
  %v637 = vunpack.c.l.b16 %v38
  %v638 = vunpack.c.l.b16 %v39
  %v639 = vunpack.c.l.b16 %v40
  %v640 = vunpack.c.l.b16 %v41
  %v641 = vunpack.c.l.b16 %v42
  %v642 = vunpack.c.l.b16 %v43
  %v643 = vunpack.c.l.b16 %v44
  %v644 = vunpack.c.l.b16 %v45
  %v645 = vunpack.c.l.b16 %v46
  %v646 = vunpack.c.l.b16 %v47
  %v647 = vunpack.c.l.b16 %v48
  %v648 = vunpack.c.l.b16 %v49
  %v649 = vunpack.c.l.b16 %v50
  %v650 = vunpack.c.l.b16 %v51
  %v651 = vunpack.c.l.b16 %v52
  %v652 = vunpack.c.l.b16 %v53
  %v653 = vunpack.c.l.b16 %v54
  %v654 = vunpack.c.l.b16 %v55
  %v655 = vunpack.c.l.b16 %v56
  %v656 = vunpack.c.l.b16 %v57
  %v657 = vunpack.c.l.b16 %v58
  %v658 = vunpack.c.l.b16 %v59
  %v659 = vunpack.c.l.b16 %v60
  %v660 = vunpack.c.l.b16 %v61
  %v661 = vunpack.c.l.b16 %v62
  %v662 = vunpack.c.l.b16 %v63
  %v663 = vunpack.c.l.b16 %v64
  %v664 = vunpack.c.l.b16 %v65
  %v665 = vunpack.c.l.b16 %v66
  %v666 = vunpack.c.l.b16 %v67
  %v667 = vunpack.c.l.b16 %v68
  %v668 = vunpack.c.l.b16 %v69
  %v669 = vunpack.c.l.b16 %v70
  %v670 = vunpack.c.l.b16 %v71
  %v671 = vunpack.c.l.b16 %v72
  %v672 = vunpack.c.l.b16 %v73
  %v673 = vunpack.c.l.b16 %v74
  %v674 = vunpack.c.l.b16 %v75
  %v675 = vunpack.c.l.b16 %v76
  %v676 = vunpack.c.l.b16 %v77
  %v677 = vunpack.c.l.b16 %v78
  %v678 = vunpack.c.l.b16 %v79
  %v679 = vunpack.c.l.b16 %v80
  %v680 = vunpack.c.l.b16 %v81
  %v681 = vunpack.c.l.b16 %v82
  %v682 = vunpack.c.l.b16 %v83
  %v683 = vunpack.c.l.b16 %v84
  %v684 = vunpack.c.l.b16 %v85
  %v685 = vunpack.c.l.b16 %v86
  %v686 = vunpack.c.l.b16 %v87
  %v687 = vunpack.c.l.b16 %v88
  %v688 = vunpack.c.l.b16 %v89
  %v689 = vunpack.c.l.b16 %v90
  %v690 = vunpack.c.l.b16 %v91
  %v691 = vunpack.c.l.b16 %v92
  %v692 = vunpack.c.l.b16 %v93
  %v693 = vunpack.c.l.b16 %v94
  %v694 = vunpack.c.l.b16 %v95
  %v695 = vunpack.c.l.b16 %v96
  %v696 = vunpack.c.l.b16 %v97
  %v697 = vunpack.c.l.b16 %v98
  %v698 = vunpack.c.l.b16 %v99
  %v699 = vunpack.c.l.b16 %v100
  %v700 = vunpack.c.l.b16 %v101
  %v701 = vunpack.c.l.b16 %v102
  %v702 = vunpack.c.l.b16 %v103
  %v703 = vunpack.c.l.b16 %v104
  %v704 = vunpack.c.l.b16 %v105
  %v705 = vunpack.c.l.b16 %v106
  %v706 = vunpack.c.l.b16 %v107
  %v707 = vunpack.c.l.b16 %v108
  %v708 = vunpack.c.l.b16 %v109
  %v709 = vunpack.c.l.b16 %v110
  %v710 = vunpack.c.l.b16 %v111
  %v711 = vunpack.c.l.b16 %v112
  %v712 = vunpack.c.l.b16 %v113
  %v713 = vunpack.c.l.b16 %v114
  %v714 = vunpack.c.l.b16 %v115
  %v715 = vunpack.c.l.b16 %v116
  %v716 = vunpack.c.l.b16 %v117
  %v717 = vunpack.c.l.b16 %v118
  %v718 = vunpack.c.l.b16 %v119
  %v719 = vunpack.c.l.b16 %v120
  %v720 = vunpack.c.l.b16 %v121
  %v721 = vunpack.c.l.b16 %v122
  %v722 = vunpack.c.l.b16 %v123
  %v723 = vunpack.c.l.b16 %v124
  %v724 = vunpack.c.l.b16 %v125
  %v725 = vunpack.c.l.b16 %v126
  %v726 = vunpack.c.l.b16 %v127
  %v727 = vunpack.c.l.b16 %v128
  %v728 = vunpack.c.l.b16 %v129
  %v729 = vunpack.c.l.b16 %v130
  %v730 = vunpack.c.l.b16 %v131
  %v731 = vunpack.c.l.b16 %v132
  %v732 = vunpack.c.l.b16 %v133
  %v733 = vunpack.c.l.b16 %v134
  %v734 = vunpack.c.l.b16 %v135
  %v735 = vunpack.c.l.b16 %v136
  %v736 = vunpack.c.l.b16 %v137
  %v737 = vunpack.c.l.b16 %v138
  %v738 = vunpack.c.l.b16 %v139
  %v739 = vunpack.c.l.b16 %v140
  %v740 = vunpack.c.l.b16 %v141
  %v741 = vunpack.c.l.b16 %v142
  %v742 = vunpack.c.l.b16 %v143
  %v743 = vunpack.c.l.b16 %v144
  %v744 = vunpack.c.l.b16 %v145
  %v745 = vunpack.c.l.b16 %v146
  %v746 = vunpack.c.l.b16 %v147
  %v747 = vunpack.c.l.b16 %v148
  %v748 = vunpack.c.l.b16 %v149
  %v749 = vunpack.c.l.b16 %v150
  %v750 = vunpack.c.l.b16 %v151
  %v751 = vunpack.c.l.b16 %v152
  %v752 = vunpack.c.l.b16 %v153
  %v753 = vunpack.c.l.b16 %v154
  %v754 = vunpack.c.l.b16 %v155
  %v755 = vunpack.c.l.b16 %v156
  %v756 = vunpack.c.l.b16 %v157
  %v757 = vunpack.c.l.b16 %v158
  %v758 = vunpack.c.l.b16 %v159
  %v759 = vunpack.c.l.b16 %v160
  %v760 = vunpack.c.l.b16 %v161
  %v761 = vunpack.c.l.b16 %v162
  %v762 = vunpack.c.l.b16 %v163
  %v763 = vunpack.c.l.b16 %v164
  %v764 = vunpack.c.l.b16 %v165
  %v765 = vunpack.c.l.b16 %v166
  %v766 = vunpack.c.l.b16 %v167
  %v767 = vunpack.c.l.b16 %v168
  %v768 = vunpack.c.l.b16 %v169
  %v769 = vunpack.c.l.b16 %v170
  %v770 = vunpack.c.l.b16 %v171
  %v771 = vunpack.c.l.b16 %v172
  %v772 = vunpack.c.l.b16 %v173
  %v773 = vunpack.c.l.b16 %v174
  %v774 = vunpack.c.l.b16 %v175
  %v775 = vunpack.c.l.b16 %v176
  %v776 = vunpack.c.l.b16 %v177
  %v777 = vunpack.c.l.b16 %v178
  %v778 = vunpack.c.l.b16 %v179
  %v779 = vunpack.c.l.b16 %v180
  %v780 = vunpack.c.l.b16 %v181
  %v781 = vunpack.c.l.b16 %v182
  %v782 = vunpack.c.l.b16 %v183
  %v783 = vunpack.c.l.b16 %v184
  %v784 = vunpack.c.l.b16 %v185
  %v785 = vunpack.c.l.b16 %v186
  %v786 = vunpack.c.l.b16 %v187
  %v787 = vunpack.c.l.b16 %v188
  %v788 = vunpack.c.l.b16 %v189
  %v789 = vunpack.c.l.b16 %v190
  %v790 = vunpack.c.l.b16 %v191
  %v791 = vunpack.c.l.b16 %v192
  %v792 = vunpack.c.l.b16 %v193
  %v793 = vunpack.c.l.b16 %v194
  %v794 = vunpack.c.l.b16 %v195
  %v795 = vunpack.c.l.b16 %v196
  %v796 = vunpack.c.l.b16 %v197
  %v797 = vunpack.c.l.b16 %v198
  %v798 = vunpack.c.l.b16 %v199
  %v799 = vunpack.c.l.b16 %v200
  %v800 = vunpack.c.l.b16 %v201
  %v801 = vunpack.c.l.b16 %v202
  %v802 = vunpack.c.l.b16 %v203
  %v803 = vunpack.c.l.b16 %v204
  %v804 = vunpack.c.l.b16 %v205
  %v805 = vunpack.c.l.b16 %v206
  %v806 = vunpack.c.l.b16 %v207
  %v807 = vunpack.c.l.b16 %v208
  %v808 = vunpack.c.l.b16 %v209
  %v809 = vunpack.c.l.b16 %v210
  %v810 = vunpack.c.l.b16 %v211
  %v811 = vunpack.c.l.b16 %v212
  %v812 = vunpack.c.l.b16 %v213
  %v813 = vunpack.c.l.b16 %v214
  %v814 = vunpack.c.l.b16 %v215
  %v815 = vunpack.c.l.b16 %v216
  %v816 = vunpack.c.l.b16 %v217
  %v817 = vunpack.c.l.b16 %v218
  %v818 = vunpack.c.l.b16 %v219
  %v819 = vunpack.c.l.b16 %v220
  %v820 = vunpack.c.l.b16 %v221
  %v821 = vunpack.c.l.b16 %v222
  %v822 = vunpack.c.l.b16 %v223
  %v823 = vunpack.c.l.b16 %v224
  %v824 = vunpack.c.l.b16 %v225
  %v825 = vunpack.c.l.b16 %v226
  %v826 = vunpack.c.l.b16 %v227
  %v827 = vunpack.c.l.b16 %v228
  %v828 = vunpack.c.l.b16 %v229
  %v829 = vunpack.c.l.b16 %v230
  %v830 = vunpack.c.l.b16 %v231
  %v831 = vunpack.c.l.b16 %v232
  %v832 = vunpack.c.l.b16 %v233
  %v833 = vunpack.c.l.b16 %v234
  %v834 = vunpack.c.l.b16 %v235
  %v835 = vunpack.c.l.b16 %v236
  %v836 = vunpack.c.l.b16 %v237
  %v837 = vunpack.c.l.b16 %v238
  %v838 = vunpack.c.l.b16 %v239
  %v839 = vunpack.c.l.b16 %v240
  %v840 = vunpack.c.l.b16 %v241
  %v841 = vunpack.c.l.b16 %v242
  %v842 = vunpack.c.l.b16 %v243
  %v843 = vunpack.c.l.b16 %v244
  %v844 = vunpack.c.l.b16 %v245
  %v845 = vunpack.c.l.b16 %v246
  %v846 = vunpack.c.l.b16 %v247
  %v847 = vunpack.c.l.b16 %v248
  %v848 = vunpack.c.l.b16 %v249
  %v849 = vunpack.c.l.b16 %v250
  %v850 = vunpack.c.l.b16 %v251
  %v851 = vunpack.c.l.b16 %v252
  %v852 = vunpack.c.l.b16 %v253
  %v853 = vunpack.c.l.b16 %v254
  %v854 = vunpack.c.l.b16 %v255
  %v855 = vunpack.c.l.b16 %v256
  %v856 = vunpack.c.l.b16 %v257
  %v857 = vunpack.c.l.b16 %v258
  %v858 = vunpack.c.l.b16 %v259
  %v859 = vunpack.c.l.b16 %v260
  %v860 = vunpack.c.l.b16 %v261
  %v861 = vunpack.c.l.b16 %v262
  %v862 = vunpack.c.l.b16 %v263
  %v863 = vunpack.c.l.b16 %v264
  %v864 = vunpack.c.l.b16 %v265
  %v865 = vunpack.c.l.b16 %v266
  %v866 = vunpack.c.l.b16 %v267
  %v867 = vunpack.c.l.b16 %v268
  %v868 = vunpack.c.l.b16 %v269
  %v869 = vunpack.c.l.b16 %v270
  %v870 = vunpack.c.l.b16 %v271
  %v871 = vunpack.c.l.b16 %v272
  %v872 = vunpack.c.l.b16 %v273
  %v873 = vunpack.c.l.b16 %v274
  %v874 = vunpack.c.l.b16 %v275
  %v875 = vunpack.c.l.b16 %v276
  %v876 = vunpack.c.l.b16 %v277
  %v877 = vunpack.c.l.b16 %v278
  %v878 = vunpack.c.l.b16 %v279
  %v879 = vunpack.c.l.b16 %v280
  %v880 = vunpack.c.l.b16 %v281
  %v881 = vunpack.c.l.b16 %v282
  %v882 = vunpack.c.l.b16 %v283
  %v883 = vunpack.c.l.b16 %v284
  %v884 = vunpack.c.l.b16 %v285
  %v885 = vunpack.c.l.b16 %v286
  %v886 = vunpack.c.l.b16 %v287
  %v887 = vunpack.c.l.b16 %v288
  %v888 = vunpack.c.l.b16 %v289
  %v889 = vunpack.c.l.b16 %v290
  %v890 = vunpack.c.l.b16 %v291
  %v891 = vunpack.c.l.b16 %v292
  %v892 = vpack.c.b16 %v637, %v636
  %v893 = vpack.c.b16 %v639, %v638
  %v894 = vpack.c.b16 %v641, %v640
  %v895 = vpack.c.b16 %v643, %v642
  %v896 = vpack.c.b16 %v645, %v644
  %v897 = vpack.c.b16 %v647, %v646
  %v898 = vpack.c.b16 %v649, %v648
  %v899 = vpack.c.b16 %v651, %v650
  %v900 = vpack.c.b16 %v653, %v652
  %v901 = vpack.c.b16 %v655, %v654
  %v902 = vpack.c.b16 %v657, %v656
  %v903 = vpack.c.b16 %v659, %v658
  %v904 = vpack.c.b16 %v661, %v660
  %v905 = vpack.c.b16 %v663, %v662
  %v906 = vpack.c.b16 %v665, %v664
  %v907 = vpack.c.b16 %v667, %v666
  %v908 = vpack.c.b16 %v669, %v668
  %v909 = vpack.c.b16 %v671, %v670
  %v910 = vpack.c.b16 %v673, %v672
  %v911 = vpack.c.b16 %v675, %v674
  %v912 = vpack.c.b16 %v677, %v676
  %v913 = vpack.c.b16 %v679, %v678
  %v914 = vpack.c.b16 %v681, %v680
  %v915 = vpack.c.b16 %v683, %v682
  %v916 = vpack.c.b16 %v685, %v684
  %v917 = vpack.c.b16 %v687, %v686
  %v918 = vpack.c.b16 %v689, %v688
  %v919 = vpack.c.b16 %v691, %v690
  %v920 = vpack.c.b16 %v693, %v692
  %v921 = vpack.c.b16 %v695, %v694
  %v922 = vpack.c.b16 %v697, %v696
  %v923 = vpack.c.b16 %v699, %v698
  %v924 = vpack.c.b16 %v701, %v700
  %v925 = vpack.c.b16 %v703, %v702
  %v926 = vpack.c.b16 %v705, %v704
  %v927 = vpack.c.b16 %v707, %v706
  %v928 = vpack.c.b16 %v709, %v708
  %v929 = vpack.c.b16 %v711, %v710
  %v930 = vpack.c.b16 %v713, %v712
  %v931 = vpack.c.b16 %v715, %v714
  %v932 = vpack.c.b16 %v717, %v716
  %v933 = vpack.c.b16 %v719, %v718
  %v934 = vpack.c.b16 %v721, %v720
  %v935 = vpack.c.b16 %v723, %v722
  %v936 = vpack.c.b16 %v725, %v724
  %v937 = vpack.c.b16 %v727, %v726
  %v938 = vpack.c.b16 %v729, %v728
  %v939 = vpack.c.b16 %v731, %v730
  %v940 = vpack.c.b16 %v733, %v732
  %v941 = vpack.c.b16 %v735, %v734
  %v942 = vpack.c.b16 %v737, %v736
  %v943 = vpack.c.b16 %v739, %v738
  %v944 = vpack.c.b16 %v741, %v740
  %v945 = vpack.c.b16 %v743, %v742
  %v946 = vpack.c.b16 %v745, %v744
  %v947 = vpack.c.b16 %v747, %v746
  %v948 = vpack.c.b16 %v749, %v748
  %v949 = vpack.c.b16 %v751, %v750
  %v950 = vpack.c.b16 %v753, %v752
  %v951 = vpack.c.b16 %v755, %v754
  %v952 = vpack.c.b16 %v757, %v756
  %v953 = vpack.c.b16 %v759, %v758
  %v954 = vpack.c.b16 %v761, %v760
  %v955 = vpack.c.b16 %v763, %v762
  %v956 = vpack.c.b16 %v765, %v764
  %v957 = vpack.c.b16 %v767, %v766
  %v958 = vpack.c.b16 %v769, %v768
  %v959 = vpack.c.b16 %v771, %v770
  %v960 = vpack.c.b16 %v773, %v772
  %v961 = vpack.c.b16 %v775, %v774
  %v962 = vpack.c.b16 %v777, %v776
  %v963 = vpack.c.b16 %v779, %v778
  %v964 = vpack.c.b16 %v781, %v780
  %v965 = vpack.c.b16 %v783, %v782
  %v966 = vpack.c.b16 %v785, %v784
  %v967 = vpack.c.b16 %v787, %v786
  %v968 = vpack.c.b16 %v789, %v788
  %v969 = vpack.c.b16 %v791, %v790
  %v970 = vpack.c.b16 %v793, %v792
  %v971 = vpack.c.b16 %v795, %v794
  %v972 = vpack.c.b16 %v797, %v796
  %v973 = vpack.c.b16 %v799, %v798
  %v974 = vpack.c.b16 %v801, %v800
  %v975 = vpack.c.b16 %v803, %v802
  %v976 = vpack.c.b16 %v805, %v804
  %v977 = vpack.c.b16 %v807, %v806
  %v978 = vpack.c.b16 %v809, %v808
  %v979 = vpack.c.b16 %v811, %v810
  %v980 = vpack.c.b16 %v813, %v812
  %v981 = vpack.c.b16 %v815, %v814
  %v982 = vpack.c.b16 %v817, %v816
  %v983 = vpack.c.b16 %v819, %v818
  %v984 = vpack.c.b16 %v821, %v820
  %v985 = vpack.c.b16 %v823, %v822
  %v986 = vpack.c.b16 %v825, %v824
  %v987 = vpack.c.b16 %v827, %v826
  %v988 = vpack.c.b16 %v829, %v828
  %v989 = vpack.c.b16 %v831, %v830
  %v990 = vpack.c.b16 %v833, %v832
  %v991 = vpack.c.b16 %v835, %v834
  %v992 = vpack.c.b16 %v837, %v836
  %v993 = vpack.c.b16 %v839, %v838
  %v994 = vpack.c.b16 %v841, %v840
  %v995 = vpack.c.b16 %v843, %v842
  %v996 = vpack.c.b16 %v845, %v844
  %v997 = vpack.c.b16 %v847, %v846
  %v998 = vpack.c.b16 %v849, %v848
  %v999 = vpack.c.b16 %v851, %v850
  %v1000 = vpack.c.b16 %v853, %v852
  %v1001 = vpack.c.b16 %v855, %v854
  %v1002 = vpack.c.b16 %v857, %v856
  %v1003 = vpack.c.b16 %v859, %v858
  %v1004 = vpack.c.b16 %v861, %v860
  %v1005 = vpack.c.b16 %v863, %v862
  %v1006 = vpack.c.b16 %v865, %v864
  %v1007 = vpack.c.b16 %v867, %v866
  %v1008 = vpack.c.b16 %v869, %v868
  %v1009 = vpack.c.b16 %v871, %v870
  %v1010 = vpack.c.b16 %v873, %v872
  %v1011 = vpack.c.b16 %v875, %v874
  %v1012 = vpack.c.b16 %v877, %v876
  %v1013 = vpack.c.b16 %v879, %v878
  %v1014 = vpack.c.b16 %v881, %v880
  %v1015 = vpack.c.b16 %v883, %v882
  %v1016 = vpack.c.b16 %v885, %v884
  %v1017 = vpack.c.b16 %v887, %v886
  %v1018 = vpack.c.b16 %v889, %v888
  %v1019 = vpack.c.b16 %v891, %v890
  %1148 = vmatprep.subr.bf16.mxu0 0
  %1149 = vmatpush1.bf16.msra.mxu0 %v892
  %1150 = vmatprep.subr.bf16.mxu0 0
  %1151 = vmatpush1.bf16.msra.mxu0 %v893
  %1152 = vmatprep.subr.bf16.mxu0 0
  %1153 = vmatpush1.bf16.msra.mxu0 %v894
  %1154 = vmatprep.subr.bf16.mxu0 0
  %1155 = vmatpush1.bf16.msra.mxu0 %v895
  %1156 = vmatprep.subr.bf16.mxu0 0
  %1157 = vmatpush1.bf16.msra.mxu0 %v896
  %1158 = vmatprep.subr.bf16.mxu0 0
  %1159 = vmatpush1.bf16.msra.mxu0 %v897
  %1160 = vmatprep.subr.bf16.mxu0 0
  %1161 = vmatpush1.bf16.msra.mxu0 %v898
  %1162 = vmatprep.subr.bf16.mxu0 0
  %1163 = vmatpush1.bf16.msra.mxu0 %v899
  %1164 = vmatprep.subr.bf16.mxu0 0
  %1165 = vmatpush1.bf16.msra.mxu0 %v900
  %1166 = vmatprep.subr.bf16.mxu0 0
  %1167 = vmatpush1.bf16.msra.mxu0 %v901
  %1168 = vmatprep.subr.bf16.mxu0 0
  %1169 = vmatpush1.bf16.msra.mxu0 %v902
  %1170 = vmatprep.subr.bf16.mxu0 0
  %1171 = vmatpush1.bf16.msra.mxu0 %v903
  %1172 = vmatprep.subr.bf16.mxu0 0
  %1173 = vmatpush1.bf16.msra.mxu0 %v904
  %1174 = vmatprep.subr.bf16.mxu0 0
  %1175 = vmatpush1.bf16.msra.mxu0 %v905
  %1176 = vmatprep.subr.bf16.mxu0 0
  %1177 = vmatpush1.bf16.msra.mxu0 %v906
  %1178 = vmatprep.subr.bf16.mxu0 0
  %1179 = vmatpush1.bf16.msra.mxu0 %v907
  %1180 = vmatprep.mubr.bf16.mxu0 %v349
  %1181 = vmatmul.mubr.bf16.gmra.mrb[0].mxu0 %v348
  %v1182 = vpop.f32.mrb[0].mxu0
  %v1183 = vadd.f32 %v298, %v1182
  %v1184 = vpop.f32.mrb[0].mxu0
  %v1185 = vpop.f32.mrb[0].mxu0
  %v1186 = vadd.f32 %v298, %v1185
  %v1187 = vpop.f32.mrb[0].mxu0
  %1188 = vdwg.mxu0
  %1189 = vmatprep.subr.bf16.mxu0 0
  %1190 = vmatpush1.bf16.msra.mxu0 %v908
  %1191 = vmatprep.subr.bf16.mxu0 0
  %1192 = vmatpush1.bf16.msra.mxu0 %v909
  %1193 = vmatprep.subr.bf16.mxu0 0
  %1194 = vmatpush1.bf16.msra.mxu0 %v910
  %1195 = vmatprep.subr.bf16.mxu0 0
  %1196 = vmatpush1.bf16.msra.mxu0 %v911
  %1197 = vmatprep.subr.bf16.mxu0 0
  %1198 = vmatpush1.bf16.msra.mxu0 %v912
  %1199 = vmatprep.subr.bf16.mxu0 0
  %1200 = vmatpush1.bf16.msra.mxu0 %v913
  %1201 = vmatprep.subr.bf16.mxu0 0
  %1202 = vmatpush1.bf16.msra.mxu0 %v914
  %1203 = vmatprep.subr.bf16.mxu0 0
  %1204 = vmatpush1.bf16.msra.mxu0 %v915
  %1205 = vmatprep.subr.bf16.mxu0 0
  %1206 = vmatpush1.bf16.msra.mxu0 %v916
  %1207 = vmatprep.subr.bf16.mxu0 0
  %1208 = vmatpush1.bf16.msra.mxu0 %v917
  %1209 = vmatprep.subr.bf16.mxu0 0
  %1210 = vmatpush1.bf16.msra.mxu0 %v918
  %1211 = vmatprep.subr.bf16.mxu0 0
  %1212 = vmatpush1.bf16.msra.mxu0 %v919
  %1213 = vmatprep.subr.bf16.mxu0 0
  %1214 = vmatpush1.bf16.msra.mxu0 %v920
  %1215 = vmatprep.subr.bf16.mxu0 0
  %1216 = vmatpush1.bf16.msra.mxu0 %v921
  %1217 = vmatprep.subr.bf16.mxu0 0
  %1218 = vmatpush1.bf16.msra.mxu0 %v922
  %1219 = vmatprep.subr.bf16.mxu0 0
  %1220 = vmatpush1.bf16.msra.mxu0 %v923
  %1221 = vmatprep.mubr.bf16.mxu0 %v351
  %1222 = vmatmul.mubr.bf16.gmra.mrb[0].mxu0 %v350
  %v1223 = vpop.f32.mrb[0].mxu0
  %v1224 = vadd.f32 %v1183, %v1223
  %v1225 = vpop.f32.mrb[0].mxu0
  %v1226 = vpop.f32.mrb[0].mxu0
  %v1227 = vadd.f32 %v1186, %v1226
  %v1228 = vpop.f32.mrb[0].mxu0
  %1229 = vdwg.mxu0
  %1230 = vmatprep.subr.bf16.mxu0 0
  %1231 = vmatpush1.bf16.msra.mxu0 %v924
  %1232 = vmatprep.subr.bf16.mxu0 0
  %1233 = vmatpush1.bf16.msra.mxu0 %v925
  %1234 = vmatprep.subr.bf16.mxu0 0
  %1235 = vmatpush1.bf16.msra.mxu0 %v926
  %1236 = vmatprep.subr.bf16.mxu0 0
  %1237 = vmatpush1.bf16.msra.mxu0 %v927
  %1238 = vmatprep.subr.bf16.mxu0 0
  %1239 = vmatpush1.bf16.msra.mxu0 %v928
  %1240 = vmatprep.subr.bf16.mxu0 0
  %1241 = vmatpush1.bf16.msra.mxu0 %v929
  %1242 = vmatprep.subr.bf16.mxu0 0
  %1243 = vmatpush1.bf16.msra.mxu0 %v930
  %1244 = vmatprep.subr.bf16.mxu0 0
  %1245 = vmatpush1.bf16.msra.mxu0 %v931
  %1246 = vmatprep.subr.bf16.mxu0 0
  %1247 = vmatpush1.bf16.msra.mxu0 %v932
  %1248 = vmatprep.subr.bf16.mxu0 0
  %1249 = vmatpush1.bf16.msra.mxu0 %v933
  %1250 = vmatprep.subr.bf16.mxu0 0
  %1251 = vmatpush1.bf16.msra.mxu0 %v934
  %1252 = vmatprep.subr.bf16.mxu0 0
  %1253 = vmatpush1.bf16.msra.mxu0 %v935
  %1254 = vmatprep.subr.bf16.mxu0 0
  %1255 = vmatpush1.bf16.msra.mxu0 %v936
  %1256 = vmatprep.subr.bf16.mxu0 0
  %1257 = vmatpush1.bf16.msra.mxu0 %v937
  %1258 = vmatprep.subr.bf16.mxu0 0
  %1259 = vmatpush1.bf16.msra.mxu0 %v938
  %1260 = vmatprep.subr.bf16.mxu0 0
  %1261 = vmatpush1.bf16.msra.mxu0 %v939
  %1262 = vmatprep.mubr.bf16.mxu0 %v353
  %1263 = vmatmul.mubr.bf16.gmra.mrb[0].mxu0 %v352
  %v1264 = vpop.f32.mrb[0].mxu0
  %v1265 = vadd.f32 %v1224, %v1264
  %v1266 = vpop.f32.mrb[0].mxu0
  %v1267 = vpop.f32.mrb[0].mxu0
  %v1268 = vadd.f32 %v1227, %v1267
  %v1269 = vpop.f32.mrb[0].mxu0
  %1270 = vdwg.mxu0
  %1271 = vmatprep.subr.bf16.mxu0 0
  %1272 = vmatpush1.bf16.msra.mxu0 %v940
  %1273 = vmatprep.subr.bf16.mxu0 0
  %1274 = vmatpush1.bf16.msra.mxu0 %v941
  %1275 = vmatprep.subr.bf16.mxu0 0
  %1276 = vmatpush1.bf16.msra.mxu0 %v942
  %1277 = vmatprep.subr.bf16.mxu0 0
  %1278 = vmatpush1.bf16.msra.mxu0 %v943
  %1279 = vmatprep.subr.bf16.mxu0 0
  %1280 = vmatpush1.bf16.msra.mxu0 %v944
  %1281 = vmatprep.subr.bf16.mxu0 0
  %1282 = vmatpush1.bf16.msra.mxu0 %v945
  %1283 = vmatprep.subr.bf16.mxu0 0
  %1284 = vmatpush1.bf16.msra.mxu0 %v946
  %1285 = vmatprep.subr.bf16.mxu0 0
  %1286 = vmatpush1.bf16.msra.mxu0 %v947
  %1287 = vmatprep.subr.bf16.mxu0 0
  %1288 = vmatpush1.bf16.msra.mxu0 %v948
  %1289 = vmatprep.subr.bf16.mxu0 0
  %1290 = vmatpush1.bf16.msra.mxu0 %v949
  %1291 = vmatprep.subr.bf16.mxu0 0
  %1292 = vmatpush1.bf16.msra.mxu0 %v950
  %1293 = vmatprep.subr.bf16.mxu0 0
  %1294 = vmatpush1.bf16.msra.mxu0 %v951
  %1295 = vmatprep.subr.bf16.mxu0 0
  %1296 = vmatpush1.bf16.msra.mxu0 %v952
  %1297 = vmatprep.subr.bf16.mxu0 0
  %1298 = vmatpush1.bf16.msra.mxu0 %v953
  %1299 = vmatprep.subr.bf16.mxu0 0
  %1300 = vmatpush1.bf16.msra.mxu0 %v954
  %1301 = vmatprep.subr.bf16.mxu0 0
  %1302 = vmatpush1.bf16.msra.mxu0 %v955
  %1303 = vmatprep.mubr.bf16.mxu0 %v355
  %1304 = vmatmul.mubr.bf16.gmra.mrb[0].mxu0 %v354
  %v1305 = vpop.f32.mrb[0].mxu0
  %v1306 = vadd.f32 %v1265, %v1305
  %v1307 = vpop.f32.mrb[0].mxu0
  %v1308 = vpop.f32.mrb[0].mxu0
  %v1309 = vadd.f32 %v1268, %v1308
  %v1310 = vpop.f32.mrb[0].mxu0
  %1311 = vdwg.mxu0
  %1312 = vmatprep.subr.bf16.mxu0 0
  %1313 = vmatpush1.bf16.msra.mxu0 %v956
  %1314 = vmatprep.subr.bf16.mxu0 0
  %1315 = vmatpush1.bf16.msra.mxu0 %v957
  %1316 = vmatprep.subr.bf16.mxu0 0
  %1317 = vmatpush1.bf16.msra.mxu0 %v958
  %1318 = vmatprep.subr.bf16.mxu0 0
  %1319 = vmatpush1.bf16.msra.mxu0 %v959
  %1320 = vmatprep.subr.bf16.mxu0 0
  %1321 = vmatpush1.bf16.msra.mxu0 %v960
  %1322 = vmatprep.subr.bf16.mxu0 0
  %1323 = vmatpush1.bf16.msra.mxu0 %v961
  %1324 = vmatprep.subr.bf16.mxu0 0
  %1325 = vmatpush1.bf16.msra.mxu0 %v962
  %1326 = vmatprep.subr.bf16.mxu0 0
  %1327 = vmatpush1.bf16.msra.mxu0 %v963
  %1328 = vmatprep.subr.bf16.mxu0 0
  %1329 = vmatpush1.bf16.msra.mxu0 %v964
  %1330 = vmatprep.subr.bf16.mxu0 0
  %1331 = vmatpush1.bf16.msra.mxu0 %v965
  %1332 = vmatprep.subr.bf16.mxu0 0
  %1333 = vmatpush1.bf16.msra.mxu0 %v966
  %1334 = vmatprep.subr.bf16.mxu0 0
  %1335 = vmatpush1.bf16.msra.mxu0 %v967
  %1336 = vmatprep.subr.bf16.mxu0 0
  %1337 = vmatpush1.bf16.msra.mxu0 %v968
  %1338 = vmatprep.subr.bf16.mxu0 0
  %1339 = vmatpush1.bf16.msra.mxu0 %v969
  %1340 = vmatprep.subr.bf16.mxu0 0
  %1341 = vmatpush1.bf16.msra.mxu0 %v970
  %1342 = vmatprep.subr.bf16.mxu0 0
  %1343 = vmatpush1.bf16.msra.mxu0 %v971
  %1344 = vmatprep.mubr.bf16.mxu0 %v357
  %1345 = vmatmul.mubr.bf16.gmra.mrb[0].mxu0 %v356
  %v1346 = vpop.f32.mrb[0].mxu0
  %v1347 = vadd.f32 %v1306, %v1346
  %v1348 = vpop.f32.mrb[0].mxu0
  %v1349 = vpop.f32.mrb[0].mxu0
  %v1350 = vadd.f32 %v1309, %v1349
  %v1351 = vpop.f32.mrb[0].mxu0
  %1352 = vdwg.mxu0
  %1353 = vmatprep.subr.bf16.mxu0 0
  %1354 = vmatpush1.bf16.msra.mxu0 %v972
  %1355 = vmatprep.subr.bf16.mxu0 0
  %1356 = vmatpush1.bf16.msra.mxu0 %v973
  %1357 = vmatprep.subr.bf16.mxu0 0
  %1358 = vmatpush1.bf16.msra.mxu0 %v974
  %1359 = vmatprep.subr.bf16.mxu0 0
  %1360 = vmatpush1.bf16.msra.mxu0 %v975
  %1361 = vmatprep.subr.bf16.mxu0 0
  %1362 = vmatpush1.bf16.msra.mxu0 %v976
  %1363 = vmatprep.subr.bf16.mxu0 0
  %1364 = vmatpush1.bf16.msra.mxu0 %v977
  %1365 = vmatprep.subr.bf16.mxu0 0
  %1366 = vmatpush1.bf16.msra.mxu0 %v978
  %1367 = vmatprep.subr.bf16.mxu0 0
  %1368 = vmatpush1.bf16.msra.mxu0 %v979
  %1369 = vmatprep.subr.bf16.mxu0 0
  %1370 = vmatpush1.bf16.msra.mxu0 %v980
  %1371 = vmatprep.subr.bf16.mxu0 0
  %1372 = vmatpush1.bf16.msra.mxu0 %v981
  %1373 = vmatprep.subr.bf16.mxu0 0
  %1374 = vmatpush1.bf16.msra.mxu0 %v982
  %1375 = vmatprep.subr.bf16.mxu0 0
  %1376 = vmatpush1.bf16.msra.mxu0 %v983
  %1377 = vmatprep.subr.bf16.mxu0 0
  %1378 = vmatpush1.bf16.msra.mxu0 %v984
  %1379 = vmatprep.subr.bf16.mxu0 0
  %1380 = vmatpush1.bf16.msra.mxu0 %v985
  %1381 = vmatprep.subr.bf16.mxu0 0
  %1382 = vmatpush1.bf16.msra.mxu0 %v986
  %1383 = vmatprep.subr.bf16.mxu0 0
  %1384 = vmatpush1.bf16.msra.mxu0 %v987
  %1385 = vmatprep.mubr.bf16.mxu0 %v359
  %1386 = vmatmul.mubr.bf16.gmra.mrb[0].mxu0 %v358
  %v1387 = vpop.f32.mrb[0].mxu0
  %v1388 = vadd.f32 %v1347, %v1387
  %v1389 = vpop.f32.mrb[0].mxu0
  %v1390 = vpop.f32.mrb[0].mxu0
  %v1391 = vadd.f32 %v1350, %v1390
  %v1392 = vpop.f32.mrb[0].mxu0
  %1393 = vdwg.mxu0
  %1394 = vmatprep.subr.bf16.mxu0 0
  %1395 = vmatpush1.bf16.msra.mxu0 %v988
  %1396 = vmatprep.subr.bf16.mxu0 0
  %1397 = vmatpush1.bf16.msra.mxu0 %v989
  %1398 = vmatprep.subr.bf16.mxu0 0
  %1399 = vmatpush1.bf16.msra.mxu0 %v990
  %1400 = vmatprep.subr.bf16.mxu0 0
  %1401 = vmatpush1.bf16.msra.mxu0 %v991
  %1402 = vmatprep.subr.bf16.mxu0 0
  %1403 = vmatpush1.bf16.msra.mxu0 %v992
  %1404 = vmatprep.subr.bf16.mxu0 0
  %1405 = vmatpush1.bf16.msra.mxu0 %v993
  %1406 = vmatprep.subr.bf16.mxu0 0
  %1407 = vmatpush1.bf16.msra.mxu0 %v994
  %1408 = vmatprep.subr.bf16.mxu0 0
  %1409 = vmatpush1.bf16.msra.mxu0 %v995
  %1410 = vmatprep.subr.bf16.mxu0 0
  %1411 = vmatpush1.bf16.msra.mxu0 %v996
  %1412 = vmatprep.subr.bf16.mxu0 0
  %1413 = vmatpush1.bf16.msra.mxu0 %v997
  %1414 = vmatprep.subr.bf16.mxu0 0
  %1415 = vmatpush1.bf16.msra.mxu0 %v998
  %1416 = vmatprep.subr.bf16.mxu0 0
  %1417 = vmatpush1.bf16.msra.mxu0 %v999
  %1418 = vmatprep.subr.bf16.mxu0 0
  %1419 = vmatpush1.bf16.msra.mxu0 %v1000
  %1420 = vmatprep.subr.bf16.mxu0 0
  %1421 = vmatpush1.bf16.msra.mxu0 %v1001
  %1422 = vmatprep.subr.bf16.mxu0 0
  %1423 = vmatpush1.bf16.msra.mxu0 %v1002
  %1424 = vmatprep.subr.bf16.mxu0 0
  %1425 = vmatpush1.bf16.msra.mxu0 %v1003
  %1426 = vmatprep.mubr.bf16.mxu0 %v361
  %1427 = vmatmul.mubr.bf16.gmra.mrb[0].mxu0 %v360
  %v1428 = vpop.f32.mrb[0].mxu0
  %v1429 = vadd.f32 %v1388, %v1428
  %v1430 = vpop.f32.mrb[0].mxu0
  %v1431 = vpop.f32.mrb[0].mxu0
  %v1432 = vadd.f32 %v1391, %v1431
  %v1433 = vpop.f32.mrb[0].mxu0
  %1434 = vdwg.mxu0
  %1435 = vmatprep.subr.bf16.mxu0 0
  %1436 = vmatpush1.bf16.msra.mxu0 %v1004
  %1437 = vmatprep.subr.bf16.mxu0 0
  %1438 = vmatpush1.bf16.msra.mxu0 %v1005
  %1439 = vmatprep.subr.bf16.mxu0 0
  %1440 = vmatpush1.bf16.msra.mxu0 %v1006
  %1441 = vmatprep.subr.bf16.mxu0 0
  %1442 = vmatpush1.bf16.msra.mxu0 %v1007
  %1443 = vmatprep.subr.bf16.mxu0 0
  %1444 = vmatpush1.bf16.msra.mxu0 %v1008
  %1445 = vmatprep.subr.bf16.mxu0 0
  %1446 = vmatpush1.bf16.msra.mxu0 %v1009
  %1447 = vmatprep.subr.bf16.mxu0 0
  %1448 = vmatpush1.bf16.msra.mxu0 %v1010
  %1449 = vmatprep.subr.bf16.mxu0 0
  %1450 = vmatpush1.bf16.msra.mxu0 %v1011
  %1451 = vmatprep.subr.bf16.mxu0 0
  %1452 = vmatpush1.bf16.msra.mxu0 %v1012
  %1453 = vmatprep.subr.bf16.mxu0 0
  %1454 = vmatpush1.bf16.msra.mxu0 %v1013
  %1455 = vmatprep.subr.bf16.mxu0 0
  %1456 = vmatpush1.bf16.msra.mxu0 %v1014
  %1457 = vmatprep.subr.bf16.mxu0 0
  %1458 = vmatpush1.bf16.msra.mxu0 %v1015
  %1459 = vmatprep.subr.bf16.mxu0 0
  %1460 = vmatpush1.bf16.msra.mxu0 %v1016
  %1461 = vmatprep.subr.bf16.mxu0 0
  %1462 = vmatpush1.bf16.msra.mxu0 %v1017
  %1463 = vmatprep.subr.bf16.mxu0 0
  %1464 = vmatpush1.bf16.msra.mxu0 %v1018
  %1465 = vmatprep.subr.bf16.mxu0 0
  %1466 = vmatpush1.bf16.msra.mxu0 %v1019
  %1467 = vmatprep.mubr.bf16.mxu0 %v363
  %1468 = vmatmul.mubr.bf16.gmra.mrb[0].mxu0 %v362
  %v1469 = vpop.f32.mrb[0].mxu0
  %v1470 = vadd.f32 %v1429, %v1469
  %v1471 = vpop.f32.mrb[0].mxu0
  %v1472 = vpop.f32.mrb[0].mxu0
  %v1473 = vadd.f32 %v1432, %v1472
  %v1474 = vpop.f32.mrb[0].mxu0
  %1475 = vdwg.mxu0
  %v1476 = vmax.f32 %v1470, 0.0
  %v1477 = vmax.f32 %v1473, 0.0
  %v1478 = vld [vmem:[%s3] sm:$0xff]
  %v1479 = vld [vmem:[%s3 + $0x8] sm:$0xff]
  %v1480 = vld [vmem:[%s3 + $0x10] sm:$0xff]
  %v1481 = vld [vmem:[%s3 + $0x18] sm:$0xff]
  %v1482 = vld [vmem:[%s3 + $0x20] sm:$0xff]
  %v1483 = vld [vmem:[%s3 + $0x28] sm:$0xff]
  %v1484 = vld [vmem:[%s3 + $0x30] sm:$0xff]
  %v1485 = vld [vmem:[%s3 + $0x38] sm:$0xff]
  %v1486 = vld [vmem:[%s3 + $0x40] sm:$0xff]
  %v1487 = vld [vmem:[%s3 + $0x48] sm:$0xff]
  %v1488 = vld [vmem:[%s3 + $0x50] sm:$0xff]
  %v1489 = vld [vmem:[%s3 + $0x58] sm:$0xff]
  %v1490 = vld [vmem:[%s3 + $0x60] sm:$0xff]
  %v1491 = vld [vmem:[%s3 + $0x68] sm:$0xff]
  %v1492 = vld [vmem:[%s3 + $0x70] sm:$0xff]
  %v1493 = vld [vmem:[%s3 + $0x78] sm:$0xff]
  %v1494 = vld [vmem:[%s4] sm:$0x1]
  %v1496 = vlaneseq
  %v1497 = vshrl.u32 %v1496, 7
  %v1498 = vsub.s32 0, %v1497
  %v1499 = vrot.slane %v1494, %v1498
  %1501 = vmatprep.subr.mxu0 0.0
  %1502 = vmatpush1.msra.mxu0 %v1478
  %1503 = vmatprep.subr.mxu0 0.0
  %1504 = vmatpush1.msra.mxu0 %v1479
  %1505 = vmatprep.subr.mxu0 0.0
  %1506 = vmatpush1.msra.mxu0 %v1480
  %1507 = vmatprep.subr.mxu0 0.0
  %1508 = vmatpush1.msra.mxu0 %v1481
  %1509 = vmatprep.subr.mxu0 0.0
  %1510 = vmatpush1.msra.mxu0 %v1482
  %1511 = vmatprep.subr.mxu0 0.0
  %1512 = vmatpush1.msra.mxu0 %v1483
  %1513 = vmatprep.subr.mxu0 0.0
  %1514 = vmatpush1.msra.mxu0 %v1484
  %1515 = vmatprep.subr.mxu0 0.0
  %1516 = vmatpush1.msra.mxu0 %v1485
  %1517 = vmatprep.subr.mxu0 0.0
  %1518 = vmatpush1.msra.mxu0 %v1486
  %1519 = vmatprep.subr.mxu0 0.0
  %1520 = vmatpush1.msra.mxu0 %v1487
  %1521 = vmatprep.subr.mxu0 0.0
  %1522 = vmatpush1.msra.mxu0 %v1488
  %1523 = vmatprep.subr.mxu0 0.0
  %1524 = vmatpush1.msra.mxu0 %v1489
  %1525 = vmatprep.subr.mxu0 0.0
  %1526 = vmatpush1.msra.mxu0 %v1490
  %1527 = vmatprep.subr.mxu0 0.0
  %1528 = vmatpush1.msra.mxu0 %v1491
  %1529 = vmatprep.subr.mxu0 0.0
  %1530 = vmatpush1.msra.mxu0 %v1492
  %1531 = vmatprep.subr.mxu0 0.0
  %1532 = vmatpush1.msra.mxu0 %v1493
  %1533 = vmatprep.subr.mxu0 0.0
  %1534 = vmatpush1.msra.mxu0 0.0
  %1535 = vmatprep.subr.mxu0 0.0
  %1536 = vmatpush1.msra.mxu0 0.0
  %1537 = vmatprep.subr.mxu0 0.0
  %1538 = vmatpush1.msra.mxu0 0.0
  %1539 = vmatprep.subr.mxu0 0.0
  %1540 = vmatpush1.msra.mxu0 0.0
  %1541 = vmatprep.subr.mxu0 0.0
  %1542 = vmatpush1.msra.mxu0 0.0
  %1543 = vmatprep.subr.mxu0 0.0
  %1544 = vmatpush1.msra.mxu0 0.0
  %1545 = vmatprep.subr.mxu0 0.0
  %1546 = vmatpush1.msra.mxu0 0.0
  %1547 = vmatprep.subr.mxu0 0.0
  %1548 = vmatpush1.msra.mxu0 0.0
  %1549 = vmatprep.subr.mxu0 0.0
  %1550 = vmatpush1.msra.mxu0 0.0
  %1551 = vmatprep.subr.mxu0 0.0
  %1552 = vmatpush1.msra.mxu0 0.0
  %1553 = vmatprep.subr.mxu0 0.0
  %1554 = vmatpush1.msra.mxu0 0.0
  %1555 = vmatprep.subr.mxu0 0.0
  %1556 = vmatpush1.msra.mxu0 0.0
  %1557 = vmatprep.subr.mxu0 0.0
  %1558 = vmatpush1.msra.mxu0 0.0
  %1559 = vmatprep.subr.mxu0 0.0
  %1560 = vmatpush1.msra.mxu0 0.0
  %1561 = vmatprep.subr.mxu0 0.0
  %1562 = vmatpush1.msra.mxu0 0.0
  %1563 = vmatprep.subr.mxu0 0.0
  %1564 = vmatpush1.msra.mxu0 0.0
  %1565 = vmatprep.mubr.f32.mxu0 0.0
  %1566 = vmatmul.mubr.f32.gmra.mrb[0].mxu0 %v1476
  %v1567 = vpop.f32.mrb[0].mxu0
  %v1568 = vadd.f32 %v1499, %v1567
  %v1569 = vpop.f32.mrb[0].mxu0
  %1570 = vmatprep.mubr.f32.mxu0 0.0
  %1571 = vmatmul.mubr.f32.gmra.mrb[0].mxu0 %v1477
  %v1572 = vpop.f32.mrb[0].mxu0
  %v1573 = vadd.f32 %v1499, %v1572
  %v1574 = vpop.f32.mrb[0].mxu0
  %1575 = vdwg.mxu0
  %vm1576 = vcmask 48128
  %v1577 = vsel %vm1576, %v1568, -inf
  %1578 = vmax.xlane.f32.xlu0 %v1577
  %v1579 = vpop.xlane.xlu0 %1578
  %v1580 = vsel %vm1576, %v1573, -inf
  %1581 = vmax.xlane.f32.xlu0 %v1580
  %v1582 = vpop.xlane.xlu0 %1581
  %v1583 = vsub.f32 %v1568, %v1579
  %v1584 = vsub.f32 %v1573, %v1582
  %v1585 = vmul.f32 %v1583, 1.442695
  %v1586 = vpow.pop %v1585
  %v1587 = vmul.f32 %v1584, 1.442695
  %v1588 = vpow.pop %v1587
  %v1589 = vsel %vm1576, %v1586, 0.0
  %1590 = vadd.xlane.f32.xlu0 %v1589
  %v1591 = vpop.xlane.xlu0 %1590
  %v1592 = vsel %vm1576, %v1588, 0.0
  %1593 = vadd.xlane.f32.xlu0 %v1592
  %v1594 = vpop.xlane.xlu0 %1593
  %v1595 = vrcp.pop %v1591
  %v1596 = vrcp.pop %v1594
  %v1597 = vmul.f32 %v1586, %v1595
  %v1598 = vmul.f32 %v1588, %v1596
  %v1599 = vadd.f32 %v1597, 1e-16
  %v1600 = vadd.f32 %v1598, 1e-16
  %1601 = vst.msk [vmem:[%s5] sm:$0xff] %vm1576, %v1599
  %1602 = vst.msk [vmem:[%s5 + $0x8] sm:$0xff] %vm1576, %v1600
  // Predicated region
  $region22: #{conv_abstraction_forward.3} parent=0 // pred_check
    _
  $region23: #{conv_abstraction_forward.3} parent=0 // pred_check_branch
    %1604 = sbr.rel (0) target = $region25
  $region24: #{conv_abstraction_forward.3} parent=0 // pred_region
    _
  $region25: #{conv_abstraction_forward.3} parent=0 // pred_fallthru
    _
  // Predicated region
  $region26: #{conv_abstraction_forward.3} parent=0 // pred_check
    _
  $region27: #{conv_abstraction_forward.3} parent=0 // pred_check_branch
    %1606 = sbr.rel (0) target = $region29
  $region28: #{conv_abstraction_forward.3} parent=0 // pred_region
    _
  $region29: #{conv_abstraction_forward.3} parent=0 // pred_fallthru
    _

</llo_original>
